<compile_context>
chip_gen: v5e
topology: v5e:2x2
jax: 0.10.0
libtpu: 0.0.40
codegen_flags: <defaults>
</compile_context>

<pallas_src>
import functools

import jax
import jax.numpy as jnp
from jax.experimental import pallas as pl
from jax.experimental.pallas import tpu as pltpu


def _triplet_attention_kernel(x_ref, w_ref, bn_ref, o_ref,
                              ph_mx_ref, ph_mn_ref,
                              pw_mx_ref, pw_mn_ref,
                              ps_mx_ref, ps_mn_ref, *, C, H, W, K):
    """One batch element per grid step.

    x_ref:   (C, H, W)        input tile, native dtype (VMEM)
    w_ref:   (3*2*K*K,)       flat conv taps [gateH | gateW | gateS], each gate
                              laid out as (in_ch=[max,mean], kh, kw) (SMEM)
    bn_ref:  (6,)             folded BN (scale, bias) per gate [H, W, S] (SMEM)
    o_ref:   (C, H, W)        output tile (VMEM)
    p*_ref:  small VMEM scratch holding the zero-padded 2-D pooled maps.
    """
    P = K // 2
    KK = K * K
    BASE_H, BASE_W, BASE_S = 0, 2 * KK, 4 * KK

    x = x_ref[...]                                               # (C, H, W) native dtype

    # ---- ChannelPool: dense 2-D pooled maps; only these are cast to f32 ----
    h_mx = jnp.max(x, axis=1).astype(jnp.float32)                # (C, W)  pool over H
    h_mn = jnp.sum(x, axis=1).astype(jnp.float32) * (1.0 / H)    # (C, W)
    w_mx = jnp.max(x, axis=2).astype(jnp.float32)                # (C, H)  pool over W
    w_mn = jnp.sum(x, axis=2).astype(jnp.float32) * (1.0 / W)    # (C, H)
    s_mx = jnp.max(x, axis=0).astype(jnp.float32)                # (H, W)  pool over C
    s_mn = jnp.sum(x, axis=0).astype(jnp.float32) * (1.0 / C)    # (H, W)

    # ---- zero-pad the tiny pooled maps into VMEM scratch ('same' conv halo) ----
    for ref in (ph_mx_ref, ph_mn_ref, pw_mx_ref, pw_mn_ref, ps_mx_ref, ps_mn_ref):
        ref[...] = jnp.zeros_like(ref)
    ph_mx_ref[P:P + C, P:P + W] = h_mx
    ph_mn_ref[P:P + C, P:P + W] = h_mn
    pw_mx_ref[P:P + C, P:P + H] = w_mx
    pw_mn_ref[P:P + C, P:P + H] = w_mn
    ps_mx_ref[P:P + H, P:P + W] = s_mx
    ps_mn_ref[P:P + H, P:P + W] = s_mn

    # ---- hoist lane-direction shifts out of the 49-tap loop ----
    # gate H / gate S: conv column (tap b) moves along the lane (W) axis;
    # gate W: conv row (tap a) moves along the lane (H) axis.
    ph_mx_s = [ph_mx_ref[:, b:b + W] for b in range(K)]          # (C+2P, W) each
    ph_mn_s = [ph_mn_ref[:, b:b + W] for b in range(K)]
    pw_mx_s = [pw_mx_ref[:, a:a + H] for a in range(K)]          # (C+2P, H) each
    pw_mn_s = [pw_mn_ref[:, a:a + H] for a in range(K)]
    ps_mx_s = [ps_mx_ref[:, b:b + W] for b in range(K)]          # (H+2P, W) each
    ps_mn_s = [ps_mn_ref[:, b:b + W] for b in range(K)]

    # ---- 7x7, 2->1 channel convs: unrolled scalar-tap FMAs on the VPU ----
    # (2 in / 1 out channel -> MXU is useless here; taps live in SMEM.)
    acc_h = jnp.zeros((C, W), jnp.float32)
    acc_w = jnp.zeros((C, H), jnp.float32)
    acc_s = jnp.zeros((H, W), jnp.float32)
    for a in range(K):
        for b in range(K):
            t = a * K + b
            # ChannelGateH: out[c,w] += w[i,a,b] * pooledH_i[c+a-3, w+b-3]
            acc_h = acc_h + (w_ref[BASE_H + t] * ph_mx_s[b][a:a + C, :]
                             + w_ref[BASE_H + KK + t] * ph_mn_s[b][a:a + C, :])
            # ChannelGateW (perm (N,W,H,C)): out[c,h] += w[i,a,b] * pooledW_i[c+b-3, h+a-3]
            acc_w = acc_w + (w_ref[BASE_W + t] * pw_mx_s[a][b:b + C, :]
                             + w_ref[BASE_W + KK + t] * pw_mn_s[a][b:b + C, :])
            # SpatialGate: out[h,w] += w[i,a,b] * pooledS_i[h+a-3, w+b-3]
            acc_s = acc_s + (w_ref[BASE_S + t] * ps_mx_s[b][a:a + H, :]
                             + w_ref[BASE_S + KK + t] * ps_mn_s[b][a:a + H, :])

    # ---- folded BatchNorm (eval) + sigmoid gates ----
    g_h = jax.nn.sigmoid(acc_h * bn_ref[0] + bn_ref[1])          # (C, W)
    g_w = jax.nn.sigmoid(acc_w * bn_ref[2] + bn_ref[3])          # (C, H)
    g_s = jax.nn.sigmoid(acc_s * bn_ref[4] + bn_ref[5])          # (H, W)

    # 1/3*(x*gs + x*gh + x*gw) = x * (gh + gw + gs)/3; broadcast dims inserted once.
    gate = (g_h[:, None, :] + g_w[:, :, None] + g_s[None, :, :]) * (1.0 / 3.0)
    o_ref[...] = (x * gate.astype(x.dtype)).astype(o_ref.dtype)


def triplet_attention(x, w_h, bn_h, w_w, bn_w, w_s, bn_s, *, eps=1e-5):
    """TripletAttention forward (eval-mode BN).

    x:            (N, C, H, W)
    w_h/w_w/w_s:  (1, 2, 7, 7)  conv weights of ChannelGateH / ChannelGateW / SpatialGate
    bn_*:         (gamma, beta, running_mean, running_var), each shape (1,)
    returns       (N, C, H, W)
    """
    N, C, H, W = x.shape
    K = 7
    P = K // 2

    def fold(bn):
        gamma, beta, mean, var = bn
        s = gamma / jnp.sqrt(var + eps)
        t = beta - mean * s
        return s.reshape(()), t.reshape(())

    s_h, t_h = fold(bn_h)
    s_w, t_w = fold(bn_w)
    s_s, t_s = fold(bn_s)

    # Flat tap table [gateH | gateW | gateS], each gate as (in_ch, kh, kw) row-major.
    w_all = jnp.concatenate([
        w_h.astype(jnp.float32).reshape(-1),
        w_w.astype(jnp.float32).reshape(-1),
        w_s.astype(jnp.float32).reshape(-1),
    ])                                                           # (294,)
    bn_all = jnp.stack([s_h, t_h, s_w, t_w, s_s, t_s]).astype(jnp.float32)  # (6,)

    kernel = functools.partial(_triplet_attention_kernel, C=C, H=H, W=W, K=K)

    # VMEM budget: double-buffered in+out blocks + live copies inside the body.
    block_bytes = C * H * W * x.dtype.itemsize
    vmem_limit = int(min(64 * 1024 * 1024,
                         max(16 * 1024 * 1024, 12 * block_bytes + (2 << 20))))

    flops = N * (4 * K * K * (C * W + C * H + H * W) + 8 * C * H * W)
    transcendentals = N * (C * W + C * H + H * W)
    bytes_accessed = 2 * N * block_bytes + 4 * int(w_all.size + bn_all.size)

    out = pl.pallas_call(
        kernel,
        out_shape=jax.ShapeDtypeStruct((N, C, H, W), x.dtype),
        grid_spec=pltpu.PrefetchScalarGridSpec(
            num_scalar_prefetch=0,
            # TODO(synk): for N==1 on v7x, add a second parallel grid axis
            # (e.g. C-tiles for the scale pass) so both TensorCores are fed.
            grid=(N,),
            in_specs=[
                pl.BlockSpec((None, C, H, W), lambda n: (n, 0, 0, 0)),
                pl.BlockSpec(memory_space=pltpu.MemorySpace.SMEM),   # conv taps
                pl.BlockSpec(memory_space=pltpu.MemorySpace.SMEM),   # folded BN
            ],
            out_specs=pl.BlockSpec((None, C, H, W), lambda n: (n, 0, 0, 0)),
            scratch_shapes=[
                pltpu.VMEM((C + 2 * P, W + 2 * P), jnp.float32),     # gateH max
                pltpu.VMEM((C + 2 * P, W + 2 * P), jnp.float32),     # gateH mean
                pltpu.VMEM((C + 2 * P, H + 2 * P), jnp.float32),     # gateW max
                pltpu.VMEM((C + 2 * P, H + 2 * P), jnp.float32),     # gateW mean
                pltpu.VMEM((H + 2 * P, W + 2 * P), jnp.float32),     # gateS max
                pltpu.VMEM((H + 2 * P, W + 2 * P), jnp.float32),     # gateS mean
            ],
        ),
        compiler_params=pltpu.CompilerParams(
            dimension_semantics=("parallel",),    # batch across TCs on v7x
            vmem_limit_bytes=vmem_limit,
        ),
        cost_estimate=pl.CostEstimate(flops=flops,
                                      transcendentals=transcendentals,
                                      bytes_accessed=bytes_accessed),
    )(x, w_all, bn_all)
    return out


# ---------------------------- pure-JAX reference ----------------------------

def _spatial_gate_ref(x, w, gamma, beta, mean, var, eps=1e-5):
    mx = jnp.max(x, axis=1, keepdims=True)
    mn = jnp.mean(x, axis=1, keepdims=True)
    p = jnp.concatenate([mx, mn], axis=1)                        # (N, 2, A, B)
    y = jax.lax.conv_general_dilated(
        p.astype(jnp.float32), w.astype(jnp.float32),
        window_strides=(1, 1), padding=((3, 3), (3, 3)),
        dimension_numbers=("NCHW", "OIHW", "NCHW"))
    s = gamma / jnp.sqrt(var + eps)
    t = beta - mean * s
    y = y * s[None, :, None, None] + t[None, :, None, None]
    return x * jax.nn.sigmoid(y)


def _triplet_attention_ref(x, params_h, params_w, params_s):
    xp1 = jnp.transpose(x, (0, 2, 1, 3))
    o11 = jnp.transpose(_spatial_gate_ref(xp1, *params_h), (0, 2, 1, 3))
    xp2 = jnp.transpose(x, (0, 3, 2, 1))
    o21 = jnp.transpose(_spatial_gate_ref(xp2, *params_w), (0, 3, 2, 1))
    o3 = _spatial_gate_ref(x, *params_s)
    return (o3 + o11 + o21) * (1.0 / 3.0)


if __name__ == "__main__":
    key = jax.random.PRNGKey(0)
    keys = jax.random.split(key, 16)

    N, C, H, W = 2, 4, 16, 16
    x = jax.random.normal(keys[0], (N, C, H, W), dtype=jnp.float32)

    def make_gate_params(k1, k2, k3, k4, k5):
        w = jax.random.normal(k1, (1, 2, 7, 7), dtype=jnp.float32) * 0.1
        gamma = 1.0 + 0.1 * jax.random.normal(k2, (1,), dtype=jnp.float32)
        beta = 0.1 * jax.random.normal(k3, (1,), dtype=jnp.float32)
        mean = 0.1 * jax.random.normal(k4, (1,), dtype=jnp.float32)
        var = jnp.abs(jax.random.normal(k5, (1,), dtype=jnp.float32)) + 0.5
        return w, (gamma, beta, mean, var)

    w_h, bn_h = make_gate_params(*keys[1:6])    # ChannelGateH
    w_w, bn_w = make_gate_params(*keys[6:11])   # ChannelGateW
    w_s, bn_s = make_gate_params(*keys[11:16])  # SpatialGate

    out = triplet_attention(x, w_h, bn_h, w_w, bn_w, w_s, bn_s)
    out = jax.block_until_ready(out)

    ref = _triplet_attention_ref(x, (w_h, *bn_h), (w_w, *bn_w), (w_s, *bn_s))
    assert out.shape == (N, C, H, W), out.shape
    max_err = float(jnp.max(jnp.abs(out - ref)))
    assert jnp.allclose(out, ref, atol=2e-4, rtol=2e-4), max_err

    print("KERNEL_OK")
</pallas_src>

<mosaic_0001>
module attributes {stable_mosaic.version = 11 : i64} {
  func.func @_triplet_attention_kernel(%arg0: i32, %arg1: memref<1x4x16x16xf32, #tpu.memory_space<vmem>>, %arg2: memref<294xf32, #tpu.memory_space<smem>>, %arg3: memref<6xf32, #tpu.memory_space<smem>>, %arg4: memref<1x4x16x16xf32, #tpu.memory_space<vmem>>, %arg5: memref<10x22xf32, #tpu.memory_space<vmem>>, %arg6: memref<10x22xf32, #tpu.memory_space<vmem>>, %arg7: memref<10x22xf32, #tpu.memory_space<vmem>>, %arg8: memref<10x22xf32, #tpu.memory_space<vmem>>, %arg9: memref<22x22xf32, #tpu.memory_space<vmem>>, %arg10: memref<22x22xf32, #tpu.memory_space<vmem>>) attributes {dimension_semantics = [#tpu.dimension_semantics<parallel>], iteration_bounds = array<i64: 2>, scalar_prefetch = 0 : i64, scratch_operands = 6 : i64, tpu.core_type = #tpu.core_type<tc>, window_params = [{transform_indices = @transform_0, window_bounds = array<i64: 1, 4, 16, 16>}, {transform_indices = @transform_1, window_bounds = array<i64: 294>}, {transform_indices = @transform_2, window_bounds = array<i64: 6>}, {transform_indices = @transform_3, window_bounds = array<i64: 1, 4, 16, 16>}]} {
    %c0 = arith.constant 0 : index
    %c0_0 = arith.constant 0 : index
    %c0_1 = arith.constant 0 : index
    %c0_2 = arith.constant 0 : index
    %0 = vector.load %arg1[%c0, %c0_0, %c0_1, %c0_2] : memref<1x4x16x16xf32, #tpu.memory_space<vmem>>, vector<1x4x16x16xf32>
    %1 = vector.shape_cast %0 : vector<1x4x16x16xf32> to vector<4x16x16xf32>
    %cst = arith.constant dense<0xFF800000> : vector<4x16xf32>
    %2 = vector.multi_reduction <maximumf>, %1, %cst [1] : vector<4x16x16xf32> to vector<4x16xf32>
    %cst_3 = arith.constant dense<0.000000e+00> : vector<4x16xf32>
    %3 = vector.multi_reduction <add>, %1, %cst_3 [1] : vector<4x16x16xf32> to vector<4x16xf32>
    %cst_4 = arith.constant 6.250000e-02 : f32
    %4 = vector.broadcast %cst_4 : f32 to vector<4x16xf32>
    %5 = arith.mulf %3, %4 : vector<4x16xf32>
    %cst_5 = arith.constant dense<0xFF800000> : vector<4x16xf32>
    %6 = vector.multi_reduction <maximumf>, %1, %cst_5 [2] : vector<4x16x16xf32> to vector<4x16xf32>
    %cst_6 = arith.constant dense<0.000000e+00> : vector<4x16xf32>
    %7 = vector.multi_reduction <add>, %1, %cst_6 [2] : vector<4x16x16xf32> to vector<4x16xf32>
    %cst_7 = arith.constant 6.250000e-02 : f32
    %8 = vector.broadcast %cst_7 : f32 to vector<4x16xf32>
    %9 = arith.mulf %7, %8 : vector<4x16xf32>
    %cst_8 = arith.constant dense<0xFF800000> : vector<16x16xf32>
    %10 = vector.multi_reduction <maximumf>, %1, %cst_8 [0] : vector<4x16x16xf32> to vector<16x16xf32>
    %cst_9 = arith.constant dense<0.000000e+00> : vector<16x16xf32>
    %11 = vector.multi_reduction <add>, %1, %cst_9 [0] : vector<4x16x16xf32> to vector<16x16xf32>
    %cst_10 = arith.constant 2.500000e-01 : f32
    %12 = vector.broadcast %cst_10 : f32 to vector<16x16xf32>
    %13 = arith.mulf %11, %12 : vector<16x16xf32>
    %cst_11 = arith.constant 0.000000e+00 : f32
    %14 = vector.broadcast %cst_11 : f32 to vector<10x22xf32>
    %c0_12 = arith.constant 0 : index
    %c0_13 = arith.constant 0 : index
    %15 = vector.load %arg5[%c0_12, %c0_13] : memref<10x22xf32, #tpu.memory_space<vmem>>, vector<10x22xf32>
    tpu.vector_store %arg5[%c0_12, %c0_13], %14 {strides = array<i32>} : memref<10x22xf32, #tpu.memory_space<vmem>>, vector<10x22xf32>,
    %cst_14 = arith.constant 0.000000e+00 : f32
    %16 = vector.broadcast %cst_14 : f32 to vector<10x22xf32>
    %c0_15 = arith.constant 0 : index
    %c0_16 = arith.constant 0 : index
    %17 = vector.load %arg6[%c0_15, %c0_16] : memref<10x22xf32, #tpu.memory_space<vmem>>, vector<10x22xf32>
    tpu.vector_store %arg6[%c0_15, %c0_16], %16 {strides = array<i32>} : memref<10x22xf32, #tpu.memory_space<vmem>>, vector<10x22xf32>,
    %cst_17 = arith.constant 0.000000e+00 : f32
    %18 = vector.broadcast %cst_17 : f32 to vector<10x22xf32>
    %c0_18 = arith.constant 0 : index
    %c0_19 = arith.constant 0 : index
    %19 = vector.load %arg7[%c0_18, %c0_19] : memref<10x22xf32, #tpu.memory_space<vmem>>, vector<10x22xf32>
    tpu.vector_store %arg7[%c0_18, %c0_19], %18 {strides = array<i32>} : memref<10x22xf32, #tpu.memory_space<vmem>>, vector<10x22xf32>,
    %cst_20 = arith.constant 0.000000e+00 : f32
    %20 = vector.broadcast %cst_20 : f32 to vector<10x22xf32>
    %c0_21 = arith.constant 0 : index
    %c0_22 = arith.constant 0 : index
    %21 = vector.load %arg8[%c0_21, %c0_22] : memref<10x22xf32, #tpu.memory_space<vmem>>, vector<10x22xf32>
    tpu.vector_store %arg8[%c0_21, %c0_22], %20 {strides = array<i32>} : memref<10x22xf32, #tpu.memory_space<vmem>>, vector<10x22xf32>,
    %cst_23 = arith.constant 0.000000e+00 : f32
    %22 = vector.broadcast %cst_23 : f32 to vector<22x22xf32>
    %c0_24 = arith.constant 0 : index
    %c0_25 = arith.constant 0 : index
    %23 = vector.load %arg9[%c0_24, %c0_25] : memref<22x22xf32, #tpu.memory_space<vmem>>, vector<22x22xf32>
    tpu.vector_store %arg9[%c0_24, %c0_25], %22 {strides = array<i32>} : memref<22x22xf32, #tpu.memory_space<vmem>>, vector<22x22xf32>,
    %cst_26 = arith.constant 0.000000e+00 : f32
    %24 = vector.broadcast %cst_26 : f32 to vector<22x22xf32>
    %c0_27 = arith.constant 0 : index
    %c0_28 = arith.constant 0 : index
    %25 = vector.load %arg10[%c0_27, %c0_28] : memref<22x22xf32, #tpu.memory_space<vmem>>, vector<22x22xf32>
    tpu.vector_store %arg10[%c0_27, %c0_28], %24 {strides = array<i32>} : memref<22x22xf32, #tpu.memory_space<vmem>>, vector<22x22xf32>,
    %c3 = arith.constant 3 : index
    %c3_29 = arith.constant 3 : index
    %26 = vector.load %arg5[%c3, %c3_29] : memref<10x22xf32, #tpu.memory_space<vmem>>, vector<4x16xf32>
    tpu.vector_store %arg5[%c3, %c3_29], %2 {strides = array<i32>} : memref<10x22xf32, #tpu.memory_space<vmem>>, vector<4x16xf32>,
    %c3_30 = arith.constant 3 : index
    %c3_31 = arith.constant 3 : index
    %27 = vector.load %arg6[%c3_30, %c3_31] : memref<10x22xf32, #tpu.memory_space<vmem>>, vector<4x16xf32>
    tpu.vector_store %arg6[%c3_30, %c3_31], %5 {strides = array<i32>} : memref<10x22xf32, #tpu.memory_space<vmem>>, vector<4x16xf32>,
    %c3_32 = arith.constant 3 : index
    %c3_33 = arith.constant 3 : index
    %28 = vector.load %arg7[%c3_32, %c3_33] : memref<10x22xf32, #tpu.memory_space<vmem>>, vector<4x16xf32>
    tpu.vector_store %arg7[%c3_32, %c3_33], %6 {strides = array<i32>} : memref<10x22xf32, #tpu.memory_space<vmem>>, vector<4x16xf32>,
    %c3_34 = arith.constant 3 : index
    %c3_35 = arith.constant 3 : index
    %29 = vector.load %arg8[%c3_34, %c3_35] : memref<10x22xf32, #tpu.memory_space<vmem>>, vector<4x16xf32>
    tpu.vector_store %arg8[%c3_34, %c3_35], %9 {strides = array<i32>} : memref<10x22xf32, #tpu.memory_space<vmem>>, vector<4x16xf32>,
    %c3_36 = arith.constant 3 : index
    %c3_37 = arith.constant 3 : index
    %30 = vector.load %arg9[%c3_36, %c3_37] : memref<22x22xf32, #tpu.memory_space<vmem>>, vector<16x16xf32>
    tpu.vector_store %arg9[%c3_36, %c3_37], %10 {strides = array<i32>} : memref<22x22xf32, #tpu.memory_space<vmem>>, vector<16x16xf32>,
    %c3_38 = arith.constant 3 : index
    %c3_39 = arith.constant 3 : index
    %31 = vector.load %arg10[%c3_38, %c3_39] : memref<22x22xf32, #tpu.memory_space<vmem>>, vector<16x16xf32>
    tpu.vector_store %arg10[%c3_38, %c3_39], %13 {strides = array<i32>} : memref<22x22xf32, #tpu.memory_space<vmem>>, vector<16x16xf32>,
    %c0_40 = arith.constant 0 : index
    %c0_41 = arith.constant 0 : index
    %32 = vector.load %arg5[%c0_40, %c0_41] : memref<10x22xf32, #tpu.memory_space<vmem>>, vector<10x16xf32>
    %c0_42 = arith.constant 0 : index
    %c1 = arith.constant 1 : index
    %33 = vector.load %arg5[%c0_42, %c1] : memref<10x22xf32, #tpu.memory_space<vmem>>, vector<10x16xf32>
    %c0_43 = arith.constant 0 : index
    %c2 = arith.constant 2 : index
    %34 = vector.load %arg5[%c0_43, %c2] : memref<10x22xf32, #tpu.memory_space<vmem>>, vector<10x16xf32>
    %c0_44 = arith.constant 0 : index
    %c3_45 = arith.constant 3 : index
    %35 = vector.load %arg5[%c0_44, %c3_45] : memref<10x22xf32, #tpu.memory_space<vmem>>, vector<10x16xf32>
    %c0_46 = arith.constant 0 : index
    %c4 = arith.constant 4 : index
    %36 = vector.load %arg5[%c0_46, %c4] : memref<10x22xf32, #tpu.memory_space<vmem>>, vector<10x16xf32>
    %c0_47 = arith.constant 0 : index
    %c5 = arith.constant 5 : index
    %37 = vector.load %arg5[%c0_47, %c5] : memref<10x22xf32, #tpu.memory_space<vmem>>, vector<10x16xf32>
    %c0_48 = arith.constant 0 : index
    %c6 = arith.constant 6 : index
    %38 = vector.load %arg5[%c0_48, %c6] : memref<10x22xf32, #tpu.memory_space<vmem>>, vector<10x16xf32>
    %c0_49 = arith.constant 0 : index
    %c0_50 = arith.constant 0 : index
    %39 = vector.load %arg6[%c0_49, %c0_50] : memref<10x22xf32, #tpu.memory_space<vmem>>, vector<10x16xf32>
    %c0_51 = arith.constant 0 : index
    %c1_52 = arith.constant 1 : index
    %40 = vector.load %arg6[%c0_51, %c1_52] : memref<10x22xf32, #tpu.memory_space<vmem>>, vector<10x16xf32>
    %c0_53 = arith.constant 0 : index
    %c2_54 = arith.constant 2 : index
    %41 = vector.load %arg6[%c0_53, %c2_54] : memref<10x22xf32, #tpu.memory_space<vmem>>, vector<10x16xf32>
    %c0_55 = arith.constant 0 : index
    %c3_56 = arith.constant 3 : index
    %42 = vector.load %arg6[%c0_55, %c3_56] : memref<10x22xf32, #tpu.memory_space<vmem>>, vector<10x16xf32>
    %c0_57 = arith.constant 0 : index
    %c4_58 = arith.constant 4 : index
    %43 = vector.load %arg6[%c0_57, %c4_58] : memref<10x22xf32, #tpu.memory_space<vmem>>, vector<10x16xf32>
    %c0_59 = arith.constant 0 : index
    %c5_60 = arith.constant 5 : index
    %44 = vector.load %arg6[%c0_59, %c5_60] : memref<10x22xf32, #tpu.memory_space<vmem>>, vector<10x16xf32>
    %c0_61 = arith.constant 0 : index
    %c6_62 = arith.constant 6 : index
    %45 = vector.load %arg6[%c0_61, %c6_62] : memref<10x22xf32, #tpu.memory_space<vmem>>, vector<10x16xf32>
    %c0_63 = arith.constant 0 : index
    %c0_64 = arith.constant 0 : index
    %46 = vector.load %arg7[%c0_63, %c0_64] : memref<10x22xf32, #tpu.memory_space<vmem>>, vector<10x16xf32>
    %c0_65 = arith.constant 0 : index
    %c1_66 = arith.constant 1 : index
    %47 = vector.load %arg7[%c0_65, %c1_66] : memref<10x22xf32, #tpu.memory_space<vmem>>, vector<10x16xf32>
    %c0_67 = arith.constant 0 : index
    %c2_68 = arith.constant 2 : index
    %48 = vector.load %arg7[%c0_67, %c2_68] : memref<10x22xf32, #tpu.memory_space<vmem>>, vector<10x16xf32>
    %c0_69 = arith.constant 0 : index
    %c3_70 = arith.constant 3 : index
    %49 = vector.load %arg7[%c0_69, %c3_70] : memref<10x22xf32, #tpu.memory_space<vmem>>, vector<10x16xf32>
    %c0_71 = arith.constant 0 : index
    %c4_72 = arith.constant 4 : index
    %50 = vector.load %arg7[%c0_71, %c4_72] : memref<10x22xf32, #tpu.memory_space<vmem>>, vector<10x16xf32>
    %c0_73 = arith.constant 0 : index
    %c5_74 = arith.constant 5 : index
    %51 = vector.load %arg7[%c0_73, %c5_74] : memref<10x22xf32, #tpu.memory_space<vmem>>, vector<10x16xf32>
    %c0_75 = arith.constant 0 : index
    %c6_76 = arith.constant 6 : index
    %52 = vector.load %arg7[%c0_75, %c6_76] : memref<10x22xf32, #tpu.memory_space<vmem>>, vector<10x16xf32>
    %c0_77 = arith.constant 0 : index
    %c0_78 = arith.constant 0 : index
    %53 = vector.load %arg8[%c0_77, %c0_78] : memref<10x22xf32, #tpu.memory_space<vmem>>, vector<10x16xf32>
    %c0_79 = arith.constant 0 : index
    %c1_80 = arith.constant 1 : index
    %54 = vector.load %arg8[%c0_79, %c1_80] : memref<10x22xf32, #tpu.memory_space<vmem>>, vector<10x16xf32>
    %c0_81 = arith.constant 0 : index
    %c2_82 = arith.constant 2 : index
    %55 = vector.load %arg8[%c0_81, %c2_82] : memref<10x22xf32, #tpu.memory_space<vmem>>, vector<10x16xf32>
    %c0_83 = arith.constant 0 : index
    %c3_84 = arith.constant 3 : index
    %56 = vector.load %arg8[%c0_83, %c3_84] : memref<10x22xf32, #tpu.memory_space<vmem>>, vector<10x16xf32>
    %c0_85 = arith.constant 0 : index
    %c4_86 = arith.constant 4 : index
    %57 = vector.load %arg8[%c0_85, %c4_86] : memref<10x22xf32, #tpu.memory_space<vmem>>, vector<10x16xf32>
    %c0_87 = arith.constant 0 : index
    %c5_88 = arith.constant 5 : index
    %58 = vector.load %arg8[%c0_87, %c5_88] : memref<10x22xf32, #tpu.memory_space<vmem>>, vector<10x16xf32>
    %c0_89 = arith.constant 0 : index
    %c6_90 = arith.constant 6 : index
    %59 = vector.load %arg8[%c0_89, %c6_90] : memref<10x22xf32, #tpu.memory_space<vmem>>, vector<10x16xf32>
    %c0_91 = arith.constant 0 : index
    %c0_92 = arith.constant 0 : index
    %60 = vector.load %arg9[%c0_91, %c0_92] : memref<22x22xf32, #tpu.memory_space<vmem>>, vector<22x16xf32>
    %c0_93 = arith.constant 0 : index
    %c1_94 = arith.constant 1 : index
    %61 = vector.load %arg9[%c0_93, %c1_94] : memref<22x22xf32, #tpu.memory_space<vmem>>, vector<22x16xf32>
    %c0_95 = arith.constant 0 : index
    %c2_96 = arith.constant 2 : index
    %62 = vector.load %arg9[%c0_95, %c2_96] : memref<22x22xf32, #tpu.memory_space<vmem>>, vector<22x16xf32>
    %c0_97 = arith.constant 0 : index
    %c3_98 = arith.constant 3 : index
    %63 = vector.load %arg9[%c0_97, %c3_98] : memref<22x22xf32, #tpu.memory_space<vmem>>, vector<22x16xf32>
    %c0_99 = arith.constant 0 : index
    %c4_100 = arith.constant 4 : index
    %64 = vector.load %arg9[%c0_99, %c4_100] : memref<22x22xf32, #tpu.memory_space<vmem>>, vector<22x16xf32>
    %c0_101 = arith.constant 0 : index
    %c5_102 = arith.constant 5 : index
    %65 = vector.load %arg9[%c0_101, %c5_102] : memref<22x22xf32, #tpu.memory_space<vmem>>, vector<22x16xf32>
    %c0_103 = arith.constant 0 : index
    %c6_104 = arith.constant 6 : index
    %66 = vector.load %arg9[%c0_103, %c6_104] : memref<22x22xf32, #tpu.memory_space<vmem>>, vector<22x16xf32>
    %c0_105 = arith.constant 0 : index
    %c0_106 = arith.constant 0 : index
    %67 = vector.load %arg10[%c0_105, %c0_106] : memref<22x22xf32, #tpu.memory_space<vmem>>, vector<22x16xf32>
    %c0_107 = arith.constant 0 : index
    %c1_108 = arith.constant 1 : index
    %68 = vector.load %arg10[%c0_107, %c1_108] : memref<22x22xf32, #tpu.memory_space<vmem>>, vector<22x16xf32>
    %c0_109 = arith.constant 0 : index
    %c2_110 = arith.constant 2 : index
    %69 = vector.load %arg10[%c0_109, %c2_110] : memref<22x22xf32, #tpu.memory_space<vmem>>, vector<22x16xf32>
    %c0_111 = arith.constant 0 : index
    %c3_112 = arith.constant 3 : index
    %70 = vector.load %arg10[%c0_111, %c3_112] : memref<22x22xf32, #tpu.memory_space<vmem>>, vector<22x16xf32>
    %c0_113 = arith.constant 0 : index
    %c4_114 = arith.constant 4 : index
    %71 = vector.load %arg10[%c0_113, %c4_114] : memref<22x22xf32, #tpu.memory_space<vmem>>, vector<22x16xf32>
    %c0_115 = arith.constant 0 : index
    %c5_116 = arith.constant 5 : index
    %72 = vector.load %arg10[%c0_115, %c5_116] : memref<22x22xf32, #tpu.memory_space<vmem>>, vector<22x16xf32>
    %c0_117 = arith.constant 0 : index
    %c6_118 = arith.constant 6 : index
    %73 = vector.load %arg10[%c0_117, %c6_118] : memref<22x22xf32, #tpu.memory_space<vmem>>, vector<22x16xf32>
    %cst_119 = arith.constant 0.000000e+00 : f32
    %74 = vector.broadcast %cst_119 : f32 to vector<4x16xf32>
    %cst_120 = arith.constant 0.000000e+00 : f32
    %75 = vector.broadcast %cst_120 : f32 to vector<4x16xf32>
    %cst_121 = arith.constant 0.000000e+00 : f32
    %76 = vector.broadcast %cst_121 : f32 to vector<16x16xf32>
    %c0_122 = arith.constant 0 : index
    %77 = memref.load %arg2[%c0_122] : memref<294xf32, #tpu.memory_space<smem>>
    %78 = vector.extract_strided_slice %32 {offsets = [0, 0], sizes = [4, 16], strides = [1, 1]} : vector<10x16xf32> to vector<4x16xf32>
    %79 = vector.broadcast %77 : f32 to vector<4x16xf32>
    %80 = arith.mulf %79, %78 : vector<4x16xf32>
    %c49 = arith.constant 49 : index
    %81 = memref.load %arg2[%c49] : memref<294xf32, #tpu.memory_space<smem>>
    %82 = vector.extract_strided_slice %39 {offsets = [0, 0], sizes = [4, 16], strides = [1, 1]} : vector<10x16xf32> to vector<4x16xf32>
    %83 = vector.broadcast %81 : f32 to vector<4x16xf32>
    %84 = arith.mulf %83, %82 : vector<4x16xf32>
    %85 = arith.addf %80, %84 : vector<4x16xf32>
    %86 = arith.addf %74, %85 : vector<4x16xf32>
    %c98 = arith.constant 98 : index
    %87 = memref.load %arg2[%c98] : memref<294xf32, #tpu.memory_space<smem>>
    %88 = vector.extract_strided_slice %46 {offsets = [0, 0], sizes = [4, 16], strides = [1, 1]} : vector<10x16xf32> to vector<4x16xf32>
    %89 = vector.broadcast %87 : f32 to vector<4x16xf32>
    %90 = arith.mulf %89, %88 : vector<4x16xf32>
    %c147 = arith.constant 147 : index
    %91 = memref.load %arg2[%c147] : memref<294xf32, #tpu.memory_space<smem>>
    %92 = vector.extract_strided_slice %53 {offsets = [0, 0], sizes = [4, 16], strides = [1, 1]} : vector<10x16xf32> to vector<4x16xf32>
    %93 = vector.broadcast %91 : f32 to vector<4x16xf32>
    %94 = arith.mulf %93, %92 : vector<4x16xf32>
    %95 = arith.addf %90, %94 : vector<4x16xf32>
    %96 = arith.addf %75, %95 : vector<4x16xf32>
    %c196 = arith.constant 196 : index
    %97 = memref.load %arg2[%c196] : memref<294xf32, #tpu.memory_space<smem>>
    %98 = vector.extract_strided_slice %60 {offsets = [0, 0], sizes = [16, 16], strides = [1, 1]} : vector<22x16xf32> to vector<16x16xf32>
    %99 = vector.broadcast %97 : f32 to vector<16x16xf32>
    %100 = arith.mulf %99, %98 : vector<16x16xf32>
    %c245 = arith.constant 245 : index
    %101 = memref.load %arg2[%c245] : memref<294xf32, #tpu.memory_space<smem>>
    %102 = vector.extract_strided_slice %67 {offsets = [0, 0], sizes = [16, 16], strides = [1, 1]} : vector<22x16xf32> to vector<16x16xf32>
    %103 = vector.broadcast %101 : f32 to vector<16x16xf32>
    %104 = arith.mulf %103, %102 : vector<16x16xf32>
    %105 = arith.addf %100, %104 : vector<16x16xf32>
    %106 = arith.addf %76, %105 : vector<16x16xf32>
    %c1_123 = arith.constant 1 : index
    %107 = memref.load %arg2[%c1_123] : memref<294xf32, #tpu.memory_space<smem>>
    %108 = vector.extract_strided_slice %33 {offsets = [0, 0], sizes = [4, 16], strides = [1, 1]} : vector<10x16xf32> to vector<4x16xf32>
    %109 = vector.broadcast %107 : f32 to vector<4x16xf32>
    %110 = arith.mulf %109, %108 : vector<4x16xf32>
    %c50 = arith.constant 50 : index
    %111 = memref.load %arg2[%c50] : memref<294xf32, #tpu.memory_space<smem>>
    %112 = vector.extract_strided_slice %40 {offsets = [0, 0], sizes = [4, 16], strides = [1, 1]} : vector<10x16xf32> to vector<4x16xf32>
    %113 = vector.broadcast %111 : f32 to vector<4x16xf32>
    %114 = arith.mulf %113, %112 : vector<4x16xf32>
    %115 = arith.addf %110, %114 : vector<4x16xf32>
    %116 = arith.addf %86, %115 : vector<4x16xf32>
    %c99 = arith.constant 99 : index
    %117 = memref.load %arg2[%c99] : memref<294xf32, #tpu.memory_space<smem>>
    %118 = vector.extract_strided_slice %46 {offsets = [1, 0], sizes = [4, 16], strides = [1, 1]} : vector<10x16xf32> to vector<4x16xf32>
    %119 = vector.broadcast %117 : f32 to vector<4x16xf32>
    %120 = arith.mulf %119, %118 : vector<4x16xf32>
    %c148 = arith.constant 148 : index
    %121 = memref.load %arg2[%c148] : memref<294xf32, #tpu.memory_space<smem>>
    %122 = vector.extract_strided_slice %53 {offsets = [1, 0], sizes = [4, 16], strides = [1, 1]} : vector<10x16xf32> to vector<4x16xf32>
    %123 = vector.broadcast %121 : f32 to vector<4x16xf32>
    %124 = arith.mulf %123, %122 : vector<4x16xf32>
    %125 = arith.addf %120, %124 : vector<4x16xf32>
    %126 = arith.addf %96, %125 : vector<4x16xf32>
    %c197 = arith.constant 197 : index
    %127 = memref.load %arg2[%c197] : memref<294xf32, #tpu.memory_space<smem>>
    %128 = vector.extract_strided_slice %61 {offsets = [0, 0], sizes = [16, 16], strides = [1, 1]} : vector<22x16xf32> to vector<16x16xf32>
    %129 = vector.broadcast %127 : f32 to vector<16x16xf32>
    %130 = arith.mulf %129, %128 : vector<16x16xf32>
    %c246 = arith.constant 246 : index
    %131 = memref.load %arg2[%c246] : memref<294xf32, #tpu.memory_space<smem>>
    %132 = vector.extract_strided_slice %68 {offsets = [0, 0], sizes = [16, 16], strides = [1, 1]} : vector<22x16xf32> to vector<16x16xf32>
    %133 = vector.broadcast %131 : f32 to vector<16x16xf32>
    %134 = arith.mulf %133, %132 : vector<16x16xf32>
    %135 = arith.addf %130, %134 : vector<16x16xf32>
    %136 = arith.addf %106, %135 : vector<16x16xf32>
    %c2_124 = arith.constant 2 : index
    %137 = memref.load %arg2[%c2_124] : memref<294xf32, #tpu.memory_space<smem>>
    %138 = vector.extract_strided_slice %34 {offsets = [0, 0], sizes = [4, 16], strides = [1, 1]} : vector<10x16xf32> to vector<4x16xf32>
    %139 = vector.broadcast %137 : f32 to vector<4x16xf32>
    %140 = arith.mulf %139, %138 : vector<4x16xf32>
    %c51 = arith.constant 51 : index
    %141 = memref.load %arg2[%c51] : memref<294xf32, #tpu.memory_space<smem>>
    %142 = vector.extract_strided_slice %41 {offsets = [0, 0], sizes = [4, 16], strides = [1, 1]} : vector<10x16xf32> to vector<4x16xf32>
    %143 = vector.broadcast %141 : f32 to vector<4x16xf32>
    %144 = arith.mulf %143, %142 : vector<4x16xf32>
    %145 = arith.addf %140, %144 : vector<4x16xf32>
    %146 = arith.addf %116, %145 : vector<4x16xf32>
    %c100 = arith.constant 100 : index
    %147 = memref.load %arg2[%c100] : memref<294xf32, #tpu.memory_space<smem>>
    %148 = vector.extract_strided_slice %46 {offsets = [2, 0], sizes = [4, 16], strides = [1, 1]} : vector<10x16xf32> to vector<4x16xf32>
    %149 = vector.broadcast %147 : f32 to vector<4x16xf32>
    %150 = arith.mulf %149, %148 : vector<4x16xf32>
    %c149 = arith.constant 149 : index
    %151 = memref.load %arg2[%c149] : memref<294xf32, #tpu.memory_space<smem>>
    %152 = vector.extract_strided_slice %53 {offsets = [2, 0], sizes = [4, 16], strides = [1, 1]} : vector<10x16xf32> to vector<4x16xf32>
    %153 = vector.broadcast %151 : f32 to vector<4x16xf32>
    %154 = arith.mulf %153, %152 : vector<4x16xf32>
    %155 = arith.addf %150, %154 : vector<4x16xf32>
    %156 = arith.addf %126, %155 : vector<4x16xf32>
    %c198 = arith.constant 198 : index
    %157 = memref.load %arg2[%c198] : memref<294xf32, #tpu.memory_space<smem>>
    %158 = vector.extract_strided_slice %62 {offsets = [0, 0], sizes = [16, 16], strides = [1, 1]} : vector<22x16xf32> to vector<16x16xf32>
    %159 = vector.broadcast %157 : f32 to vector<16x16xf32>
    %160 = arith.mulf %159, %158 : vector<16x16xf32>
    %c247 = arith.constant 247 : index
    %161 = memref.load %arg2[%c247] : memref<294xf32, #tpu.memory_space<smem>>
    %162 = vector.extract_strided_slice %69 {offsets = [0, 0], sizes = [16, 16], strides = [1, 1]} : vector<22x16xf32> to vector<16x16xf32>
    %163 = vector.broadcast %161 : f32 to vector<16x16xf32>
    %164 = arith.mulf %163, %162 : vector<16x16xf32>
    %165 = arith.addf %160, %164 : vector<16x16xf32>
    %166 = arith.addf %136, %165 : vector<16x16xf32>
    %c3_125 = arith.constant 3 : index
    %167 = memref.load %arg2[%c3_125] : memref<294xf32, #tpu.memory_space<smem>>
    %168 = vector.extract_strided_slice %35 {offsets = [0, 0], sizes = [4, 16], strides = [1, 1]} : vector<10x16xf32> to vector<4x16xf32>
    %169 = vector.broadcast %167 : f32 to vector<4x16xf32>
    %170 = arith.mulf %169, %168 : vector<4x16xf32>
    %c52 = arith.constant 52 : index
    %171 = memref.load %arg2[%c52] : memref<294xf32, #tpu.memory_space<smem>>
    %172 = vector.extract_strided_slice %42 {offsets = [0, 0], sizes = [4, 16], strides = [1, 1]} : vector<10x16xf32> to vector<4x16xf32>
    %173 = vector.broadcast %171 : f32 to vector<4x16xf32>
    %174 = arith.mulf %173, %172 : vector<4x16xf32>
    %175 = arith.addf %170, %174 : vector<4x16xf32>
    %176 = arith.addf %146, %175 : vector<4x16xf32>
    %c101 = arith.constant 101 : index
    %177 = memref.load %arg2[%c101] : memref<294xf32, #tpu.memory_space<smem>>
    %178 = vector.extract_strided_slice %46 {offsets = [3, 0], sizes = [4, 16], strides = [1, 1]} : vector<10x16xf32> to vector<4x16xf32>
    %179 = vector.broadcast %177 : f32 to vector<4x16xf32>
    %180 = arith.mulf %179, %178 : vector<4x16xf32>
    %c150 = arith.constant 150 : index
    %181 = memref.load %arg2[%c150] : memref<294xf32, #tpu.memory_space<smem>>
    %182 = vector.extract_strided_slice %53 {offsets = [3, 0], sizes = [4, 16], strides = [1, 1]} : vector<10x16xf32> to vector<4x16xf32>
    %183 = vector.broadcast %181 : f32 to vector<4x16xf32>
    %184 = arith.mulf %183, %182 : vector<4x16xf32>
    %185 = arith.addf %180, %184 : vector<4x16xf32>
    %186 = arith.addf %156, %185 : vector<4x16xf32>
    %c199 = arith.constant 199 : index
    %187 = memref.load %arg2[%c199] : memref<294xf32, #tpu.memory_space<smem>>
    %188 = vector.extract_strided_slice %63 {offsets = [0, 0], sizes = [16, 16], strides = [1, 1]} : vector<22x16xf32> to vector<16x16xf32>
    %189 = vector.broadcast %187 : f32 to vector<16x16xf32>
    %190 = arith.mulf %189, %188 : vector<16x16xf32>
    %c248 = arith.constant 248 : index
    %191 = memref.load %arg2[%c248] : memref<294xf32, #tpu.memory_space<smem>>
    %192 = vector.extract_strided_slice %70 {offsets = [0, 0], sizes = [16, 16], strides = [1, 1]} : vector<22x16xf32> to vector<16x16xf32>
    %193 = vector.broadcast %191 : f32 to vector<16x16xf32>
    %194 = arith.mulf %193, %192 : vector<16x16xf32>
    %195 = arith.addf %190, %194 : vector<16x16xf32>
    %196 = arith.addf %166, %195 : vector<16x16xf32>
    %c4_126 = arith.constant 4 : index
    %197 = memref.load %arg2[%c4_126] : memref<294xf32, #tpu.memory_space<smem>>
    %198 = vector.extract_strided_slice %36 {offsets = [0, 0], sizes = [4, 16], strides = [1, 1]} : vector<10x16xf32> to vector<4x16xf32>
    %199 = vector.broadcast %197 : f32 to vector<4x16xf32>
    %200 = arith.mulf %199, %198 : vector<4x16xf32>
    %c53 = arith.constant 53 : index
    %201 = memref.load %arg2[%c53] : memref<294xf32, #tpu.memory_space<smem>>
    %202 = vector.extract_strided_slice %43 {offsets = [0, 0], sizes = [4, 16], strides = [1, 1]} : vector<10x16xf32> to vector<4x16xf32>
    %203 = vector.broadcast %201 : f32 to vector<4x16xf32>
    %204 = arith.mulf %203, %202 : vector<4x16xf32>
    %205 = arith.addf %200, %204 : vector<4x16xf32>
    %206 = arith.addf %176, %205 : vector<4x16xf32>
    %c102 = arith.constant 102 : index
    %207 = memref.load %arg2[%c102] : memref<294xf32, #tpu.memory_space<smem>>
    %208 = vector.extract_strided_slice %46 {offsets = [4, 0], sizes = [4, 16], strides = [1, 1]} : vector<10x16xf32> to vector<4x16xf32>
    %209 = vector.broadcast %207 : f32 to vector<4x16xf32>
    %210 = arith.mulf %209, %208 : vector<4x16xf32>
    %c151 = arith.constant 151 : index
    %211 = memref.load %arg2[%c151] : memref<294xf32, #tpu.memory_space<smem>>
    %212 = vector.extract_strided_slice %53 {offsets = [4, 0], sizes = [4, 16], strides = [1, 1]} : vector<10x16xf32> to vector<4x16xf32>
    %213 = vector.broadcast %211 : f32 to vector<4x16xf32>
    %214 = arith.mulf %213, %212 : vector<4x16xf32>
    %215 = arith.addf %210, %214 : vector<4x16xf32>
    %216 = arith.addf %186, %215 : vector<4x16xf32>
    %c200 = arith.constant 200 : index
    %217 = memref.load %arg2[%c200] : memref<294xf32, #tpu.memory_space<smem>>
    %218 = vector.extract_strided_slice %64 {offsets = [0, 0], sizes = [16, 16], strides = [1, 1]} : vector<22x16xf32> to vector<16x16xf32>
    %219 = vector.broadcast %217 : f32 to vector<16x16xf32>
    %220 = arith.mulf %219, %218 : vector<16x16xf32>
    %c249 = arith.constant 249 : index
    %221 = memref.load %arg2[%c249] : memref<294xf32, #tpu.memory_space<smem>>
    %222 = vector.extract_strided_slice %71 {offsets = [0, 0], sizes = [16, 16], strides = [1, 1]} : vector<22x16xf32> to vector<16x16xf32>
    %223 = vector.broadcast %221 : f32 to vector<16x16xf32>
    %224 = arith.mulf %223, %222 : vector<16x16xf32>
    %225 = arith.addf %220, %224 : vector<16x16xf32>
    %226 = arith.addf %196, %225 : vector<16x16xf32>
    %c5_127 = arith.constant 5 : index
    %227 = memref.load %arg2[%c5_127] : memref<294xf32, #tpu.memory_space<smem>>
    %228 = vector.extract_strided_slice %37 {offsets = [0, 0], sizes = [4, 16], strides = [1, 1]} : vector<10x16xf32> to vector<4x16xf32>
    %229 = vector.broadcast %227 : f32 to vector<4x16xf32>
    %230 = arith.mulf %229, %228 : vector<4x16xf32>
    %c54 = arith.constant 54 : index
    %231 = memref.load %arg2[%c54] : memref<294xf32, #tpu.memory_space<smem>>
    %232 = vector.extract_strided_slice %44 {offsets = [0, 0], sizes = [4, 16], strides = [1, 1]} : vector<10x16xf32> to vector<4x16xf32>
    %233 = vector.broadcast %231 : f32 to vector<4x16xf32>
    %234 = arith.mulf %233, %232 : vector<4x16xf32>
    %235 = arith.addf %230, %234 : vector<4x16xf32>
    %236 = arith.addf %206, %235 : vector<4x16xf32>
    %c103 = arith.constant 103 : index
    %237 = memref.load %arg2[%c103] : memref<294xf32, #tpu.memory_space<smem>>
    %238 = vector.extract_strided_slice %46 {offsets = [5, 0], sizes = [4, 16], strides = [1, 1]} : vector<10x16xf32> to vector<4x16xf32>
    %239 = vector.broadcast %237 : f32 to vector<4x16xf32>
    %240 = arith.mulf %239, %238 : vector<4x16xf32>
    %c152 = arith.constant 152 : index
    %241 = memref.load %arg2[%c152] : memref<294xf32, #tpu.memory_space<smem>>
    %242 = vector.extract_strided_slice %53 {offsets = [5, 0], sizes = [4, 16], strides = [1, 1]} : vector<10x16xf32> to vector<4x16xf32>
    %243 = vector.broadcast %241 : f32 to vector<4x16xf32>
    %244 = arith.mulf %243, %242 : vector<4x16xf32>
    %245 = arith.addf %240, %244 : vector<4x16xf32>
    %246 = arith.addf %216, %245 : vector<4x16xf32>
    %c201 = arith.constant 201 : index
    %247 = memref.load %arg2[%c201] : memref<294xf32, #tpu.memory_space<smem>>
    %248 = vector.extract_strided_slice %65 {offsets = [0, 0], sizes = [16, 16], strides = [1, 1]} : vector<22x16xf32> to vector<16x16xf32>
    %249 = vector.broadcast %247 : f32 to vector<16x16xf32>
    %250 = arith.mulf %249, %248 : vector<16x16xf32>
    %c250 = arith.constant 250 : index
    %251 = memref.load %arg2[%c250] : memref<294xf32, #tpu.memory_space<smem>>
    %252 = vector.extract_strided_slice %72 {offsets = [0, 0], sizes = [16, 16], strides = [1, 1]} : vector<22x16xf32> to vector<16x16xf32>
    %253 = vector.broadcast %251 : f32 to vector<16x16xf32>
    %254 = arith.mulf %253, %252 : vector<16x16xf32>
    %255 = arith.addf %250, %254 : vector<16x16xf32>
    %256 = arith.addf %226, %255 : vector<16x16xf32>
    %c6_128 = arith.constant 6 : index
    %257 = memref.load %arg2[%c6_128] : memref<294xf32, #tpu.memory_space<smem>>
    %258 = vector.extract_strided_slice %38 {offsets = [0, 0], sizes = [4, 16], strides = [1, 1]} : vector<10x16xf32> to vector<4x16xf32>
    %259 = vector.broadcast %257 : f32 to vector<4x16xf32>
    %260 = arith.mulf %259, %258 : vector<4x16xf32>
    %c55 = arith.constant 55 : index
    %261 = memref.load %arg2[%c55] : memref<294xf32, #tpu.memory_space<smem>>
    %262 = vector.extract_strided_slice %45 {offsets = [0, 0], sizes = [4, 16], strides = [1, 1]} : vector<10x16xf32> to vector<4x16xf32>
    %263 = vector.broadcast %261 : f32 to vector<4x16xf32>
    %264 = arith.mulf %263, %262 : vector<4x16xf32>
    %265 = arith.addf %260, %264 : vector<4x16xf32>
    %266 = arith.addf %236, %265 : vector<4x16xf32>
    %c104 = arith.constant 104 : index
    %267 = memref.load %arg2[%c104] : memref<294xf32, #tpu.memory_space<smem>>
    %268 = vector.extract_strided_slice %46 {offsets = [6, 0], sizes = [4, 16], strides = [1, 1]} : vector<10x16xf32> to vector<4x16xf32>
    %269 = vector.broadcast %267 : f32 to vector<4x16xf32>
    %270 = arith.mulf %269, %268 : vector<4x16xf32>
    %c153 = arith.constant 153 : index
    %271 = memref.load %arg2[%c153] : memref<294xf32, #tpu.memory_space<smem>>
    %272 = vector.extract_strided_slice %53 {offsets = [6, 0], sizes = [4, 16], strides = [1, 1]} : vector<10x16xf32> to vector<4x16xf32>
    %273 = vector.broadcast %271 : f32 to vector<4x16xf32>
    %274 = arith.mulf %273, %272 : vector<4x16xf32>
    %275 = arith.addf %270, %274 : vector<4x16xf32>
    %276 = arith.addf %246, %275 : vector<4x16xf32>
    %c202 = arith.constant 202 : index
    %277 = memref.load %arg2[%c202] : memref<294xf32, #tpu.memory_space<smem>>
    %278 = vector.extract_strided_slice %66 {offsets = [0, 0], sizes = [16, 16], strides = [1, 1]} : vector<22x16xf32> to vector<16x16xf32>
    %279 = vector.broadcast %277 : f32 to vector<16x16xf32>
    %280 = arith.mulf %279, %278 : vector<16x16xf32>
    %c251 = arith.constant 251 : index
    %281 = memref.load %arg2[%c251] : memref<294xf32, #tpu.memory_space<smem>>
    %282 = vector.extract_strided_slice %73 {offsets = [0, 0], sizes = [16, 16], strides = [1, 1]} : vector<22x16xf32> to vector<16x16xf32>
    %283 = vector.broadcast %281 : f32 to vector<16x16xf32>
    %284 = arith.mulf %283, %282 : vector<16x16xf32>
    %285 = arith.addf %280, %284 : vector<16x16xf32>
    %286 = arith.addf %256, %285 : vector<16x16xf32>
    %c7 = arith.constant 7 : index
    %287 = memref.load %arg2[%c7] : memref<294xf32, #tpu.memory_space<smem>>
    %288 = vector.extract_strided_slice %32 {offsets = [1, 0], sizes = [4, 16], strides = [1, 1]} : vector<10x16xf32> to vector<4x16xf32>
    %289 = vector.broadcast %287 : f32 to vector<4x16xf32>
    %290 = arith.mulf %289, %288 : vector<4x16xf32>
    %c56 = arith.constant 56 : index
    %291 = memref.load %arg2[%c56] : memref<294xf32, #tpu.memory_space<smem>>
    %292 = vector.extract_strided_slice %39 {offsets = [1, 0], sizes = [4, 16], strides = [1, 1]} : vector<10x16xf32> to vector<4x16xf32>
    %293 = vector.broadcast %291 : f32 to vector<4x16xf32>
    %294 = arith.mulf %293, %292 : vector<4x16xf32>
    %295 = arith.addf %290, %294 : vector<4x16xf32>
    %296 = arith.addf %266, %295 : vector<4x16xf32>
    %c105 = arith.constant 105 : index
    %297 = memref.load %arg2[%c105] : memref<294xf32, #tpu.memory_space<smem>>
    %298 = vector.extract_strided_slice %47 {offsets = [0, 0], sizes = [4, 16], strides = [1, 1]} : vector<10x16xf32> to vector<4x16xf32>
    %299 = vector.broadcast %297 : f32 to vector<4x16xf32>
    %300 = arith.mulf %299, %298 : vector<4x16xf32>
    %c154 = arith.constant 154 : index
    %301 = memref.load %arg2[%c154] : memref<294xf32, #tpu.memory_space<smem>>
    %302 = vector.extract_strided_slice %54 {offsets = [0, 0], sizes = [4, 16], strides = [1, 1]} : vector<10x16xf32> to vector<4x16xf32>
    %303 = vector.broadcast %301 : f32 to vector<4x16xf32>
    %304 = arith.mulf %303, %302 : vector<4x16xf32>
    %305 = arith.addf %300, %304 : vector<4x16xf32>
    %306 = arith.addf %276, %305 : vector<4x16xf32>
    %c203 = arith.constant 203 : index
    %307 = memref.load %arg2[%c203] : memref<294xf32, #tpu.memory_space<smem>>
    %308 = vector.extract_strided_slice %60 {offsets = [1, 0], sizes = [16, 16], strides = [1, 1]} : vector<22x16xf32> to vector<16x16xf32>
    %309 = vector.broadcast %307 : f32 to vector<16x16xf32>
    %310 = arith.mulf %309, %308 : vector<16x16xf32>
    %c252 = arith.constant 252 : index
    %311 = memref.load %arg2[%c252] : memref<294xf32, #tpu.memory_space<smem>>
    %312 = vector.extract_strided_slice %67 {offsets = [1, 0], sizes = [16, 16], strides = [1, 1]} : vector<22x16xf32> to vector<16x16xf32>
    %313 = vector.broadcast %311 : f32 to vector<16x16xf32>
    %314 = arith.mulf %313, %312 : vector<16x16xf32>
    %315 = arith.addf %310, %314 : vector<16x16xf32>
    %316 = arith.addf %286, %315 : vector<16x16xf32>
    %c8 = arith.constant 8 : index
    %317 = memref.load %arg2[%c8] : memref<294xf32, #tpu.memory_space<smem>>
    %318 = vector.extract_strided_slice %33 {offsets = [1, 0], sizes = [4, 16], strides = [1, 1]} : vector<10x16xf32> to vector<4x16xf32>
    %319 = vector.broadcast %317 : f32 to vector<4x16xf32>
    %320 = arith.mulf %319, %318 : vector<4x16xf32>
    %c57 = arith.constant 57 : index
    %321 = memref.load %arg2[%c57] : memref<294xf32, #tpu.memory_space<smem>>
    %322 = vector.extract_strided_slice %40 {offsets = [1, 0], sizes = [4, 16], strides = [1, 1]} : vector<10x16xf32> to vector<4x16xf32>
    %323 = vector.broadcast %321 : f32 to vector<4x16xf32>
    %324 = arith.mulf %323, %322 : vector<4x16xf32>
    %325 = arith.addf %320, %324 : vector<4x16xf32>
    %326 = arith.addf %296, %325 : vector<4x16xf32>
    %c106 = arith.constant 106 : index
    %327 = memref.load %arg2[%c106] : memref<294xf32, #tpu.memory_space<smem>>
    %328 = vector.extract_strided_slice %47 {offsets = [1, 0], sizes = [4, 16], strides = [1, 1]} : vector<10x16xf32> to vector<4x16xf32>
    %329 = vector.broadcast %327 : f32 to vector<4x16xf32>
    %330 = arith.mulf %329, %328 : vector<4x16xf32>
    %c155 = arith.constant 155 : index
    %331 = memref.load %arg2[%c155] : memref<294xf32, #tpu.memory_space<smem>>
    %332 = vector.extract_strided_slice %54 {offsets = [1, 0], sizes = [4, 16], strides = [1, 1]} : vector<10x16xf32> to vector<4x16xf32>
    %333 = vector.broadcast %331 : f32 to vector<4x16xf32>
    %334 = arith.mulf %333, %332 : vector<4x16xf32>
    %335 = arith.addf %330, %334 : vector<4x16xf32>
    %336 = arith.addf %306, %335 : vector<4x16xf32>
    %c204 = arith.constant 204 : index
    %337 = memref.load %arg2[%c204] : memref<294xf32, #tpu.memory_space<smem>>
    %338 = vector.extract_strided_slice %61 {offsets = [1, 0], sizes = [16, 16], strides = [1, 1]} : vector<22x16xf32> to vector<16x16xf32>
    %339 = vector.broadcast %337 : f32 to vector<16x16xf32>
    %340 = arith.mulf %339, %338 : vector<16x16xf32>
    %c253 = arith.constant 253 : index
    %341 = memref.load %arg2[%c253] : memref<294xf32, #tpu.memory_space<smem>>
    %342 = vector.extract_strided_slice %68 {offsets = [1, 0], sizes = [16, 16], strides = [1, 1]} : vector<22x16xf32> to vector<16x16xf32>
    %343 = vector.broadcast %341 : f32 to vector<16x16xf32>
    %344 = arith.mulf %343, %342 : vector<16x16xf32>
    %345 = arith.addf %340, %344 : vector<16x16xf32>
    %346 = arith.addf %316, %345 : vector<16x16xf32>
    %c9 = arith.constant 9 : index
    %347 = memref.load %arg2[%c9] : memref<294xf32, #tpu.memory_space<smem>>
    %348 = vector.extract_strided_slice %34 {offsets = [1, 0], sizes = [4, 16], strides = [1, 1]} : vector<10x16xf32> to vector<4x16xf32>
    %349 = vector.broadcast %347 : f32 to vector<4x16xf32>
    %350 = arith.mulf %349, %348 : vector<4x16xf32>
    %c58 = arith.constant 58 : index
    %351 = memref.load %arg2[%c58] : memref<294xf32, #tpu.memory_space<smem>>
    %352 = vector.extract_strided_slice %41 {offsets = [1, 0], sizes = [4, 16], strides = [1, 1]} : vector<10x16xf32> to vector<4x16xf32>
    %353 = vector.broadcast %351 : f32 to vector<4x16xf32>
    %354 = arith.mulf %353, %352 : vector<4x16xf32>
    %355 = arith.addf %350, %354 : vector<4x16xf32>
    %356 = arith.addf %326, %355 : vector<4x16xf32>
    %c107 = arith.constant 107 : index
    %357 = memref.load %arg2[%c107] : memref<294xf32, #tpu.memory_space<smem>>
    %358 = vector.extract_strided_slice %47 {offsets = [2, 0], sizes = [4, 16], strides = [1, 1]} : vector<10x16xf32> to vector<4x16xf32>
    %359 = vector.broadcast %357 : f32 to vector<4x16xf32>
    %360 = arith.mulf %359, %358 : vector<4x16xf32>
    %c156 = arith.constant 156 : index
    %361 = memref.load %arg2[%c156] : memref<294xf32, #tpu.memory_space<smem>>
    %362 = vector.extract_strided_slice %54 {offsets = [2, 0], sizes = [4, 16], strides = [1, 1]} : vector<10x16xf32> to vector<4x16xf32>
    %363 = vector.broadcast %361 : f32 to vector<4x16xf32>
    %364 = arith.mulf %363, %362 : vector<4x16xf32>
    %365 = arith.addf %360, %364 : vector<4x16xf32>
    %366 = arith.addf %336, %365 : vector<4x16xf32>
    %c205 = arith.constant 205 : index
    %367 = memref.load %arg2[%c205] : memref<294xf32, #tpu.memory_space<smem>>
    %368 = vector.extract_strided_slice %62 {offsets = [1, 0], sizes = [16, 16], strides = [1, 1]} : vector<22x16xf32> to vector<16x16xf32>
    %369 = vector.broadcast %367 : f32 to vector<16x16xf32>
    %370 = arith.mulf %369, %368 : vector<16x16xf32>
    %c254 = arith.constant 254 : index
    %371 = memref.load %arg2[%c254] : memref<294xf32, #tpu.memory_space<smem>>
    %372 = vector.extract_strided_slice %69 {offsets = [1, 0], sizes = [16, 16], strides = [1, 1]} : vector<22x16xf32> to vector<16x16xf32>
    %373 = vector.broadcast %371 : f32 to vector<16x16xf32>
    %374 = arith.mulf %373, %372 : vector<16x16xf32>
    %375 = arith.addf %370, %374 : vector<16x16xf32>
    %376 = arith.addf %346, %375 : vector<16x16xf32>
    %c10 = arith.constant 10 : index
    %377 = memref.load %arg2[%c10] : memref<294xf32, #tpu.memory_space<smem>>
    %378 = vector.extract_strided_slice %35 {offsets = [1, 0], sizes = [4, 16], strides = [1, 1]} : vector<10x16xf32> to vector<4x16xf32>
    %379 = vector.broadcast %377 : f32 to vector<4x16xf32>
    %380 = arith.mulf %379, %378 : vector<4x16xf32>
    %c59 = arith.constant 59 : index
    %381 = memref.load %arg2[%c59] : memref<294xf32, #tpu.memory_space<smem>>
    %382 = vector.extract_strided_slice %42 {offsets = [1, 0], sizes = [4, 16], strides = [1, 1]} : vector<10x16xf32> to vector<4x16xf32>
    %383 = vector.broadcast %381 : f32 to vector<4x16xf32>
    %384 = arith.mulf %383, %382 : vector<4x16xf32>
    %385 = arith.addf %380, %384 : vector<4x16xf32>
    %386 = arith.addf %356, %385 : vector<4x16xf32>
    %c108 = arith.constant 108 : index
    %387 = memref.load %arg2[%c108] : memref<294xf32, #tpu.memory_space<smem>>
    %388 = vector.extract_strided_slice %47 {offsets = [3, 0], sizes = [4, 16], strides = [1, 1]} : vector<10x16xf32> to vector<4x16xf32>
    %389 = vector.broadcast %387 : f32 to vector<4x16xf32>
    %390 = arith.mulf %389, %388 : vector<4x16xf32>
    %c157 = arith.constant 157 : index
    %391 = memref.load %arg2[%c157] : memref<294xf32, #tpu.memory_space<smem>>
    %392 = vector.extract_strided_slice %54 {offsets = [3, 0], sizes = [4, 16], strides = [1, 1]} : vector<10x16xf32> to vector<4x16xf32>
    %393 = vector.broadcast %391 : f32 to vector<4x16xf32>
    %394 = arith.mulf %393, %392 : vector<4x16xf32>
    %395 = arith.addf %390, %394 : vector<4x16xf32>
    %396 = arith.addf %366, %395 : vector<4x16xf32>
    %c206 = arith.constant 206 : index
    %397 = memref.load %arg2[%c206] : memref<294xf32, #tpu.memory_space<smem>>
    %398 = vector.extract_strided_slice %63 {offsets = [1, 0], sizes = [16, 16], strides = [1, 1]} : vector<22x16xf32> to vector<16x16xf32>
    %399 = vector.broadcast %397 : f32 to vector<16x16xf32>
    %400 = arith.mulf %399, %398 : vector<16x16xf32>
    %c255 = arith.constant 255 : index
    %401 = memref.load %arg2[%c255] : memref<294xf32, #tpu.memory_space<smem>>
    %402 = vector.extract_strided_slice %70 {offsets = [1, 0], sizes = [16, 16], strides = [1, 1]} : vector<22x16xf32> to vector<16x16xf32>
    %403 = vector.broadcast %401 : f32 to vector<16x16xf32>
    %404 = arith.mulf %403, %402 : vector<16x16xf32>
    %405 = arith.addf %400, %404 : vector<16x16xf32>
    %406 = arith.addf %376, %405 : vector<16x16xf32>
    %c11 = arith.constant 11 : index
    %407 = memref.load %arg2[%c11] : memref<294xf32, #tpu.memory_space<smem>>
    %408 = vector.extract_strided_slice %36 {offsets = [1, 0], sizes = [4, 16], strides = [1, 1]} : vector<10x16xf32> to vector<4x16xf32>
    %409 = vector.broadcast %407 : f32 to vector<4x16xf32>
    %410 = arith.mulf %409, %408 : vector<4x16xf32>
    %c60 = arith.constant 60 : index
    %411 = memref.load %arg2[%c60] : memref<294xf32, #tpu.memory_space<smem>>
    %412 = vector.extract_strided_slice %43 {offsets = [1, 0], sizes = [4, 16], strides = [1, 1]} : vector<10x16xf32> to vector<4x16xf32>
    %413 = vector.broadcast %411 : f32 to vector<4x16xf32>
    %414 = arith.mulf %413, %412 : vector<4x16xf32>
    %415 = arith.addf %410, %414 : vector<4x16xf32>
    %416 = arith.addf %386, %415 : vector<4x16xf32>
    %c109 = arith.constant 109 : index
    %417 = memref.load %arg2[%c109] : memref<294xf32, #tpu.memory_space<smem>>
    %418 = vector.extract_strided_slice %47 {offsets = [4, 0], sizes = [4, 16], strides = [1, 1]} : vector<10x16xf32> to vector<4x16xf32>
    %419 = vector.broadcast %417 : f32 to vector<4x16xf32>
    %420 = arith.mulf %419, %418 : vector<4x16xf32>
    %c158 = arith.constant 158 : index
    %421 = memref.load %arg2[%c158] : memref<294xf32, #tpu.memory_space<smem>>
    %422 = vector.extract_strided_slice %54 {offsets = [4, 0], sizes = [4, 16], strides = [1, 1]} : vector<10x16xf32> to vector<4x16xf32>
    %423 = vector.broadcast %421 : f32 to vector<4x16xf32>
    %424 = arith.mulf %423, %422 : vector<4x16xf32>
    %425 = arith.addf %420, %424 : vector<4x16xf32>
    %426 = arith.addf %396, %425 : vector<4x16xf32>
    %c207 = arith.constant 207 : index
    %427 = memref.load %arg2[%c207] : memref<294xf32, #tpu.memory_space<smem>>
    %428 = vector.extract_strided_slice %64 {offsets = [1, 0], sizes = [16, 16], strides = [1, 1]} : vector<22x16xf32> to vector<16x16xf32>
    %429 = vector.broadcast %427 : f32 to vector<16x16xf32>
    %430 = arith.mulf %429, %428 : vector<16x16xf32>
    %c256 = arith.constant 256 : index
    %431 = memref.load %arg2[%c256] : memref<294xf32, #tpu.memory_space<smem>>
    %432 = vector.extract_strided_slice %71 {offsets = [1, 0], sizes = [16, 16], strides = [1, 1]} : vector<22x16xf32> to vector<16x16xf32>
    %433 = vector.broadcast %431 : f32 to vector<16x16xf32>
    %434 = arith.mulf %433, %432 : vector<16x16xf32>
    %435 = arith.addf %430, %434 : vector<16x16xf32>
    %436 = arith.addf %406, %435 : vector<16x16xf32>
    %c12 = arith.constant 12 : index
    %437 = memref.load %arg2[%c12] : memref<294xf32, #tpu.memory_space<smem>>
    %438 = vector.extract_strided_slice %37 {offsets = [1, 0], sizes = [4, 16], strides = [1, 1]} : vector<10x16xf32> to vector<4x16xf32>
    %439 = vector.broadcast %437 : f32 to vector<4x16xf32>
    %440 = arith.mulf %439, %438 : vector<4x16xf32>
    %c61 = arith.constant 61 : index
    %441 = memref.load %arg2[%c61] : memref<294xf32, #tpu.memory_space<smem>>
    %442 = vector.extract_strided_slice %44 {offsets = [1, 0], sizes = [4, 16], strides = [1, 1]} : vector<10x16xf32> to vector<4x16xf32>
    %443 = vector.broadcast %441 : f32 to vector<4x16xf32>
    %444 = arith.mulf %443, %442 : vector<4x16xf32>
    %445 = arith.addf %440, %444 : vector<4x16xf32>
    %446 = arith.addf %416, %445 : vector<4x16xf32>
    %c110 = arith.constant 110 : index
    %447 = memref.load %arg2[%c110] : memref<294xf32, #tpu.memory_space<smem>>
    %448 = vector.extract_strided_slice %47 {offsets = [5, 0], sizes = [4, 16], strides = [1, 1]} : vector<10x16xf32> to vector<4x16xf32>
    %449 = vector.broadcast %447 : f32 to vector<4x16xf32>
    %450 = arith.mulf %449, %448 : vector<4x16xf32>
    %c159 = arith.constant 159 : index
    %451 = memref.load %arg2[%c159] : memref<294xf32, #tpu.memory_space<smem>>
    %452 = vector.extract_strided_slice %54 {offsets = [5, 0], sizes = [4, 16], strides = [1, 1]} : vector<10x16xf32> to vector<4x16xf32>
    %453 = vector.broadcast %451 : f32 to vector<4x16xf32>
    %454 = arith.mulf %453, %452 : vector<4x16xf32>
    %455 = arith.addf %450, %454 : vector<4x16xf32>
    %456 = arith.addf %426, %455 : vector<4x16xf32>
    %c208 = arith.constant 208 : index
    %457 = memref.load %arg2[%c208] : memref<294xf32, #tpu.memory_space<smem>>
    %458 = vector.extract_strided_slice %65 {offsets = [1, 0], sizes = [16, 16], strides = [1, 1]} : vector<22x16xf32> to vector<16x16xf32>
    %459 = vector.broadcast %457 : f32 to vector<16x16xf32>
    %460 = arith.mulf %459, %458 : vector<16x16xf32>
    %c257 = arith.constant 257 : index
    %461 = memref.load %arg2[%c257] : memref<294xf32, #tpu.memory_space<smem>>
    %462 = vector.extract_strided_slice %72 {offsets = [1, 0], sizes = [16, 16], strides = [1, 1]} : vector<22x16xf32> to vector<16x16xf32>
    %463 = vector.broadcast %461 : f32 to vector<16x16xf32>
    %464 = arith.mulf %463, %462 : vector<16x16xf32>
    %465 = arith.addf %460, %464 : vector<16x16xf32>
    %466 = arith.addf %436, %465 : vector<16x16xf32>
    %c13 = arith.constant 13 : index
    %467 = memref.load %arg2[%c13] : memref<294xf32, #tpu.memory_space<smem>>
    %468 = vector.extract_strided_slice %38 {offsets = [1, 0], sizes = [4, 16], strides = [1, 1]} : vector<10x16xf32> to vector<4x16xf32>
    %469 = vector.broadcast %467 : f32 to vector<4x16xf32>
    %470 = arith.mulf %469, %468 : vector<4x16xf32>
    %c62 = arith.constant 62 : index
    %471 = memref.load %arg2[%c62] : memref<294xf32, #tpu.memory_space<smem>>
    %472 = vector.extract_strided_slice %45 {offsets = [1, 0], sizes = [4, 16], strides = [1, 1]} : vector<10x16xf32> to vector<4x16xf32>
    %473 = vector.broadcast %471 : f32 to vector<4x16xf32>
    %474 = arith.mulf %473, %472 : vector<4x16xf32>
    %475 = arith.addf %470, %474 : vector<4x16xf32>
    %476 = arith.addf %446, %475 : vector<4x16xf32>
    %c111 = arith.constant 111 : index
    %477 = memref.load %arg2[%c111] : memref<294xf32, #tpu.memory_space<smem>>
    %478 = vector.extract_strided_slice %47 {offsets = [6, 0], sizes = [4, 16], strides = [1, 1]} : vector<10x16xf32> to vector<4x16xf32>
    %479 = vector.broadcast %477 : f32 to vector<4x16xf32>
    %480 = arith.mulf %479, %478 : vector<4x16xf32>
    %c160 = arith.constant 160 : index
    %481 = memref.load %arg2[%c160] : memref<294xf32, #tpu.memory_space<smem>>
    %482 = vector.extract_strided_slice %54 {offsets = [6, 0], sizes = [4, 16], strides = [1, 1]} : vector<10x16xf32> to vector<4x16xf32>
    %483 = vector.broadcast %481 : f32 to vector<4x16xf32>
    %484 = arith.mulf %483, %482 : vector<4x16xf32>
    %485 = arith.addf %480, %484 : vector<4x16xf32>
    %486 = arith.addf %456, %485 : vector<4x16xf32>
    %c209 = arith.constant 209 : index
    %487 = memref.load %arg2[%c209] : memref<294xf32, #tpu.memory_space<smem>>
    %488 = vector.extract_strided_slice %66 {offsets = [1, 0], sizes = [16, 16], strides = [1, 1]} : vector<22x16xf32> to vector<16x16xf32>
    %489 = vector.broadcast %487 : f32 to vector<16x16xf32>
    %490 = arith.mulf %489, %488 : vector<16x16xf32>
    %c258 = arith.constant 258 : index
    %491 = memref.load %arg2[%c258] : memref<294xf32, #tpu.memory_space<smem>>
    %492 = vector.extract_strided_slice %73 {offsets = [1, 0], sizes = [16, 16], strides = [1, 1]} : vector<22x16xf32> to vector<16x16xf32>
    %493 = vector.broadcast %491 : f32 to vector<16x16xf32>
    %494 = arith.mulf %493, %492 : vector<16x16xf32>
    %495 = arith.addf %490, %494 : vector<16x16xf32>
    %496 = arith.addf %466, %495 : vector<16x16xf32>
    %c14 = arith.constant 14 : index
    %497 = memref.load %arg2[%c14] : memref<294xf32, #tpu.memory_space<smem>>
    %498 = vector.extract_strided_slice %32 {offsets = [2, 0], sizes = [4, 16], strides = [1, 1]} : vector<10x16xf32> to vector<4x16xf32>
    %499 = vector.broadcast %497 : f32 to vector<4x16xf32>
    %500 = arith.mulf %499, %498 : vector<4x16xf32>
    %c63 = arith.constant 63 : index
    %501 = memref.load %arg2[%c63] : memref<294xf32, #tpu.memory_space<smem>>
    %502 = vector.extract_strided_slice %39 {offsets = [2, 0], sizes = [4, 16], strides = [1, 1]} : vector<10x16xf32> to vector<4x16xf32>
    %503 = vector.broadcast %501 : f32 to vector<4x16xf32>
    %504 = arith.mulf %503, %502 : vector<4x16xf32>
    %505 = arith.addf %500, %504 : vector<4x16xf32>
    %506 = arith.addf %476, %505 : vector<4x16xf32>
    %c112 = arith.constant 112 : index
    %507 = memref.load %arg2[%c112] : memref<294xf32, #tpu.memory_space<smem>>
    %508 = vector.extract_strided_slice %48 {offsets = [0, 0], sizes = [4, 16], strides = [1, 1]} : vector<10x16xf32> to vector<4x16xf32>
    %509 = vector.broadcast %507 : f32 to vector<4x16xf32>
    %510 = arith.mulf %509, %508 : vector<4x16xf32>
    %c161 = arith.constant 161 : index
    %511 = memref.load %arg2[%c161] : memref<294xf32, #tpu.memory_space<smem>>
    %512 = vector.extract_strided_slice %55 {offsets = [0, 0], sizes = [4, 16], strides = [1, 1]} : vector<10x16xf32> to vector<4x16xf32>
    %513 = vector.broadcast %511 : f32 to vector<4x16xf32>
    %514 = arith.mulf %513, %512 : vector<4x16xf32>
    %515 = arith.addf %510, %514 : vector<4x16xf32>
    %516 = arith.addf %486, %515 : vector<4x16xf32>
    %c210 = arith.constant 210 : index
    %517 = memref.load %arg2[%c210] : memref<294xf32, #tpu.memory_space<smem>>
    %518 = vector.extract_strided_slice %60 {offsets = [2, 0], sizes = [16, 16], strides = [1, 1]} : vector<22x16xf32> to vector<16x16xf32>
    %519 = vector.broadcast %517 : f32 to vector<16x16xf32>
    %520 = arith.mulf %519, %518 : vector<16x16xf32>
    %c259 = arith.constant 259 : index
    %521 = memref.load %arg2[%c259] : memref<294xf32, #tpu.memory_space<smem>>
    %522 = vector.extract_strided_slice %67 {offsets = [2, 0], sizes = [16, 16], strides = [1, 1]} : vector<22x16xf32> to vector<16x16xf32>
    %523 = vector.broadcast %521 : f32 to vector<16x16xf32>
    %524 = arith.mulf %523, %522 : vector<16x16xf32>
    %525 = arith.addf %520, %524 : vector<16x16xf32>
    %526 = arith.addf %496, %525 : vector<16x16xf32>
    %c15 = arith.constant 15 : index
    %527 = memref.load %arg2[%c15] : memref<294xf32, #tpu.memory_space<smem>>
    %528 = vector.extract_strided_slice %33 {offsets = [2, 0], sizes = [4, 16], strides = [1, 1]} : vector<10x16xf32> to vector<4x16xf32>
    %529 = vector.broadcast %527 : f32 to vector<4x16xf32>
    %530 = arith.mulf %529, %528 : vector<4x16xf32>
    %c64 = arith.constant 64 : index
    %531 = memref.load %arg2[%c64] : memref<294xf32, #tpu.memory_space<smem>>
    %532 = vector.extract_strided_slice %40 {offsets = [2, 0], sizes = [4, 16], strides = [1, 1]} : vector<10x16xf32> to vector<4x16xf32>
    %533 = vector.broadcast %531 : f32 to vector<4x16xf32>
    %534 = arith.mulf %533, %532 : vector<4x16xf32>
    %535 = arith.addf %530, %534 : vector<4x16xf32>
    %536 = arith.addf %506, %535 : vector<4x16xf32>
    %c113 = arith.constant 113 : index
    %537 = memref.load %arg2[%c113] : memref<294xf32, #tpu.memory_space<smem>>
    %538 = vector.extract_strided_slice %48 {offsets = [1, 0], sizes = [4, 16], strides = [1, 1]} : vector<10x16xf32> to vector<4x16xf32>
    %539 = vector.broadcast %537 : f32 to vector<4x16xf32>
    %540 = arith.mulf %539, %538 : vector<4x16xf32>
    %c162 = arith.constant 162 : index
    %541 = memref.load %arg2[%c162] : memref<294xf32, #tpu.memory_space<smem>>
    %542 = vector.extract_strided_slice %55 {offsets = [1, 0], sizes = [4, 16], strides = [1, 1]} : vector<10x16xf32> to vector<4x16xf32>
    %543 = vector.broadcast %541 : f32 to vector<4x16xf32>
    %544 = arith.mulf %543, %542 : vector<4x16xf32>
    %545 = arith.addf %540, %544 : vector<4x16xf32>
    %546 = arith.addf %516, %545 : vector<4x16xf32>
    %c211 = arith.constant 211 : index
    %547 = memref.load %arg2[%c211] : memref<294xf32, #tpu.memory_space<smem>>
    %548 = vector.extract_strided_slice %61 {offsets = [2, 0], sizes = [16, 16], strides = [1, 1]} : vector<22x16xf32> to vector<16x16xf32>
    %549 = vector.broadcast %547 : f32 to vector<16x16xf32>
    %550 = arith.mulf %549, %548 : vector<16x16xf32>
    %c260 = arith.constant 260 : index
    %551 = memref.load %arg2[%c260] : memref<294xf32, #tpu.memory_space<smem>>
    %552 = vector.extract_strided_slice %68 {offsets = [2, 0], sizes = [16, 16], strides = [1, 1]} : vector<22x16xf32> to vector<16x16xf32>
    %553 = vector.broadcast %551 : f32 to vector<16x16xf32>
    %554 = arith.mulf %553, %552 : vector<16x16xf32>
    %555 = arith.addf %550, %554 : vector<16x16xf32>
    %556 = arith.addf %526, %555 : vector<16x16xf32>
    %c16 = arith.constant 16 : index
    %557 = memref.load %arg2[%c16] : memref<294xf32, #tpu.memory_space<smem>>
    %558 = vector.extract_strided_slice %34 {offsets = [2, 0], sizes = [4, 16], strides = [1, 1]} : vector<10x16xf32> to vector<4x16xf32>
    %559 = vector.broadcast %557 : f32 to vector<4x16xf32>
    %560 = arith.mulf %559, %558 : vector<4x16xf32>
    %c65 = arith.constant 65 : index
    %561 = memref.load %arg2[%c65] : memref<294xf32, #tpu.memory_space<smem>>
    %562 = vector.extract_strided_slice %41 {offsets = [2, 0], sizes = [4, 16], strides = [1, 1]} : vector<10x16xf32> to vector<4x16xf32>
    %563 = vector.broadcast %561 : f32 to vector<4x16xf32>
    %564 = arith.mulf %563, %562 : vector<4x16xf32>
    %565 = arith.addf %560, %564 : vector<4x16xf32>
    %566 = arith.addf %536, %565 : vector<4x16xf32>
    %c114 = arith.constant 114 : index
    %567 = memref.load %arg2[%c114] : memref<294xf32, #tpu.memory_space<smem>>
    %568 = vector.extract_strided_slice %48 {offsets = [2, 0], sizes = [4, 16], strides = [1, 1]} : vector<10x16xf32> to vector<4x16xf32>
    %569 = vector.broadcast %567 : f32 to vector<4x16xf32>
    %570 = arith.mulf %569, %568 : vector<4x16xf32>
    %c163 = arith.constant 163 : index
    %571 = memref.load %arg2[%c163] : memref<294xf32, #tpu.memory_space<smem>>
    %572 = vector.extract_strided_slice %55 {offsets = [2, 0], sizes = [4, 16], strides = [1, 1]} : vector<10x16xf32> to vector<4x16xf32>
    %573 = vector.broadcast %571 : f32 to vector<4x16xf32>
    %574 = arith.mulf %573, %572 : vector<4x16xf32>
    %575 = arith.addf %570, %574 : vector<4x16xf32>
    %576 = arith.addf %546, %575 : vector<4x16xf32>
    %c212 = arith.constant 212 : index
    %577 = memref.load %arg2[%c212] : memref<294xf32, #tpu.memory_space<smem>>
    %578 = vector.extract_strided_slice %62 {offsets = [2, 0], sizes = [16, 16], strides = [1, 1]} : vector<22x16xf32> to vector<16x16xf32>
    %579 = vector.broadcast %577 : f32 to vector<16x16xf32>
    %580 = arith.mulf %579, %578 : vector<16x16xf32>
    %c261 = arith.constant 261 : index
    %581 = memref.load %arg2[%c261] : memref<294xf32, #tpu.memory_space<smem>>
    %582 = vector.extract_strided_slice %69 {offsets = [2, 0], sizes = [16, 16], strides = [1, 1]} : vector<22x16xf32> to vector<16x16xf32>
    %583 = vector.broadcast %581 : f32 to vector<16x16xf32>
    %584 = arith.mulf %583, %582 : vector<16x16xf32>
    %585 = arith.addf %580, %584 : vector<16x16xf32>
    %586 = arith.addf %556, %585 : vector<16x16xf32>
    %c17 = arith.constant 17 : index
    %587 = memref.load %arg2[%c17] : memref<294xf32, #tpu.memory_space<smem>>
    %588 = vector.extract_strided_slice %35 {offsets = [2, 0], sizes = [4, 16], strides = [1, 1]} : vector<10x16xf32> to vector<4x16xf32>
    %589 = vector.broadcast %587 : f32 to vector<4x16xf32>
    %590 = arith.mulf %589, %588 : vector<4x16xf32>
    %c66 = arith.constant 66 : index
    %591 = memref.load %arg2[%c66] : memref<294xf32, #tpu.memory_space<smem>>
    %592 = vector.extract_strided_slice %42 {offsets = [2, 0], sizes = [4, 16], strides = [1, 1]} : vector<10x16xf32> to vector<4x16xf32>
    %593 = vector.broadcast %591 : f32 to vector<4x16xf32>
    %594 = arith.mulf %593, %592 : vector<4x16xf32>
    %595 = arith.addf %590, %594 : vector<4x16xf32>
    %596 = arith.addf %566, %595 : vector<4x16xf32>
    %c115 = arith.constant 115 : index
    %597 = memref.load %arg2[%c115] : memref<294xf32, #tpu.memory_space<smem>>
    %598 = vector.extract_strided_slice %48 {offsets = [3, 0], sizes = [4, 16], strides = [1, 1]} : vector<10x16xf32> to vector<4x16xf32>
    %599 = vector.broadcast %597 : f32 to vector<4x16xf32>
    %600 = arith.mulf %599, %598 : vector<4x16xf32>
    %c164 = arith.constant 164 : index
    %601 = memref.load %arg2[%c164] : memref<294xf32, #tpu.memory_space<smem>>
    %602 = vector.extract_strided_slice %55 {offsets = [3, 0], sizes = [4, 16], strides = [1, 1]} : vector<10x16xf32> to vector<4x16xf32>
    %603 = vector.broadcast %601 : f32 to vector<4x16xf32>
    %604 = arith.mulf %603, %602 : vector<4x16xf32>
    %605 = arith.addf %600, %604 : vector<4x16xf32>
    %606 = arith.addf %576, %605 : vector<4x16xf32>
    %c213 = arith.constant 213 : index
    %607 = memref.load %arg2[%c213] : memref<294xf32, #tpu.memory_space<smem>>
    %608 = vector.extract_strided_slice %63 {offsets = [2, 0], sizes = [16, 16], strides = [1, 1]} : vector<22x16xf32> to vector<16x16xf32>
    %609 = vector.broadcast %607 : f32 to vector<16x16xf32>
    %610 = arith.mulf %609, %608 : vector<16x16xf32>
    %c262 = arith.constant 262 : index
    %611 = memref.load %arg2[%c262] : memref<294xf32, #tpu.memory_space<smem>>
    %612 = vector.extract_strided_slice %70 {offsets = [2, 0], sizes = [16, 16], strides = [1, 1]} : vector<22x16xf32> to vector<16x16xf32>
    %613 = vector.broadcast %611 : f32 to vector<16x16xf32>
    %614 = arith.mulf %613, %612 : vector<16x16xf32>
    %615 = arith.addf %610, %614 : vector<16x16xf32>
    %616 = arith.addf %586, %615 : vector<16x16xf32>
    %c18 = arith.constant 18 : index
    %617 = memref.load %arg2[%c18] : memref<294xf32, #tpu.memory_space<smem>>
    %618 = vector.extract_strided_slice %36 {offsets = [2, 0], sizes = [4, 16], strides = [1, 1]} : vector<10x16xf32> to vector<4x16xf32>
    %619 = vector.broadcast %617 : f32 to vector<4x16xf32>
    %620 = arith.mulf %619, %618 : vector<4x16xf32>
    %c67 = arith.constant 67 : index
    %621 = memref.load %arg2[%c67] : memref<294xf32, #tpu.memory_space<smem>>
    %622 = vector.extract_strided_slice %43 {offsets = [2, 0], sizes = [4, 16], strides = [1, 1]} : vector<10x16xf32> to vector<4x16xf32>
    %623 = vector.broadcast %621 : f32 to vector<4x16xf32>
    %624 = arith.mulf %623, %622 : vector<4x16xf32>
    %625 = arith.addf %620, %624 : vector<4x16xf32>
    %626 = arith.addf %596, %625 : vector<4x16xf32>
    %c116 = arith.constant 116 : index
    %627 = memref.load %arg2[%c116] : memref<294xf32, #tpu.memory_space<smem>>
    %628 = vector.extract_strided_slice %48 {offsets = [4, 0], sizes = [4, 16], strides = [1, 1]} : vector<10x16xf32> to vector<4x16xf32>
    %629 = vector.broadcast %627 : f32 to vector<4x16xf32>
    %630 = arith.mulf %629, %628 : vector<4x16xf32>
    %c165 = arith.constant 165 : index
    %631 = memref.load %arg2[%c165] : memref<294xf32, #tpu.memory_space<smem>>
    %632 = vector.extract_strided_slice %55 {offsets = [4, 0], sizes = [4, 16], strides = [1, 1]} : vector<10x16xf32> to vector<4x16xf32>
    %633 = vector.broadcast %631 : f32 to vector<4x16xf32>
    %634 = arith.mulf %633, %632 : vector<4x16xf32>
    %635 = arith.addf %630, %634 : vector<4x16xf32>
    %636 = arith.addf %606, %635 : vector<4x16xf32>
    %c214 = arith.constant 214 : index
    %637 = memref.load %arg2[%c214] : memref<294xf32, #tpu.memory_space<smem>>
    %638 = vector.extract_strided_slice %64 {offsets = [2, 0], sizes = [16, 16], strides = [1, 1]} : vector<22x16xf32> to vector<16x16xf32>
    %639 = vector.broadcast %637 : f32 to vector<16x16xf32>
    %640 = arith.mulf %639, %638 : vector<16x16xf32>
    %c263 = arith.constant 263 : index
    %641 = memref.load %arg2[%c263] : memref<294xf32, #tpu.memory_space<smem>>
    %642 = vector.extract_strided_slice %71 {offsets = [2, 0], sizes = [16, 16], strides = [1, 1]} : vector<22x16xf32> to vector<16x16xf32>
    %643 = vector.broadcast %641 : f32 to vector<16x16xf32>
    %644 = arith.mulf %643, %642 : vector<16x16xf32>
    %645 = arith.addf %640, %644 : vector<16x16xf32>
    %646 = arith.addf %616, %645 : vector<16x16xf32>
    %c19 = arith.constant 19 : index
    %647 = memref.load %arg2[%c19] : memref<294xf32, #tpu.memory_space<smem>>
    %648 = vector.extract_strided_slice %37 {offsets = [2, 0], sizes = [4, 16], strides = [1, 1]} : vector<10x16xf32> to vector<4x16xf32>
    %649 = vector.broadcast %647 : f32 to vector<4x16xf32>
    %650 = arith.mulf %649, %648 : vector<4x16xf32>
    %c68 = arith.constant 68 : index
    %651 = memref.load %arg2[%c68] : memref<294xf32, #tpu.memory_space<smem>>
    %652 = vector.extract_strided_slice %44 {offsets = [2, 0], sizes = [4, 16], strides = [1, 1]} : vector<10x16xf32> to vector<4x16xf32>
    %653 = vector.broadcast %651 : f32 to vector<4x16xf32>
    %654 = arith.mulf %653, %652 : vector<4x16xf32>
    %655 = arith.addf %650, %654 : vector<4x16xf32>
    %656 = arith.addf %626, %655 : vector<4x16xf32>
    %c117 = arith.constant 117 : index
    %657 = memref.load %arg2[%c117] : memref<294xf32, #tpu.memory_space<smem>>
    %658 = vector.extract_strided_slice %48 {offsets = [5, 0], sizes = [4, 16], strides = [1, 1]} : vector<10x16xf32> to vector<4x16xf32>
    %659 = vector.broadcast %657 : f32 to vector<4x16xf32>
    %660 = arith.mulf %659, %658 : vector<4x16xf32>
    %c166 = arith.constant 166 : index
    %661 = memref.load %arg2[%c166] : memref<294xf32, #tpu.memory_space<smem>>
    %662 = vector.extract_strided_slice %55 {offsets = [5, 0], sizes = [4, 16], strides = [1, 1]} : vector<10x16xf32> to vector<4x16xf32>
    %663 = vector.broadcast %661 : f32 to vector<4x16xf32>
    %664 = arith.mulf %663, %662 : vector<4x16xf32>
    %665 = arith.addf %660, %664 : vector<4x16xf32>
    %666 = arith.addf %636, %665 : vector<4x16xf32>
    %c215 = arith.constant 215 : index
    %667 = memref.load %arg2[%c215] : memref<294xf32, #tpu.memory_space<smem>>
    %668 = vector.extract_strided_slice %65 {offsets = [2, 0], sizes = [16, 16], strides = [1, 1]} : vector<22x16xf32> to vector<16x16xf32>
    %669 = vector.broadcast %667 : f32 to vector<16x16xf32>
    %670 = arith.mulf %669, %668 : vector<16x16xf32>
    %c264 = arith.constant 264 : index
    %671 = memref.load %arg2[%c264] : memref<294xf32, #tpu.memory_space<smem>>
    %672 = vector.extract_strided_slice %72 {offsets = [2, 0], sizes = [16, 16], strides = [1, 1]} : vector<22x16xf32> to vector<16x16xf32>
    %673 = vector.broadcast %671 : f32 to vector<16x16xf32>
    %674 = arith.mulf %673, %672 : vector<16x16xf32>
    %675 = arith.addf %670, %674 : vector<16x16xf32>
    %676 = arith.addf %646, %675 : vector<16x16xf32>
    %c20 = arith.constant 20 : index
    %677 = memref.load %arg2[%c20] : memref<294xf32, #tpu.memory_space<smem>>
    %678 = vector.extract_strided_slice %38 {offsets = [2, 0], sizes = [4, 16], strides = [1, 1]} : vector<10x16xf32> to vector<4x16xf32>
    %679 = vector.broadcast %677 : f32 to vector<4x16xf32>
    %680 = arith.mulf %679, %678 : vector<4x16xf32>
    %c69 = arith.constant 69 : index
    %681 = memref.load %arg2[%c69] : memref<294xf32, #tpu.memory_space<smem>>
    %682 = vector.extract_strided_slice %45 {offsets = [2, 0], sizes = [4, 16], strides = [1, 1]} : vector<10x16xf32> to vector<4x16xf32>
    %683 = vector.broadcast %681 : f32 to vector<4x16xf32>
    %684 = arith.mulf %683, %682 : vector<4x16xf32>
    %685 = arith.addf %680, %684 : vector<4x16xf32>
    %686 = arith.addf %656, %685 : vector<4x16xf32>
    %c118 = arith.constant 118 : index
    %687 = memref.load %arg2[%c118] : memref<294xf32, #tpu.memory_space<smem>>
    %688 = vector.extract_strided_slice %48 {offsets = [6, 0], sizes = [4, 16], strides = [1, 1]} : vector<10x16xf32> to vector<4x16xf32>
    %689 = vector.broadcast %687 : f32 to vector<4x16xf32>
    %690 = arith.mulf %689, %688 : vector<4x16xf32>
    %c167 = arith.constant 167 : index
    %691 = memref.load %arg2[%c167] : memref<294xf32, #tpu.memory_space<smem>>
    %692 = vector.extract_strided_slice %55 {offsets = [6, 0], sizes = [4, 16], strides = [1, 1]} : vector<10x16xf32> to vector<4x16xf32>
    %693 = vector.broadcast %691 : f32 to vector<4x16xf32>
    %694 = arith.mulf %693, %692 : vector<4x16xf32>
    %695 = arith.addf %690, %694 : vector<4x16xf32>
    %696 = arith.addf %666, %695 : vector<4x16xf32>
    %c216 = arith.constant 216 : index
    %697 = memref.load %arg2[%c216] : memref<294xf32, #tpu.memory_space<smem>>
    %698 = vector.extract_strided_slice %66 {offsets = [2, 0], sizes = [16, 16], strides = [1, 1]} : vector<22x16xf32> to vector<16x16xf32>
    %699 = vector.broadcast %697 : f32 to vector<16x16xf32>
    %700 = arith.mulf %699, %698 : vector<16x16xf32>
    %c265 = arith.constant 265 : index
    %701 = memref.load %arg2[%c265] : memref<294xf32, #tpu.memory_space<smem>>
    %702 = vector.extract_strided_slice %73 {offsets = [2, 0], sizes = [16, 16], strides = [1, 1]} : vector<22x16xf32> to vector<16x16xf32>
    %703 = vector.broadcast %701 : f32 to vector<16x16xf32>
    %704 = arith.mulf %703, %702 : vector<16x16xf32>
    %705 = arith.addf %700, %704 : vector<16x16xf32>
    %706 = arith.addf %676, %705 : vector<16x16xf32>
    %c21 = arith.constant 21 : index
    %707 = memref.load %arg2[%c21] : memref<294xf32, #tpu.memory_space<smem>>
    %708 = vector.extract_strided_slice %32 {offsets = [3, 0], sizes = [4, 16], strides = [1, 1]} : vector<10x16xf32> to vector<4x16xf32>
    %709 = vector.broadcast %707 : f32 to vector<4x16xf32>
    %710 = arith.mulf %709, %708 : vector<4x16xf32>
    %c70 = arith.constant 70 : index
    %711 = memref.load %arg2[%c70] : memref<294xf32, #tpu.memory_space<smem>>
    %712 = vector.extract_strided_slice %39 {offsets = [3, 0], sizes = [4, 16], strides = [1, 1]} : vector<10x16xf32> to vector<4x16xf32>
    %713 = vector.broadcast %711 : f32 to vector<4x16xf32>
    %714 = arith.mulf %713, %712 : vector<4x16xf32>
    %715 = arith.addf %710, %714 : vector<4x16xf32>
    %716 = arith.addf %686, %715 : vector<4x16xf32>
    %c119 = arith.constant 119 : index
    %717 = memref.load %arg2[%c119] : memref<294xf32, #tpu.memory_space<smem>>
    %718 = vector.extract_strided_slice %49 {offsets = [0, 0], sizes = [4, 16], strides = [1, 1]} : vector<10x16xf32> to vector<4x16xf32>
    %719 = vector.broadcast %717 : f32 to vector<4x16xf32>
    %720 = arith.mulf %719, %718 : vector<4x16xf32>
    %c168 = arith.constant 168 : index
    %721 = memref.load %arg2[%c168] : memref<294xf32, #tpu.memory_space<smem>>
    %722 = vector.extract_strided_slice %56 {offsets = [0, 0], sizes = [4, 16], strides = [1, 1]} : vector<10x16xf32> to vector<4x16xf32>
    %723 = vector.broadcast %721 : f32 to vector<4x16xf32>
    %724 = arith.mulf %723, %722 : vector<4x16xf32>
    %725 = arith.addf %720, %724 : vector<4x16xf32>
    %726 = arith.addf %696, %725 : vector<4x16xf32>
    %c217 = arith.constant 217 : index
    %727 = memref.load %arg2[%c217] : memref<294xf32, #tpu.memory_space<smem>>
    %728 = vector.extract_strided_slice %60 {offsets = [3, 0], sizes = [16, 16], strides = [1, 1]} : vector<22x16xf32> to vector<16x16xf32>
    %729 = vector.broadcast %727 : f32 to vector<16x16xf32>
    %730 = arith.mulf %729, %728 : vector<16x16xf32>
    %c266 = arith.constant 266 : index
    %731 = memref.load %arg2[%c266] : memref<294xf32, #tpu.memory_space<smem>>
    %732 = vector.extract_strided_slice %67 {offsets = [3, 0], sizes = [16, 16], strides = [1, 1]} : vector<22x16xf32> to vector<16x16xf32>
    %733 = vector.broadcast %731 : f32 to vector<16x16xf32>
    %734 = arith.mulf %733, %732 : vector<16x16xf32>
    %735 = arith.addf %730, %734 : vector<16x16xf32>
    %736 = arith.addf %706, %735 : vector<16x16xf32>
    %c22 = arith.constant 22 : index
    %737 = memref.load %arg2[%c22] : memref<294xf32, #tpu.memory_space<smem>>
    %738 = vector.extract_strided_slice %33 {offsets = [3, 0], sizes = [4, 16], strides = [1, 1]} : vector<10x16xf32> to vector<4x16xf32>
    %739 = vector.broadcast %737 : f32 to vector<4x16xf32>
    %740 = arith.mulf %739, %738 : vector<4x16xf32>
    %c71 = arith.constant 71 : index
    %741 = memref.load %arg2[%c71] : memref<294xf32, #tpu.memory_space<smem>>
    %742 = vector.extract_strided_slice %40 {offsets = [3, 0], sizes = [4, 16], strides = [1, 1]} : vector<10x16xf32> to vector<4x16xf32>
    %743 = vector.broadcast %741 : f32 to vector<4x16xf32>
    %744 = arith.mulf %743, %742 : vector<4x16xf32>
    %745 = arith.addf %740, %744 : vector<4x16xf32>
    %746 = arith.addf %716, %745 : vector<4x16xf32>
    %c120 = arith.constant 120 : index
    %747 = memref.load %arg2[%c120] : memref<294xf32, #tpu.memory_space<smem>>
    %748 = vector.extract_strided_slice %49 {offsets = [1, 0], sizes = [4, 16], strides = [1, 1]} : vector<10x16xf32> to vector<4x16xf32>
    %749 = vector.broadcast %747 : f32 to vector<4x16xf32>
    %750 = arith.mulf %749, %748 : vector<4x16xf32>
    %c169 = arith.constant 169 : index
    %751 = memref.load %arg2[%c169] : memref<294xf32, #tpu.memory_space<smem>>
    %752 = vector.extract_strided_slice %56 {offsets = [1, 0], sizes = [4, 16], strides = [1, 1]} : vector<10x16xf32> to vector<4x16xf32>
    %753 = vector.broadcast %751 : f32 to vector<4x16xf32>
    %754 = arith.mulf %753, %752 : vector<4x16xf32>
    %755 = arith.addf %750, %754 : vector<4x16xf32>
    %756 = arith.addf %726, %755 : vector<4x16xf32>
    %c218 = arith.constant 218 : index
    %757 = memref.load %arg2[%c218] : memref<294xf32, #tpu.memory_space<smem>>
    %758 = vector.extract_strided_slice %61 {offsets = [3, 0], sizes = [16, 16], strides = [1, 1]} : vector<22x16xf32> to vector<16x16xf32>
    %759 = vector.broadcast %757 : f32 to vector<16x16xf32>
    %760 = arith.mulf %759, %758 : vector<16x16xf32>
    %c267 = arith.constant 267 : index
    %761 = memref.load %arg2[%c267] : memref<294xf32, #tpu.memory_space<smem>>
    %762 = vector.extract_strided_slice %68 {offsets = [3, 0], sizes = [16, 16], strides = [1, 1]} : vector<22x16xf32> to vector<16x16xf32>
    %763 = vector.broadcast %761 : f32 to vector<16x16xf32>
    %764 = arith.mulf %763, %762 : vector<16x16xf32>
    %765 = arith.addf %760, %764 : vector<16x16xf32>
    %766 = arith.addf %736, %765 : vector<16x16xf32>
    %c23 = arith.constant 23 : index
    %767 = memref.load %arg2[%c23] : memref<294xf32, #tpu.memory_space<smem>>
    %768 = vector.extract_strided_slice %34 {offsets = [3, 0], sizes = [4, 16], strides = [1, 1]} : vector<10x16xf32> to vector<4x16xf32>
    %769 = vector.broadcast %767 : f32 to vector<4x16xf32>
    %770 = arith.mulf %769, %768 : vector<4x16xf32>
    %c72 = arith.constant 72 : index
    %771 = memref.load %arg2[%c72] : memref<294xf32, #tpu.memory_space<smem>>
    %772 = vector.extract_strided_slice %41 {offsets = [3, 0], sizes = [4, 16], strides = [1, 1]} : vector<10x16xf32> to vector<4x16xf32>
    %773 = vector.broadcast %771 : f32 to vector<4x16xf32>
    %774 = arith.mulf %773, %772 : vector<4x16xf32>
    %775 = arith.addf %770, %774 : vector<4x16xf32>
    %776 = arith.addf %746, %775 : vector<4x16xf32>
    %c121 = arith.constant 121 : index
    %777 = memref.load %arg2[%c121] : memref<294xf32, #tpu.memory_space<smem>>
    %778 = vector.extract_strided_slice %49 {offsets = [2, 0], sizes = [4, 16], strides = [1, 1]} : vector<10x16xf32> to vector<4x16xf32>
    %779 = vector.broadcast %777 : f32 to vector<4x16xf32>
    %780 = arith.mulf %779, %778 : vector<4x16xf32>
    %c170 = arith.constant 170 : index
    %781 = memref.load %arg2[%c170] : memref<294xf32, #tpu.memory_space<smem>>
    %782 = vector.extract_strided_slice %56 {offsets = [2, 0], sizes = [4, 16], strides = [1, 1]} : vector<10x16xf32> to vector<4x16xf32>
    %783 = vector.broadcast %781 : f32 to vector<4x16xf32>
    %784 = arith.mulf %783, %782 : vector<4x16xf32>
    %785 = arith.addf %780, %784 : vector<4x16xf32>
    %786 = arith.addf %756, %785 : vector<4x16xf32>
    %c219 = arith.constant 219 : index
    %787 = memref.load %arg2[%c219] : memref<294xf32, #tpu.memory_space<smem>>
    %788 = vector.extract_strided_slice %62 {offsets = [3, 0], sizes = [16, 16], strides = [1, 1]} : vector<22x16xf32> to vector<16x16xf32>
    %789 = vector.broadcast %787 : f32 to vector<16x16xf32>
    %790 = arith.mulf %789, %788 : vector<16x16xf32>
    %c268 = arith.constant 268 : index
    %791 = memref.load %arg2[%c268] : memref<294xf32, #tpu.memory_space<smem>>
    %792 = vector.extract_strided_slice %69 {offsets = [3, 0], sizes = [16, 16], strides = [1, 1]} : vector<22x16xf32> to vector<16x16xf32>
    %793 = vector.broadcast %791 : f32 to vector<16x16xf32>
    %794 = arith.mulf %793, %792 : vector<16x16xf32>
    %795 = arith.addf %790, %794 : vector<16x16xf32>
    %796 = arith.addf %766, %795 : vector<16x16xf32>
    %c24 = arith.constant 24 : index
    %797 = memref.load %arg2[%c24] : memref<294xf32, #tpu.memory_space<smem>>
    %798 = vector.extract_strided_slice %35 {offsets = [3, 0], sizes = [4, 16], strides = [1, 1]} : vector<10x16xf32> to vector<4x16xf32>
    %799 = vector.broadcast %797 : f32 to vector<4x16xf32>
    %800 = arith.mulf %799, %798 : vector<4x16xf32>
    %c73 = arith.constant 73 : index
    %801 = memref.load %arg2[%c73] : memref<294xf32, #tpu.memory_space<smem>>
    %802 = vector.extract_strided_slice %42 {offsets = [3, 0], sizes = [4, 16], strides = [1, 1]} : vector<10x16xf32> to vector<4x16xf32>
    %803 = vector.broadcast %801 : f32 to vector<4x16xf32>
    %804 = arith.mulf %803, %802 : vector<4x16xf32>
    %805 = arith.addf %800, %804 : vector<4x16xf32>
    %806 = arith.addf %776, %805 : vector<4x16xf32>
    %c122 = arith.constant 122 : index
    %807 = memref.load %arg2[%c122] : memref<294xf32, #tpu.memory_space<smem>>
    %808 = vector.extract_strided_slice %49 {offsets = [3, 0], sizes = [4, 16], strides = [1, 1]} : vector<10x16xf32> to vector<4x16xf32>
    %809 = vector.broadcast %807 : f32 to vector<4x16xf32>
    %810 = arith.mulf %809, %808 : vector<4x16xf32>
    %c171 = arith.constant 171 : index
    %811 = memref.load %arg2[%c171] : memref<294xf32, #tpu.memory_space<smem>>
    %812 = vector.extract_strided_slice %56 {offsets = [3, 0], sizes = [4, 16], strides = [1, 1]} : vector<10x16xf32> to vector<4x16xf32>
    %813 = vector.broadcast %811 : f32 to vector<4x16xf32>
    %814 = arith.mulf %813, %812 : vector<4x16xf32>
    %815 = arith.addf %810, %814 : vector<4x16xf32>
    %816 = arith.addf %786, %815 : vector<4x16xf32>
    %c220 = arith.constant 220 : index
    %817 = memref.load %arg2[%c220] : memref<294xf32, #tpu.memory_space<smem>>
    %818 = vector.extract_strided_slice %63 {offsets = [3, 0], sizes = [16, 16], strides = [1, 1]} : vector<22x16xf32> to vector<16x16xf32>
    %819 = vector.broadcast %817 : f32 to vector<16x16xf32>
    %820 = arith.mulf %819, %818 : vector<16x16xf32>
    %c269 = arith.constant 269 : index
    %821 = memref.load %arg2[%c269] : memref<294xf32, #tpu.memory_space<smem>>
    %822 = vector.extract_strided_slice %70 {offsets = [3, 0], sizes = [16, 16], strides = [1, 1]} : vector<22x16xf32> to vector<16x16xf32>
    %823 = vector.broadcast %821 : f32 to vector<16x16xf32>
    %824 = arith.mulf %823, %822 : vector<16x16xf32>
    %825 = arith.addf %820, %824 : vector<16x16xf32>
    %826 = arith.addf %796, %825 : vector<16x16xf32>
    %c25 = arith.constant 25 : index
    %827 = memref.load %arg2[%c25] : memref<294xf32, #tpu.memory_space<smem>>
    %828 = vector.extract_strided_slice %36 {offsets = [3, 0], sizes = [4, 16], strides = [1, 1]} : vector<10x16xf32> to vector<4x16xf32>
    %829 = vector.broadcast %827 : f32 to vector<4x16xf32>
    %830 = arith.mulf %829, %828 : vector<4x16xf32>
    %c74 = arith.constant 74 : index
    %831 = memref.load %arg2[%c74] : memref<294xf32, #tpu.memory_space<smem>>
    %832 = vector.extract_strided_slice %43 {offsets = [3, 0], sizes = [4, 16], strides = [1, 1]} : vector<10x16xf32> to vector<4x16xf32>
    %833 = vector.broadcast %831 : f32 to vector<4x16xf32>
    %834 = arith.mulf %833, %832 : vector<4x16xf32>
    %835 = arith.addf %830, %834 : vector<4x16xf32>
    %836 = arith.addf %806, %835 : vector<4x16xf32>
    %c123 = arith.constant 123 : index
    %837 = memref.load %arg2[%c123] : memref<294xf32, #tpu.memory_space<smem>>
    %838 = vector.extract_strided_slice %49 {offsets = [4, 0], sizes = [4, 16], strides = [1, 1]} : vector<10x16xf32> to vector<4x16xf32>
    %839 = vector.broadcast %837 : f32 to vector<4x16xf32>
    %840 = arith.mulf %839, %838 : vector<4x16xf32>
    %c172 = arith.constant 172 : index
    %841 = memref.load %arg2[%c172] : memref<294xf32, #tpu.memory_space<smem>>
    %842 = vector.extract_strided_slice %56 {offsets = [4, 0], sizes = [4, 16], strides = [1, 1]} : vector<10x16xf32> to vector<4x16xf32>
    %843 = vector.broadcast %841 : f32 to vector<4x16xf32>
    %844 = arith.mulf %843, %842 : vector<4x16xf32>
    %845 = arith.addf %840, %844 : vector<4x16xf32>
    %846 = arith.addf %816, %845 : vector<4x16xf32>
    %c221 = arith.constant 221 : index
    %847 = memref.load %arg2[%c221] : memref<294xf32, #tpu.memory_space<smem>>
    %848 = vector.extract_strided_slice %64 {offsets = [3, 0], sizes = [16, 16], strides = [1, 1]} : vector<22x16xf32> to vector<16x16xf32>
    %849 = vector.broadcast %847 : f32 to vector<16x16xf32>
    %850 = arith.mulf %849, %848 : vector<16x16xf32>
    %c270 = arith.constant 270 : index
    %851 = memref.load %arg2[%c270] : memref<294xf32, #tpu.memory_space<smem>>
    %852 = vector.extract_strided_slice %71 {offsets = [3, 0], sizes = [16, 16], strides = [1, 1]} : vector<22x16xf32> to vector<16x16xf32>
    %853 = vector.broadcast %851 : f32 to vector<16x16xf32>
    %854 = arith.mulf %853, %852 : vector<16x16xf32>
    %855 = arith.addf %850, %854 : vector<16x16xf32>
    %856 = arith.addf %826, %855 : vector<16x16xf32>
    %c26 = arith.constant 26 : index
    %857 = memref.load %arg2[%c26] : memref<294xf32, #tpu.memory_space<smem>>
    %858 = vector.extract_strided_slice %37 {offsets = [3, 0], sizes = [4, 16], strides = [1, 1]} : vector<10x16xf32> to vector<4x16xf32>
    %859 = vector.broadcast %857 : f32 to vector<4x16xf32>
    %860 = arith.mulf %859, %858 : vector<4x16xf32>
    %c75 = arith.constant 75 : index
    %861 = memref.load %arg2[%c75] : memref<294xf32, #tpu.memory_space<smem>>
    %862 = vector.extract_strided_slice %44 {offsets = [3, 0], sizes = [4, 16], strides = [1, 1]} : vector<10x16xf32> to vector<4x16xf32>
    %863 = vector.broadcast %861 : f32 to vector<4x16xf32>
    %864 = arith.mulf %863, %862 : vector<4x16xf32>
    %865 = arith.addf %860, %864 : vector<4x16xf32>
    %866 = arith.addf %836, %865 : vector<4x16xf32>
    %c124 = arith.constant 124 : index
    %867 = memref.load %arg2[%c124] : memref<294xf32, #tpu.memory_space<smem>>
    %868 = vector.extract_strided_slice %49 {offsets = [5, 0], sizes = [4, 16], strides = [1, 1]} : vector<10x16xf32> to vector<4x16xf32>
    %869 = vector.broadcast %867 : f32 to vector<4x16xf32>
    %870 = arith.mulf %869, %868 : vector<4x16xf32>
    %c173 = arith.constant 173 : index
    %871 = memref.load %arg2[%c173] : memref<294xf32, #tpu.memory_space<smem>>
    %872 = vector.extract_strided_slice %56 {offsets = [5, 0], sizes = [4, 16], strides = [1, 1]} : vector<10x16xf32> to vector<4x16xf32>
    %873 = vector.broadcast %871 : f32 to vector<4x16xf32>
    %874 = arith.mulf %873, %872 : vector<4x16xf32>
    %875 = arith.addf %870, %874 : vector<4x16xf32>
    %876 = arith.addf %846, %875 : vector<4x16xf32>
    %c222 = arith.constant 222 : index
    %877 = memref.load %arg2[%c222] : memref<294xf32, #tpu.memory_space<smem>>
    %878 = vector.extract_strided_slice %65 {offsets = [3, 0], sizes = [16, 16], strides = [1, 1]} : vector<22x16xf32> to vector<16x16xf32>
    %879 = vector.broadcast %877 : f32 to vector<16x16xf32>
    %880 = arith.mulf %879, %878 : vector<16x16xf32>
    %c271 = arith.constant 271 : index
    %881 = memref.load %arg2[%c271] : memref<294xf32, #tpu.memory_space<smem>>
    %882 = vector.extract_strided_slice %72 {offsets = [3, 0], sizes = [16, 16], strides = [1, 1]} : vector<22x16xf32> to vector<16x16xf32>
    %883 = vector.broadcast %881 : f32 to vector<16x16xf32>
    %884 = arith.mulf %883, %882 : vector<16x16xf32>
    %885 = arith.addf %880, %884 : vector<16x16xf32>
    %886 = arith.addf %856, %885 : vector<16x16xf32>
    %c27 = arith.constant 27 : index
    %887 = memref.load %arg2[%c27] : memref<294xf32, #tpu.memory_space<smem>>
    %888 = vector.extract_strided_slice %38 {offsets = [3, 0], sizes = [4, 16], strides = [1, 1]} : vector<10x16xf32> to vector<4x16xf32>
    %889 = vector.broadcast %887 : f32 to vector<4x16xf32>
    %890 = arith.mulf %889, %888 : vector<4x16xf32>
    %c76 = arith.constant 76 : index
    %891 = memref.load %arg2[%c76] : memref<294xf32, #tpu.memory_space<smem>>
    %892 = vector.extract_strided_slice %45 {offsets = [3, 0], sizes = [4, 16], strides = [1, 1]} : vector<10x16xf32> to vector<4x16xf32>
    %893 = vector.broadcast %891 : f32 to vector<4x16xf32>
    %894 = arith.mulf %893, %892 : vector<4x16xf32>
    %895 = arith.addf %890, %894 : vector<4x16xf32>
    %896 = arith.addf %866, %895 : vector<4x16xf32>
    %c125 = arith.constant 125 : index
    %897 = memref.load %arg2[%c125] : memref<294xf32, #tpu.memory_space<smem>>
    %898 = vector.extract_strided_slice %49 {offsets = [6, 0], sizes = [4, 16], strides = [1, 1]} : vector<10x16xf32> to vector<4x16xf32>
    %899 = vector.broadcast %897 : f32 to vector<4x16xf32>
    %900 = arith.mulf %899, %898 : vector<4x16xf32>
    %c174 = arith.constant 174 : index
    %901 = memref.load %arg2[%c174] : memref<294xf32, #tpu.memory_space<smem>>
    %902 = vector.extract_strided_slice %56 {offsets = [6, 0], sizes = [4, 16], strides = [1, 1]} : vector<10x16xf32> to vector<4x16xf32>
    %903 = vector.broadcast %901 : f32 to vector<4x16xf32>
    %904 = arith.mulf %903, %902 : vector<4x16xf32>
    %905 = arith.addf %900, %904 : vector<4x16xf32>
    %906 = arith.addf %876, %905 : vector<4x16xf32>
    %c223 = arith.constant 223 : index
    %907 = memref.load %arg2[%c223] : memref<294xf32, #tpu.memory_space<smem>>
    %908 = vector.extract_strided_slice %66 {offsets = [3, 0], sizes = [16, 16], strides = [1, 1]} : vector<22x16xf32> to vector<16x16xf32>
    %909 = vector.broadcast %907 : f32 to vector<16x16xf32>
    %910 = arith.mulf %909, %908 : vector<16x16xf32>
    %c272 = arith.constant 272 : index
    %911 = memref.load %arg2[%c272] : memref<294xf32, #tpu.memory_space<smem>>
    %912 = vector.extract_strided_slice %73 {offsets = [3, 0], sizes = [16, 16], strides = [1, 1]} : vector<22x16xf32> to vector<16x16xf32>
    %913 = vector.broadcast %911 : f32 to vector<16x16xf32>
    %914 = arith.mulf %913, %912 : vector<16x16xf32>
    %915 = arith.addf %910, %914 : vector<16x16xf32>
    %916 = arith.addf %886, %915 : vector<16x16xf32>
    %c28 = arith.constant 28 : index
    %917 = memref.load %arg2[%c28] : memref<294xf32, #tpu.memory_space<smem>>
    %918 = vector.extract_strided_slice %32 {offsets = [4, 0], sizes = [4, 16], strides = [1, 1]} : vector<10x16xf32> to vector<4x16xf32>
    %919 = vector.broadcast %917 : f32 to vector<4x16xf32>
    %920 = arith.mulf %919, %918 : vector<4x16xf32>
    %c77 = arith.constant 77 : index
    %921 = memref.load %arg2[%c77] : memref<294xf32, #tpu.memory_space<smem>>
    %922 = vector.extract_strided_slice %39 {offsets = [4, 0], sizes = [4, 16], strides = [1, 1]} : vector<10x16xf32> to vector<4x16xf32>
    %923 = vector.broadcast %921 : f32 to vector<4x16xf32>
    %924 = arith.mulf %923, %922 : vector<4x16xf32>
    %925 = arith.addf %920, %924 : vector<4x16xf32>
    %926 = arith.addf %896, %925 : vector<4x16xf32>
    %c126 = arith.constant 126 : index
    %927 = memref.load %arg2[%c126] : memref<294xf32, #tpu.memory_space<smem>>
    %928 = vector.extract_strided_slice %50 {offsets = [0, 0], sizes = [4, 16], strides = [1, 1]} : vector<10x16xf32> to vector<4x16xf32>
    %929 = vector.broadcast %927 : f32 to vector<4x16xf32>
    %930 = arith.mulf %929, %928 : vector<4x16xf32>
    %c175 = arith.constant 175 : index
    %931 = memref.load %arg2[%c175] : memref<294xf32, #tpu.memory_space<smem>>
    %932 = vector.extract_strided_slice %57 {offsets = [0, 0], sizes = [4, 16], strides = [1, 1]} : vector<10x16xf32> to vector<4x16xf32>
    %933 = vector.broadcast %931 : f32 to vector<4x16xf32>
    %934 = arith.mulf %933, %932 : vector<4x16xf32>
    %935 = arith.addf %930, %934 : vector<4x16xf32>
    %936 = arith.addf %906, %935 : vector<4x16xf32>
    %c224 = arith.constant 224 : index
    %937 = memref.load %arg2[%c224] : memref<294xf32, #tpu.memory_space<smem>>
    %938 = vector.extract_strided_slice %60 {offsets = [4, 0], sizes = [16, 16], strides = [1, 1]} : vector<22x16xf32> to vector<16x16xf32>
    %939 = vector.broadcast %937 : f32 to vector<16x16xf32>
    %940 = arith.mulf %939, %938 : vector<16x16xf32>
    %c273 = arith.constant 273 : index
    %941 = memref.load %arg2[%c273] : memref<294xf32, #tpu.memory_space<smem>>
    %942 = vector.extract_strided_slice %67 {offsets = [4, 0], sizes = [16, 16], strides = [1, 1]} : vector<22x16xf32> to vector<16x16xf32>
    %943 = vector.broadcast %941 : f32 to vector<16x16xf32>
    %944 = arith.mulf %943, %942 : vector<16x16xf32>
    %945 = arith.addf %940, %944 : vector<16x16xf32>
    %946 = arith.addf %916, %945 : vector<16x16xf32>
    %c29 = arith.constant 29 : index
    %947 = memref.load %arg2[%c29] : memref<294xf32, #tpu.memory_space<smem>>
    %948 = vector.extract_strided_slice %33 {offsets = [4, 0], sizes = [4, 16], strides = [1, 1]} : vector<10x16xf32> to vector<4x16xf32>
    %949 = vector.broadcast %947 : f32 to vector<4x16xf32>
    %950 = arith.mulf %949, %948 : vector<4x16xf32>
    %c78 = arith.constant 78 : index
    %951 = memref.load %arg2[%c78] : memref<294xf32, #tpu.memory_space<smem>>
    %952 = vector.extract_strided_slice %40 {offsets = [4, 0], sizes = [4, 16], strides = [1, 1]} : vector<10x16xf32> to vector<4x16xf32>
    %953 = vector.broadcast %951 : f32 to vector<4x16xf32>
    %954 = arith.mulf %953, %952 : vector<4x16xf32>
    %955 = arith.addf %950, %954 : vector<4x16xf32>
    %956 = arith.addf %926, %955 : vector<4x16xf32>
    %c127 = arith.constant 127 : index
    %957 = memref.load %arg2[%c127] : memref<294xf32, #tpu.memory_space<smem>>
    %958 = vector.extract_strided_slice %50 {offsets = [1, 0], sizes = [4, 16], strides = [1, 1]} : vector<10x16xf32> to vector<4x16xf32>
    %959 = vector.broadcast %957 : f32 to vector<4x16xf32>
    %960 = arith.mulf %959, %958 : vector<4x16xf32>
    %c176 = arith.constant 176 : index
    %961 = memref.load %arg2[%c176] : memref<294xf32, #tpu.memory_space<smem>>
    %962 = vector.extract_strided_slice %57 {offsets = [1, 0], sizes = [4, 16], strides = [1, 1]} : vector<10x16xf32> to vector<4x16xf32>
    %963 = vector.broadcast %961 : f32 to vector<4x16xf32>
    %964 = arith.mulf %963, %962 : vector<4x16xf32>
    %965 = arith.addf %960, %964 : vector<4x16xf32>
    %966 = arith.addf %936, %965 : vector<4x16xf32>
    %c225 = arith.constant 225 : index
    %967 = memref.load %arg2[%c225] : memref<294xf32, #tpu.memory_space<smem>>
    %968 = vector.extract_strided_slice %61 {offsets = [4, 0], sizes = [16, 16], strides = [1, 1]} : vector<22x16xf32> to vector<16x16xf32>
    %969 = vector.broadcast %967 : f32 to vector<16x16xf32>
    %970 = arith.mulf %969, %968 : vector<16x16xf32>
    %c274 = arith.constant 274 : index
    %971 = memref.load %arg2[%c274] : memref<294xf32, #tpu.memory_space<smem>>
    %972 = vector.extract_strided_slice %68 {offsets = [4, 0], sizes = [16, 16], strides = [1, 1]} : vector<22x16xf32> to vector<16x16xf32>
    %973 = vector.broadcast %971 : f32 to vector<16x16xf32>
    %974 = arith.mulf %973, %972 : vector<16x16xf32>
    %975 = arith.addf %970, %974 : vector<16x16xf32>
    %976 = arith.addf %946, %975 : vector<16x16xf32>
    %c30 = arith.constant 30 : index
    %977 = memref.load %arg2[%c30] : memref<294xf32, #tpu.memory_space<smem>>
    %978 = vector.extract_strided_slice %34 {offsets = [4, 0], sizes = [4, 16], strides = [1, 1]} : vector<10x16xf32> to vector<4x16xf32>
    %979 = vector.broadcast %977 : f32 to vector<4x16xf32>
    %980 = arith.mulf %979, %978 : vector<4x16xf32>
    %c79 = arith.constant 79 : index
    %981 = memref.load %arg2[%c79] : memref<294xf32, #tpu.memory_space<smem>>
    %982 = vector.extract_strided_slice %41 {offsets = [4, 0], sizes = [4, 16], strides = [1, 1]} : vector<10x16xf32> to vector<4x16xf32>
    %983 = vector.broadcast %981 : f32 to vector<4x16xf32>
    %984 = arith.mulf %983, %982 : vector<4x16xf32>
    %985 = arith.addf %980, %984 : vector<4x16xf32>
    %986 = arith.addf %956, %985 : vector<4x16xf32>
    %c128 = arith.constant 128 : index
    %987 = memref.load %arg2[%c128] : memref<294xf32, #tpu.memory_space<smem>>
    %988 = vector.extract_strided_slice %50 {offsets = [2, 0], sizes = [4, 16], strides = [1, 1]} : vector<10x16xf32> to vector<4x16xf32>
    %989 = vector.broadcast %987 : f32 to vector<4x16xf32>
    %990 = arith.mulf %989, %988 : vector<4x16xf32>
    %c177 = arith.constant 177 : index
    %991 = memref.load %arg2[%c177] : memref<294xf32, #tpu.memory_space<smem>>
    %992 = vector.extract_strided_slice %57 {offsets = [2, 0], sizes = [4, 16], strides = [1, 1]} : vector<10x16xf32> to vector<4x16xf32>
    %993 = vector.broadcast %991 : f32 to vector<4x16xf32>
    %994 = arith.mulf %993, %992 : vector<4x16xf32>
    %995 = arith.addf %990, %994 : vector<4x16xf32>
    %996 = arith.addf %966, %995 : vector<4x16xf32>
    %c226 = arith.constant 226 : index
    %997 = memref.load %arg2[%c226] : memref<294xf32, #tpu.memory_space<smem>>
    %998 = vector.extract_strided_slice %62 {offsets = [4, 0], sizes = [16, 16], strides = [1, 1]} : vector<22x16xf32> to vector<16x16xf32>
    %999 = vector.broadcast %997 : f32 to vector<16x16xf32>
    %1000 = arith.mulf %999, %998 : vector<16x16xf32>
    %c275 = arith.constant 275 : index
    %1001 = memref.load %arg2[%c275] : memref<294xf32, #tpu.memory_space<smem>>
    %1002 = vector.extract_strided_slice %69 {offsets = [4, 0], sizes = [16, 16], strides = [1, 1]} : vector<22x16xf32> to vector<16x16xf32>
    %1003 = vector.broadcast %1001 : f32 to vector<16x16xf32>
    %1004 = arith.mulf %1003, %1002 : vector<16x16xf32>
    %1005 = arith.addf %1000, %1004 : vector<16x16xf32>
    %1006 = arith.addf %976, %1005 : vector<16x16xf32>
    %c31 = arith.constant 31 : index
    %1007 = memref.load %arg2[%c31] : memref<294xf32, #tpu.memory_space<smem>>
    %1008 = vector.extract_strided_slice %35 {offsets = [4, 0], sizes = [4, 16], strides = [1, 1]} : vector<10x16xf32> to vector<4x16xf32>
    %1009 = vector.broadcast %1007 : f32 to vector<4x16xf32>
    %1010 = arith.mulf %1009, %1008 : vector<4x16xf32>
    %c80 = arith.constant 80 : index
    %1011 = memref.load %arg2[%c80] : memref<294xf32, #tpu.memory_space<smem>>
    %1012 = vector.extract_strided_slice %42 {offsets = [4, 0], sizes = [4, 16], strides = [1, 1]} : vector<10x16xf32> to vector<4x16xf32>
    %1013 = vector.broadcast %1011 : f32 to vector<4x16xf32>
    %1014 = arith.mulf %1013, %1012 : vector<4x16xf32>
    %1015 = arith.addf %1010, %1014 : vector<4x16xf32>
    %1016 = arith.addf %986, %1015 : vector<4x16xf32>
    %c129 = arith.constant 129 : index
    %1017 = memref.load %arg2[%c129] : memref<294xf32, #tpu.memory_space<smem>>
    %1018 = vector.extract_strided_slice %50 {offsets = [3, 0], sizes = [4, 16], strides = [1, 1]} : vector<10x16xf32> to vector<4x16xf32>
    %1019 = vector.broadcast %1017 : f32 to vector<4x16xf32>
    %1020 = arith.mulf %1019, %1018 : vector<4x16xf32>
    %c178 = arith.constant 178 : index
    %1021 = memref.load %arg2[%c178] : memref<294xf32, #tpu.memory_space<smem>>
    %1022 = vector.extract_strided_slice %57 {offsets = [3, 0], sizes = [4, 16], strides = [1, 1]} : vector<10x16xf32> to vector<4x16xf32>
    %1023 = vector.broadcast %1021 : f32 to vector<4x16xf32>
    %1024 = arith.mulf %1023, %1022 : vector<4x16xf32>
    %1025 = arith.addf %1020, %1024 : vector<4x16xf32>
    %1026 = arith.addf %996, %1025 : vector<4x16xf32>
    %c227 = arith.constant 227 : index
    %1027 = memref.load %arg2[%c227] : memref<294xf32, #tpu.memory_space<smem>>
    %1028 = vector.extract_strided_slice %63 {offsets = [4, 0], sizes = [16, 16], strides = [1, 1]} : vector<22x16xf32> to vector<16x16xf32>
    %1029 = vector.broadcast %1027 : f32 to vector<16x16xf32>
    %1030 = arith.mulf %1029, %1028 : vector<16x16xf32>
    %c276 = arith.constant 276 : index
    %1031 = memref.load %arg2[%c276] : memref<294xf32, #tpu.memory_space<smem>>
    %1032 = vector.extract_strided_slice %70 {offsets = [4, 0], sizes = [16, 16], strides = [1, 1]} : vector<22x16xf32> to vector<16x16xf32>
    %1033 = vector.broadcast %1031 : f32 to vector<16x16xf32>
    %1034 = arith.mulf %1033, %1032 : vector<16x16xf32>
    %1035 = arith.addf %1030, %1034 : vector<16x16xf32>
    %1036 = arith.addf %1006, %1035 : vector<16x16xf32>
    %c32 = arith.constant 32 : index
    %1037 = memref.load %arg2[%c32] : memref<294xf32, #tpu.memory_space<smem>>
    %1038 = vector.extract_strided_slice %36 {offsets = [4, 0], sizes = [4, 16], strides = [1, 1]} : vector<10x16xf32> to vector<4x16xf32>
    %1039 = vector.broadcast %1037 : f32 to vector<4x16xf32>
    %1040 = arith.mulf %1039, %1038 : vector<4x16xf32>
    %c81 = arith.constant 81 : index
    %1041 = memref.load %arg2[%c81] : memref<294xf32, #tpu.memory_space<smem>>
    %1042 = vector.extract_strided_slice %43 {offsets = [4, 0], sizes = [4, 16], strides = [1, 1]} : vector<10x16xf32> to vector<4x16xf32>
    %1043 = vector.broadcast %1041 : f32 to vector<4x16xf32>
    %1044 = arith.mulf %1043, %1042 : vector<4x16xf32>
    %1045 = arith.addf %1040, %1044 : vector<4x16xf32>
    %1046 = arith.addf %1016, %1045 : vector<4x16xf32>
    %c130 = arith.constant 130 : index
    %1047 = memref.load %arg2[%c130] : memref<294xf32, #tpu.memory_space<smem>>
    %1048 = vector.extract_strided_slice %50 {offsets = [4, 0], sizes = [4, 16], strides = [1, 1]} : vector<10x16xf32> to vector<4x16xf32>
    %1049 = vector.broadcast %1047 : f32 to vector<4x16xf32>
    %1050 = arith.mulf %1049, %1048 : vector<4x16xf32>
    %c179 = arith.constant 179 : index
    %1051 = memref.load %arg2[%c179] : memref<294xf32, #tpu.memory_space<smem>>
    %1052 = vector.extract_strided_slice %57 {offsets = [4, 0], sizes = [4, 16], strides = [1, 1]} : vector<10x16xf32> to vector<4x16xf32>
    %1053 = vector.broadcast %1051 : f32 to vector<4x16xf32>
    %1054 = arith.mulf %1053, %1052 : vector<4x16xf32>
    %1055 = arith.addf %1050, %1054 : vector<4x16xf32>
    %1056 = arith.addf %1026, %1055 : vector<4x16xf32>
    %c228 = arith.constant 228 : index
    %1057 = memref.load %arg2[%c228] : memref<294xf32, #tpu.memory_space<smem>>
    %1058 = vector.extract_strided_slice %64 {offsets = [4, 0], sizes = [16, 16], strides = [1, 1]} : vector<22x16xf32> to vector<16x16xf32>
    %1059 = vector.broadcast %1057 : f32 to vector<16x16xf32>
    %1060 = arith.mulf %1059, %1058 : vector<16x16xf32>
    %c277 = arith.constant 277 : index
    %1061 = memref.load %arg2[%c277] : memref<294xf32, #tpu.memory_space<smem>>
    %1062 = vector.extract_strided_slice %71 {offsets = [4, 0], sizes = [16, 16], strides = [1, 1]} : vector<22x16xf32> to vector<16x16xf32>
    %1063 = vector.broadcast %1061 : f32 to vector<16x16xf32>
    %1064 = arith.mulf %1063, %1062 : vector<16x16xf32>
    %1065 = arith.addf %1060, %1064 : vector<16x16xf32>
    %1066 = arith.addf %1036, %1065 : vector<16x16xf32>
    %c33 = arith.constant 33 : index
    %1067 = memref.load %arg2[%c33] : memref<294xf32, #tpu.memory_space<smem>>
    %1068 = vector.extract_strided_slice %37 {offsets = [4, 0], sizes = [4, 16], strides = [1, 1]} : vector<10x16xf32> to vector<4x16xf32>
    %1069 = vector.broadcast %1067 : f32 to vector<4x16xf32>
    %1070 = arith.mulf %1069, %1068 : vector<4x16xf32>
    %c82 = arith.constant 82 : index
    %1071 = memref.load %arg2[%c82] : memref<294xf32, #tpu.memory_space<smem>>
    %1072 = vector.extract_strided_slice %44 {offsets = [4, 0], sizes = [4, 16], strides = [1, 1]} : vector<10x16xf32> to vector<4x16xf32>
    %1073 = vector.broadcast %1071 : f32 to vector<4x16xf32>
    %1074 = arith.mulf %1073, %1072 : vector<4x16xf32>
    %1075 = arith.addf %1070, %1074 : vector<4x16xf32>
    %1076 = arith.addf %1046, %1075 : vector<4x16xf32>
    %c131 = arith.constant 131 : index
    %1077 = memref.load %arg2[%c131] : memref<294xf32, #tpu.memory_space<smem>>
    %1078 = vector.extract_strided_slice %50 {offsets = [5, 0], sizes = [4, 16], strides = [1, 1]} : vector<10x16xf32> to vector<4x16xf32>
    %1079 = vector.broadcast %1077 : f32 to vector<4x16xf32>
    %1080 = arith.mulf %1079, %1078 : vector<4x16xf32>
    %c180 = arith.constant 180 : index
    %1081 = memref.load %arg2[%c180] : memref<294xf32, #tpu.memory_space<smem>>
    %1082 = vector.extract_strided_slice %57 {offsets = [5, 0], sizes = [4, 16], strides = [1, 1]} : vector<10x16xf32> to vector<4x16xf32>
    %1083 = vector.broadcast %1081 : f32 to vector<4x16xf32>
    %1084 = arith.mulf %1083, %1082 : vector<4x16xf32>
    %1085 = arith.addf %1080, %1084 : vector<4x16xf32>
    %1086 = arith.addf %1056, %1085 : vector<4x16xf32>
    %c229 = arith.constant 229 : index
    %1087 = memref.load %arg2[%c229] : memref<294xf32, #tpu.memory_space<smem>>
    %1088 = vector.extract_strided_slice %65 {offsets = [4, 0], sizes = [16, 16], strides = [1, 1]} : vector<22x16xf32> to vector<16x16xf32>
    %1089 = vector.broadcast %1087 : f32 to vector<16x16xf32>
    %1090 = arith.mulf %1089, %1088 : vector<16x16xf32>
    %c278 = arith.constant 278 : index
    %1091 = memref.load %arg2[%c278] : memref<294xf32, #tpu.memory_space<smem>>
    %1092 = vector.extract_strided_slice %72 {offsets = [4, 0], sizes = [16, 16], strides = [1, 1]} : vector<22x16xf32> to vector<16x16xf32>
    %1093 = vector.broadcast %1091 : f32 to vector<16x16xf32>
    %1094 = arith.mulf %1093, %1092 : vector<16x16xf32>
    %1095 = arith.addf %1090, %1094 : vector<16x16xf32>
    %1096 = arith.addf %1066, %1095 : vector<16x16xf32>
    %c34 = arith.constant 34 : index
    %1097 = memref.load %arg2[%c34] : memref<294xf32, #tpu.memory_space<smem>>
    %1098 = vector.extract_strided_slice %38 {offsets = [4, 0], sizes = [4, 16], strides = [1, 1]} : vector<10x16xf32> to vector<4x16xf32>
    %1099 = vector.broadcast %1097 : f32 to vector<4x16xf32>
    %1100 = arith.mulf %1099, %1098 : vector<4x16xf32>
    %c83 = arith.constant 83 : index
    %1101 = memref.load %arg2[%c83] : memref<294xf32, #tpu.memory_space<smem>>
    %1102 = vector.extract_strided_slice %45 {offsets = [4, 0], sizes = [4, 16], strides = [1, 1]} : vector<10x16xf32> to vector<4x16xf32>
    %1103 = vector.broadcast %1101 : f32 to vector<4x16xf32>
    %1104 = arith.mulf %1103, %1102 : vector<4x16xf32>
    %1105 = arith.addf %1100, %1104 : vector<4x16xf32>
    %1106 = arith.addf %1076, %1105 : vector<4x16xf32>
    %c132 = arith.constant 132 : index
    %1107 = memref.load %arg2[%c132] : memref<294xf32, #tpu.memory_space<smem>>
    %1108 = vector.extract_strided_slice %50 {offsets = [6, 0], sizes = [4, 16], strides = [1, 1]} : vector<10x16xf32> to vector<4x16xf32>
    %1109 = vector.broadcast %1107 : f32 to vector<4x16xf32>
    %1110 = arith.mulf %1109, %1108 : vector<4x16xf32>
    %c181 = arith.constant 181 : index
    %1111 = memref.load %arg2[%c181] : memref<294xf32, #tpu.memory_space<smem>>
    %1112 = vector.extract_strided_slice %57 {offsets = [6, 0], sizes = [4, 16], strides = [1, 1]} : vector<10x16xf32> to vector<4x16xf32>
    %1113 = vector.broadcast %1111 : f32 to vector<4x16xf32>
    %1114 = arith.mulf %1113, %1112 : vector<4x16xf32>
    %1115 = arith.addf %1110, %1114 : vector<4x16xf32>
    %1116 = arith.addf %1086, %1115 : vector<4x16xf32>
    %c230 = arith.constant 230 : index
    %1117 = memref.load %arg2[%c230] : memref<294xf32, #tpu.memory_space<smem>>
    %1118 = vector.extract_strided_slice %66 {offsets = [4, 0], sizes = [16, 16], strides = [1, 1]} : vector<22x16xf32> to vector<16x16xf32>
    %1119 = vector.broadcast %1117 : f32 to vector<16x16xf32>
    %1120 = arith.mulf %1119, %1118 : vector<16x16xf32>
    %c279 = arith.constant 279 : index
    %1121 = memref.load %arg2[%c279] : memref<294xf32, #tpu.memory_space<smem>>
    %1122 = vector.extract_strided_slice %73 {offsets = [4, 0], sizes = [16, 16], strides = [1, 1]} : vector<22x16xf32> to vector<16x16xf32>
    %1123 = vector.broadcast %1121 : f32 to vector<16x16xf32>
    %1124 = arith.mulf %1123, %1122 : vector<16x16xf32>
    %1125 = arith.addf %1120, %1124 : vector<16x16xf32>
    %1126 = arith.addf %1096, %1125 : vector<16x16xf32>
    %c35 = arith.constant 35 : index
    %1127 = memref.load %arg2[%c35] : memref<294xf32, #tpu.memory_space<smem>>
    %1128 = vector.extract_strided_slice %32 {offsets = [5, 0], sizes = [4, 16], strides = [1, 1]} : vector<10x16xf32> to vector<4x16xf32>
    %1129 = vector.broadcast %1127 : f32 to vector<4x16xf32>
    %1130 = arith.mulf %1129, %1128 : vector<4x16xf32>
    %c84 = arith.constant 84 : index
    %1131 = memref.load %arg2[%c84] : memref<294xf32, #tpu.memory_space<smem>>
    %1132 = vector.extract_strided_slice %39 {offsets = [5, 0], sizes = [4, 16], strides = [1, 1]} : vector<10x16xf32> to vector<4x16xf32>
    %1133 = vector.broadcast %1131 : f32 to vector<4x16xf32>
    %1134 = arith.mulf %1133, %1132 : vector<4x16xf32>
    %1135 = arith.addf %1130, %1134 : vector<4x16xf32>
    %1136 = arith.addf %1106, %1135 : vector<4x16xf32>
    %c133 = arith.constant 133 : index
    %1137 = memref.load %arg2[%c133] : memref<294xf32, #tpu.memory_space<smem>>
    %1138 = vector.extract_strided_slice %51 {offsets = [0, 0], sizes = [4, 16], strides = [1, 1]} : vector<10x16xf32> to vector<4x16xf32>
    %1139 = vector.broadcast %1137 : f32 to vector<4x16xf32>
    %1140 = arith.mulf %1139, %1138 : vector<4x16xf32>
    %c182 = arith.constant 182 : index
    %1141 = memref.load %arg2[%c182] : memref<294xf32, #tpu.memory_space<smem>>
    %1142 = vector.extract_strided_slice %58 {offsets = [0, 0], sizes = [4, 16], strides = [1, 1]} : vector<10x16xf32> to vector<4x16xf32>
    %1143 = vector.broadcast %1141 : f32 to vector<4x16xf32>
    %1144 = arith.mulf %1143, %1142 : vector<4x16xf32>
    %1145 = arith.addf %1140, %1144 : vector<4x16xf32>
    %1146 = arith.addf %1116, %1145 : vector<4x16xf32>
    %c231 = arith.constant 231 : index
    %1147 = memref.load %arg2[%c231] : memref<294xf32, #tpu.memory_space<smem>>
    %1148 = vector.extract_strided_slice %60 {offsets = [5, 0], sizes = [16, 16], strides = [1, 1]} : vector<22x16xf32> to vector<16x16xf32>
    %1149 = vector.broadcast %1147 : f32 to vector<16x16xf32>
    %1150 = arith.mulf %1149, %1148 : vector<16x16xf32>
    %c280 = arith.constant 280 : index
    %1151 = memref.load %arg2[%c280] : memref<294xf32, #tpu.memory_space<smem>>
    %1152 = vector.extract_strided_slice %67 {offsets = [5, 0], sizes = [16, 16], strides = [1, 1]} : vector<22x16xf32> to vector<16x16xf32>
    %1153 = vector.broadcast %1151 : f32 to vector<16x16xf32>
    %1154 = arith.mulf %1153, %1152 : vector<16x16xf32>
    %1155 = arith.addf %1150, %1154 : vector<16x16xf32>
    %1156 = arith.addf %1126, %1155 : vector<16x16xf32>
    %c36 = arith.constant 36 : index
    %1157 = memref.load %arg2[%c36] : memref<294xf32, #tpu.memory_space<smem>>
    %1158 = vector.extract_strided_slice %33 {offsets = [5, 0], sizes = [4, 16], strides = [1, 1]} : vector<10x16xf32> to vector<4x16xf32>
    %1159 = vector.broadcast %1157 : f32 to vector<4x16xf32>
    %1160 = arith.mulf %1159, %1158 : vector<4x16xf32>
    %c85 = arith.constant 85 : index
    %1161 = memref.load %arg2[%c85] : memref<294xf32, #tpu.memory_space<smem>>
    %1162 = vector.extract_strided_slice %40 {offsets = [5, 0], sizes = [4, 16], strides = [1, 1]} : vector<10x16xf32> to vector<4x16xf32>
    %1163 = vector.broadcast %1161 : f32 to vector<4x16xf32>
    %1164 = arith.mulf %1163, %1162 : vector<4x16xf32>
    %1165 = arith.addf %1160, %1164 : vector<4x16xf32>
    %1166 = arith.addf %1136, %1165 : vector<4x16xf32>
    %c134 = arith.constant 134 : index
    %1167 = memref.load %arg2[%c134] : memref<294xf32, #tpu.memory_space<smem>>
    %1168 = vector.extract_strided_slice %51 {offsets = [1, 0], sizes = [4, 16], strides = [1, 1]} : vector<10x16xf32> to vector<4x16xf32>
    %1169 = vector.broadcast %1167 : f32 to vector<4x16xf32>
    %1170 = arith.mulf %1169, %1168 : vector<4x16xf32>
    %c183 = arith.constant 183 : index
    %1171 = memref.load %arg2[%c183] : memref<294xf32, #tpu.memory_space<smem>>
    %1172 = vector.extract_strided_slice %58 {offsets = [1, 0], sizes = [4, 16], strides = [1, 1]} : vector<10x16xf32> to vector<4x16xf32>
    %1173 = vector.broadcast %1171 : f32 to vector<4x16xf32>
    %1174 = arith.mulf %1173, %1172 : vector<4x16xf32>
    %1175 = arith.addf %1170, %1174 : vector<4x16xf32>
    %1176 = arith.addf %1146, %1175 : vector<4x16xf32>
    %c232 = arith.constant 232 : index
    %1177 = memref.load %arg2[%c232] : memref<294xf32, #tpu.memory_space<smem>>
    %1178 = vector.extract_strided_slice %61 {offsets = [5, 0], sizes = [16, 16], strides = [1, 1]} : vector<22x16xf32> to vector<16x16xf32>
    %1179 = vector.broadcast %1177 : f32 to vector<16x16xf32>
    %1180 = arith.mulf %1179, %1178 : vector<16x16xf32>
    %c281 = arith.constant 281 : index
    %1181 = memref.load %arg2[%c281] : memref<294xf32, #tpu.memory_space<smem>>
    %1182 = vector.extract_strided_slice %68 {offsets = [5, 0], sizes = [16, 16], strides = [1, 1]} : vector<22x16xf32> to vector<16x16xf32>
    %1183 = vector.broadcast %1181 : f32 to vector<16x16xf32>
    %1184 = arith.mulf %1183, %1182 : vector<16x16xf32>
    %1185 = arith.addf %1180, %1184 : vector<16x16xf32>
    %1186 = arith.addf %1156, %1185 : vector<16x16xf32>
    %c37 = arith.constant 37 : index
    %1187 = memref.load %arg2[%c37] : memref<294xf32, #tpu.memory_space<smem>>
    %1188 = vector.extract_strided_slice %34 {offsets = [5, 0], sizes = [4, 16], strides = [1, 1]} : vector<10x16xf32> to vector<4x16xf32>
    %1189 = vector.broadcast %1187 : f32 to vector<4x16xf32>
    %1190 = arith.mulf %1189, %1188 : vector<4x16xf32>
    %c86 = arith.constant 86 : index
    %1191 = memref.load %arg2[%c86] : memref<294xf32, #tpu.memory_space<smem>>
    %1192 = vector.extract_strided_slice %41 {offsets = [5, 0], sizes = [4, 16], strides = [1, 1]} : vector<10x16xf32> to vector<4x16xf32>
    %1193 = vector.broadcast %1191 : f32 to vector<4x16xf32>
    %1194 = arith.mulf %1193, %1192 : vector<4x16xf32>
    %1195 = arith.addf %1190, %1194 : vector<4x16xf32>
    %1196 = arith.addf %1166, %1195 : vector<4x16xf32>
    %c135 = arith.constant 135 : index
    %1197 = memref.load %arg2[%c135] : memref<294xf32, #tpu.memory_space<smem>>
    %1198 = vector.extract_strided_slice %51 {offsets = [2, 0], sizes = [4, 16], strides = [1, 1]} : vector<10x16xf32> to vector<4x16xf32>
    %1199 = vector.broadcast %1197 : f32 to vector<4x16xf32>
    %1200 = arith.mulf %1199, %1198 : vector<4x16xf32>
    %c184 = arith.constant 184 : index
    %1201 = memref.load %arg2[%c184] : memref<294xf32, #tpu.memory_space<smem>>
    %1202 = vector.extract_strided_slice %58 {offsets = [2, 0], sizes = [4, 16], strides = [1, 1]} : vector<10x16xf32> to vector<4x16xf32>
    %1203 = vector.broadcast %1201 : f32 to vector<4x16xf32>
    %1204 = arith.mulf %1203, %1202 : vector<4x16xf32>
    %1205 = arith.addf %1200, %1204 : vector<4x16xf32>
    %1206 = arith.addf %1176, %1205 : vector<4x16xf32>
    %c233 = arith.constant 233 : index
    %1207 = memref.load %arg2[%c233] : memref<294xf32, #tpu.memory_space<smem>>
    %1208 = vector.extract_strided_slice %62 {offsets = [5, 0], sizes = [16, 16], strides = [1, 1]} : vector<22x16xf32> to vector<16x16xf32>
    %1209 = vector.broadcast %1207 : f32 to vector<16x16xf32>
    %1210 = arith.mulf %1209, %1208 : vector<16x16xf32>
    %c282 = arith.constant 282 : index
    %1211 = memref.load %arg2[%c282] : memref<294xf32, #tpu.memory_space<smem>>
    %1212 = vector.extract_strided_slice %69 {offsets = [5, 0], sizes = [16, 16], strides = [1, 1]} : vector<22x16xf32> to vector<16x16xf32>
    %1213 = vector.broadcast %1211 : f32 to vector<16x16xf32>
    %1214 = arith.mulf %1213, %1212 : vector<16x16xf32>
    %1215 = arith.addf %1210, %1214 : vector<16x16xf32>
    %1216 = arith.addf %1186, %1215 : vector<16x16xf32>
    %c38 = arith.constant 38 : index
    %1217 = memref.load %arg2[%c38] : memref<294xf32, #tpu.memory_space<smem>>
    %1218 = vector.extract_strided_slice %35 {offsets = [5, 0], sizes = [4, 16], strides = [1, 1]} : vector<10x16xf32> to vector<4x16xf32>
    %1219 = vector.broadcast %1217 : f32 to vector<4x16xf32>
    %1220 = arith.mulf %1219, %1218 : vector<4x16xf32>
    %c87 = arith.constant 87 : index
    %1221 = memref.load %arg2[%c87] : memref<294xf32, #tpu.memory_space<smem>>
    %1222 = vector.extract_strided_slice %42 {offsets = [5, 0], sizes = [4, 16], strides = [1, 1]} : vector<10x16xf32> to vector<4x16xf32>
    %1223 = vector.broadcast %1221 : f32 to vector<4x16xf32>
    %1224 = arith.mulf %1223, %1222 : vector<4x16xf32>
    %1225 = arith.addf %1220, %1224 : vector<4x16xf32>
    %1226 = arith.addf %1196, %1225 : vector<4x16xf32>
    %c136 = arith.constant 136 : index
    %1227 = memref.load %arg2[%c136] : memref<294xf32, #tpu.memory_space<smem>>
    %1228 = vector.extract_strided_slice %51 {offsets = [3, 0], sizes = [4, 16], strides = [1, 1]} : vector<10x16xf32> to vector<4x16xf32>
    %1229 = vector.broadcast %1227 : f32 to vector<4x16xf32>
    %1230 = arith.mulf %1229, %1228 : vector<4x16xf32>
    %c185 = arith.constant 185 : index
    %1231 = memref.load %arg2[%c185] : memref<294xf32, #tpu.memory_space<smem>>
    %1232 = vector.extract_strided_slice %58 {offsets = [3, 0], sizes = [4, 16], strides = [1, 1]} : vector<10x16xf32> to vector<4x16xf32>
    %1233 = vector.broadcast %1231 : f32 to vector<4x16xf32>
    %1234 = arith.mulf %1233, %1232 : vector<4x16xf32>
    %1235 = arith.addf %1230, %1234 : vector<4x16xf32>
    %1236 = arith.addf %1206, %1235 : vector<4x16xf32>
    %c234 = arith.constant 234 : index
    %1237 = memref.load %arg2[%c234] : memref<294xf32, #tpu.memory_space<smem>>
    %1238 = vector.extract_strided_slice %63 {offsets = [5, 0], sizes = [16, 16], strides = [1, 1]} : vector<22x16xf32> to vector<16x16xf32>
    %1239 = vector.broadcast %1237 : f32 to vector<16x16xf32>
    %1240 = arith.mulf %1239, %1238 : vector<16x16xf32>
    %c283 = arith.constant 283 : index
    %1241 = memref.load %arg2[%c283] : memref<294xf32, #tpu.memory_space<smem>>
    %1242 = vector.extract_strided_slice %70 {offsets = [5, 0], sizes = [16, 16], strides = [1, 1]} : vector<22x16xf32> to vector<16x16xf32>
    %1243 = vector.broadcast %1241 : f32 to vector<16x16xf32>
    %1244 = arith.mulf %1243, %1242 : vector<16x16xf32>
    %1245 = arith.addf %1240, %1244 : vector<16x16xf32>
    %1246 = arith.addf %1216, %1245 : vector<16x16xf32>
    %c39 = arith.constant 39 : index
    %1247 = memref.load %arg2[%c39] : memref<294xf32, #tpu.memory_space<smem>>
    %1248 = vector.extract_strided_slice %36 {offsets = [5, 0], sizes = [4, 16], strides = [1, 1]} : vector<10x16xf32> to vector<4x16xf32>
    %1249 = vector.broadcast %1247 : f32 to vector<4x16xf32>
    %1250 = arith.mulf %1249, %1248 : vector<4x16xf32>
    %c88 = arith.constant 88 : index
    %1251 = memref.load %arg2[%c88] : memref<294xf32, #tpu.memory_space<smem>>
    %1252 = vector.extract_strided_slice %43 {offsets = [5, 0], sizes = [4, 16], strides = [1, 1]} : vector<10x16xf32> to vector<4x16xf32>
    %1253 = vector.broadcast %1251 : f32 to vector<4x16xf32>
    %1254 = arith.mulf %1253, %1252 : vector<4x16xf32>
    %1255 = arith.addf %1250, %1254 : vector<4x16xf32>
    %1256 = arith.addf %1226, %1255 : vector<4x16xf32>
    %c137 = arith.constant 137 : index
    %1257 = memref.load %arg2[%c137] : memref<294xf32, #tpu.memory_space<smem>>
    %1258 = vector.extract_strided_slice %51 {offsets = [4, 0], sizes = [4, 16], strides = [1, 1]} : vector<10x16xf32> to vector<4x16xf32>
    %1259 = vector.broadcast %1257 : f32 to vector<4x16xf32>
    %1260 = arith.mulf %1259, %1258 : vector<4x16xf32>
    %c186 = arith.constant 186 : index
    %1261 = memref.load %arg2[%c186] : memref<294xf32, #tpu.memory_space<smem>>
    %1262 = vector.extract_strided_slice %58 {offsets = [4, 0], sizes = [4, 16], strides = [1, 1]} : vector<10x16xf32> to vector<4x16xf32>
    %1263 = vector.broadcast %1261 : f32 to vector<4x16xf32>
    %1264 = arith.mulf %1263, %1262 : vector<4x16xf32>
    %1265 = arith.addf %1260, %1264 : vector<4x16xf32>
    %1266 = arith.addf %1236, %1265 : vector<4x16xf32>
    %c235 = arith.constant 235 : index
    %1267 = memref.load %arg2[%c235] : memref<294xf32, #tpu.memory_space<smem>>
    %1268 = vector.extract_strided_slice %64 {offsets = [5, 0], sizes = [16, 16], strides = [1, 1]} : vector<22x16xf32> to vector<16x16xf32>
    %1269 = vector.broadcast %1267 : f32 to vector<16x16xf32>
    %1270 = arith.mulf %1269, %1268 : vector<16x16xf32>
    %c284 = arith.constant 284 : index
    %1271 = memref.load %arg2[%c284] : memref<294xf32, #tpu.memory_space<smem>>
    %1272 = vector.extract_strided_slice %71 {offsets = [5, 0], sizes = [16, 16], strides = [1, 1]} : vector<22x16xf32> to vector<16x16xf32>
    %1273 = vector.broadcast %1271 : f32 to vector<16x16xf32>
    %1274 = arith.mulf %1273, %1272 : vector<16x16xf32>
    %1275 = arith.addf %1270, %1274 : vector<16x16xf32>
    %1276 = arith.addf %1246, %1275 : vector<16x16xf32>
    %c40 = arith.constant 40 : index
    %1277 = memref.load %arg2[%c40] : memref<294xf32, #tpu.memory_space<smem>>
    %1278 = vector.extract_strided_slice %37 {offsets = [5, 0], sizes = [4, 16], strides = [1, 1]} : vector<10x16xf32> to vector<4x16xf32>
    %1279 = vector.broadcast %1277 : f32 to vector<4x16xf32>
    %1280 = arith.mulf %1279, %1278 : vector<4x16xf32>
    %c89 = arith.constant 89 : index
    %1281 = memref.load %arg2[%c89] : memref<294xf32, #tpu.memory_space<smem>>
    %1282 = vector.extract_strided_slice %44 {offsets = [5, 0], sizes = [4, 16], strides = [1, 1]} : vector<10x16xf32> to vector<4x16xf32>
    %1283 = vector.broadcast %1281 : f32 to vector<4x16xf32>
    %1284 = arith.mulf %1283, %1282 : vector<4x16xf32>
    %1285 = arith.addf %1280, %1284 : vector<4x16xf32>
    %1286 = arith.addf %1256, %1285 : vector<4x16xf32>
    %c138 = arith.constant 138 : index
    %1287 = memref.load %arg2[%c138] : memref<294xf32, #tpu.memory_space<smem>>
    %1288 = vector.extract_strided_slice %51 {offsets = [5, 0], sizes = [4, 16], strides = [1, 1]} : vector<10x16xf32> to vector<4x16xf32>
    %1289 = vector.broadcast %1287 : f32 to vector<4x16xf32>
    %1290 = arith.mulf %1289, %1288 : vector<4x16xf32>
    %c187 = arith.constant 187 : index
    %1291 = memref.load %arg2[%c187] : memref<294xf32, #tpu.memory_space<smem>>
    %1292 = vector.extract_strided_slice %58 {offsets = [5, 0], sizes = [4, 16], strides = [1, 1]} : vector<10x16xf32> to vector<4x16xf32>
    %1293 = vector.broadcast %1291 : f32 to vector<4x16xf32>
    %1294 = arith.mulf %1293, %1292 : vector<4x16xf32>
    %1295 = arith.addf %1290, %1294 : vector<4x16xf32>
    %1296 = arith.addf %1266, %1295 : vector<4x16xf32>
    %c236 = arith.constant 236 : index
    %1297 = memref.load %arg2[%c236] : memref<294xf32, #tpu.memory_space<smem>>
    %1298 = vector.extract_strided_slice %65 {offsets = [5, 0], sizes = [16, 16], strides = [1, 1]} : vector<22x16xf32> to vector<16x16xf32>
    %1299 = vector.broadcast %1297 : f32 to vector<16x16xf32>
    %1300 = arith.mulf %1299, %1298 : vector<16x16xf32>
    %c285 = arith.constant 285 : index
    %1301 = memref.load %arg2[%c285] : memref<294xf32, #tpu.memory_space<smem>>
    %1302 = vector.extract_strided_slice %72 {offsets = [5, 0], sizes = [16, 16], strides = [1, 1]} : vector<22x16xf32> to vector<16x16xf32>
    %1303 = vector.broadcast %1301 : f32 to vector<16x16xf32>
    %1304 = arith.mulf %1303, %1302 : vector<16x16xf32>
    %1305 = arith.addf %1300, %1304 : vector<16x16xf32>
    %1306 = arith.addf %1276, %1305 : vector<16x16xf32>
    %c41 = arith.constant 41 : index
    %1307 = memref.load %arg2[%c41] : memref<294xf32, #tpu.memory_space<smem>>
    %1308 = vector.extract_strided_slice %38 {offsets = [5, 0], sizes = [4, 16], strides = [1, 1]} : vector<10x16xf32> to vector<4x16xf32>
    %1309 = vector.broadcast %1307 : f32 to vector<4x16xf32>
    %1310 = arith.mulf %1309, %1308 : vector<4x16xf32>
    %c90 = arith.constant 90 : index
    %1311 = memref.load %arg2[%c90] : memref<294xf32, #tpu.memory_space<smem>>
    %1312 = vector.extract_strided_slice %45 {offsets = [5, 0], sizes = [4, 16], strides = [1, 1]} : vector<10x16xf32> to vector<4x16xf32>
    %1313 = vector.broadcast %1311 : f32 to vector<4x16xf32>
    %1314 = arith.mulf %1313, %1312 : vector<4x16xf32>
    %1315 = arith.addf %1310, %1314 : vector<4x16xf32>
    %1316 = arith.addf %1286, %1315 : vector<4x16xf32>
    %c139 = arith.constant 139 : index
    %1317 = memref.load %arg2[%c139] : memref<294xf32, #tpu.memory_space<smem>>
    %1318 = vector.extract_strided_slice %51 {offsets = [6, 0], sizes = [4, 16], strides = [1, 1]} : vector<10x16xf32> to vector<4x16xf32>
    %1319 = vector.broadcast %1317 : f32 to vector<4x16xf32>
    %1320 = arith.mulf %1319, %1318 : vector<4x16xf32>
    %c188 = arith.constant 188 : index
    %1321 = memref.load %arg2[%c188] : memref<294xf32, #tpu.memory_space<smem>>
    %1322 = vector.extract_strided_slice %58 {offsets = [6, 0], sizes = [4, 16], strides = [1, 1]} : vector<10x16xf32> to vector<4x16xf32>
    %1323 = vector.broadcast %1321 : f32 to vector<4x16xf32>
    %1324 = arith.mulf %1323, %1322 : vector<4x16xf32>
    %1325 = arith.addf %1320, %1324 : vector<4x16xf32>
    %1326 = arith.addf %1296, %1325 : vector<4x16xf32>
    %c237 = arith.constant 237 : index
    %1327 = memref.load %arg2[%c237] : memref<294xf32, #tpu.memory_space<smem>>
    %1328 = vector.extract_strided_slice %66 {offsets = [5, 0], sizes = [16, 16], strides = [1, 1]} : vector<22x16xf32> to vector<16x16xf32>
    %1329 = vector.broadcast %1327 : f32 to vector<16x16xf32>
    %1330 = arith.mulf %1329, %1328 : vector<16x16xf32>
    %c286 = arith.constant 286 : index
    %1331 = memref.load %arg2[%c286] : memref<294xf32, #tpu.memory_space<smem>>
    %1332 = vector.extract_strided_slice %73 {offsets = [5, 0], sizes = [16, 16], strides = [1, 1]} : vector<22x16xf32> to vector<16x16xf32>
    %1333 = vector.broadcast %1331 : f32 to vector<16x16xf32>
    %1334 = arith.mulf %1333, %1332 : vector<16x16xf32>
    %1335 = arith.addf %1330, %1334 : vector<16x16xf32>
    %1336 = arith.addf %1306, %1335 : vector<16x16xf32>
    %c42 = arith.constant 42 : index
    %1337 = memref.load %arg2[%c42] : memref<294xf32, #tpu.memory_space<smem>>
    %1338 = vector.extract_strided_slice %32 {offsets = [6, 0], sizes = [4, 16], strides = [1, 1]} : vector<10x16xf32> to vector<4x16xf32>
    %1339 = vector.broadcast %1337 : f32 to vector<4x16xf32>
    %1340 = arith.mulf %1339, %1338 : vector<4x16xf32>
    %c91 = arith.constant 91 : index
    %1341 = memref.load %arg2[%c91] : memref<294xf32, #tpu.memory_space<smem>>
    %1342 = vector.extract_strided_slice %39 {offsets = [6, 0], sizes = [4, 16], strides = [1, 1]} : vector<10x16xf32> to vector<4x16xf32>
    %1343 = vector.broadcast %1341 : f32 to vector<4x16xf32>
    %1344 = arith.mulf %1343, %1342 : vector<4x16xf32>
    %1345 = arith.addf %1340, %1344 : vector<4x16xf32>
    %1346 = arith.addf %1316, %1345 : vector<4x16xf32>
    %c140 = arith.constant 140 : index
    %1347 = memref.load %arg2[%c140] : memref<294xf32, #tpu.memory_space<smem>>
    %1348 = vector.extract_strided_slice %52 {offsets = [0, 0], sizes = [4, 16], strides = [1, 1]} : vector<10x16xf32> to vector<4x16xf32>
    %1349 = vector.broadcast %1347 : f32 to vector<4x16xf32>
    %1350 = arith.mulf %1349, %1348 : vector<4x16xf32>
    %c189 = arith.constant 189 : index
    %1351 = memref.load %arg2[%c189] : memref<294xf32, #tpu.memory_space<smem>>
    %1352 = vector.extract_strided_slice %59 {offsets = [0, 0], sizes = [4, 16], strides = [1, 1]} : vector<10x16xf32> to vector<4x16xf32>
    %1353 = vector.broadcast %1351 : f32 to vector<4x16xf32>
    %1354 = arith.mulf %1353, %1352 : vector<4x16xf32>
    %1355 = arith.addf %1350, %1354 : vector<4x16xf32>
    %1356 = arith.addf %1326, %1355 : vector<4x16xf32>
    %c238 = arith.constant 238 : index
    %1357 = memref.load %arg2[%c238] : memref<294xf32, #tpu.memory_space<smem>>
    %1358 = vector.extract_strided_slice %60 {offsets = [6, 0], sizes = [16, 16], strides = [1, 1]} : vector<22x16xf32> to vector<16x16xf32>
    %1359 = vector.broadcast %1357 : f32 to vector<16x16xf32>
    %1360 = arith.mulf %1359, %1358 : vector<16x16xf32>
    %c287 = arith.constant 287 : index
    %1361 = memref.load %arg2[%c287] : memref<294xf32, #tpu.memory_space<smem>>
    %1362 = vector.extract_strided_slice %67 {offsets = [6, 0], sizes = [16, 16], strides = [1, 1]} : vector<22x16xf32> to vector<16x16xf32>
    %1363 = vector.broadcast %1361 : f32 to vector<16x16xf32>
    %1364 = arith.mulf %1363, %1362 : vector<16x16xf32>
    %1365 = arith.addf %1360, %1364 : vector<16x16xf32>
    %1366 = arith.addf %1336, %1365 : vector<16x16xf32>
    %c43 = arith.constant 43 : index
    %1367 = memref.load %arg2[%c43] : memref<294xf32, #tpu.memory_space<smem>>
    %1368 = vector.extract_strided_slice %33 {offsets = [6, 0], sizes = [4, 16], strides = [1, 1]} : vector<10x16xf32> to vector<4x16xf32>
    %1369 = vector.broadcast %1367 : f32 to vector<4x16xf32>
    %1370 = arith.mulf %1369, %1368 : vector<4x16xf32>
    %c92 = arith.constant 92 : index
    %1371 = memref.load %arg2[%c92] : memref<294xf32, #tpu.memory_space<smem>>
    %1372 = vector.extract_strided_slice %40 {offsets = [6, 0], sizes = [4, 16], strides = [1, 1]} : vector<10x16xf32> to vector<4x16xf32>
    %1373 = vector.broadcast %1371 : f32 to vector<4x16xf32>
    %1374 = arith.mulf %1373, %1372 : vector<4x16xf32>
    %1375 = arith.addf %1370, %1374 : vector<4x16xf32>
    %1376 = arith.addf %1346, %1375 : vector<4x16xf32>
    %c141 = arith.constant 141 : index
    %1377 = memref.load %arg2[%c141] : memref<294xf32, #tpu.memory_space<smem>>
    %1378 = vector.extract_strided_slice %52 {offsets = [1, 0], sizes = [4, 16], strides = [1, 1]} : vector<10x16xf32> to vector<4x16xf32>
    %1379 = vector.broadcast %1377 : f32 to vector<4x16xf32>
    %1380 = arith.mulf %1379, %1378 : vector<4x16xf32>
    %c190 = arith.constant 190 : index
    %1381 = memref.load %arg2[%c190] : memref<294xf32, #tpu.memory_space<smem>>
    %1382 = vector.extract_strided_slice %59 {offsets = [1, 0], sizes = [4, 16], strides = [1, 1]} : vector<10x16xf32> to vector<4x16xf32>
    %1383 = vector.broadcast %1381 : f32 to vector<4x16xf32>
    %1384 = arith.mulf %1383, %1382 : vector<4x16xf32>
    %1385 = arith.addf %1380, %1384 : vector<4x16xf32>
    %1386 = arith.addf %1356, %1385 : vector<4x16xf32>
    %c239 = arith.constant 239 : index
    %1387 = memref.load %arg2[%c239] : memref<294xf32, #tpu.memory_space<smem>>
    %1388 = vector.extract_strided_slice %61 {offsets = [6, 0], sizes = [16, 16], strides = [1, 1]} : vector<22x16xf32> to vector<16x16xf32>
    %1389 = vector.broadcast %1387 : f32 to vector<16x16xf32>
    %1390 = arith.mulf %1389, %1388 : vector<16x16xf32>
    %c288 = arith.constant 288 : index
    %1391 = memref.load %arg2[%c288] : memref<294xf32, #tpu.memory_space<smem>>
    %1392 = vector.extract_strided_slice %68 {offsets = [6, 0], sizes = [16, 16], strides = [1, 1]} : vector<22x16xf32> to vector<16x16xf32>
    %1393 = vector.broadcast %1391 : f32 to vector<16x16xf32>
    %1394 = arith.mulf %1393, %1392 : vector<16x16xf32>
    %1395 = arith.addf %1390, %1394 : vector<16x16xf32>
    %1396 = arith.addf %1366, %1395 : vector<16x16xf32>
    %c44 = arith.constant 44 : index
    %1397 = memref.load %arg2[%c44] : memref<294xf32, #tpu.memory_space<smem>>
    %1398 = vector.extract_strided_slice %34 {offsets = [6, 0], sizes = [4, 16], strides = [1, 1]} : vector<10x16xf32> to vector<4x16xf32>
    %1399 = vector.broadcast %1397 : f32 to vector<4x16xf32>
    %1400 = arith.mulf %1399, %1398 : vector<4x16xf32>
    %c93 = arith.constant 93 : index
    %1401 = memref.load %arg2[%c93] : memref<294xf32, #tpu.memory_space<smem>>
    %1402 = vector.extract_strided_slice %41 {offsets = [6, 0], sizes = [4, 16], strides = [1, 1]} : vector<10x16xf32> to vector<4x16xf32>
    %1403 = vector.broadcast %1401 : f32 to vector<4x16xf32>
    %1404 = arith.mulf %1403, %1402 : vector<4x16xf32>
    %1405 = arith.addf %1400, %1404 : vector<4x16xf32>
    %1406 = arith.addf %1376, %1405 : vector<4x16xf32>
    %c142 = arith.constant 142 : index
    %1407 = memref.load %arg2[%c142] : memref<294xf32, #tpu.memory_space<smem>>
    %1408 = vector.extract_strided_slice %52 {offsets = [2, 0], sizes = [4, 16], strides = [1, 1]} : vector<10x16xf32> to vector<4x16xf32>
    %1409 = vector.broadcast %1407 : f32 to vector<4x16xf32>
    %1410 = arith.mulf %1409, %1408 : vector<4x16xf32>
    %c191 = arith.constant 191 : index
    %1411 = memref.load %arg2[%c191] : memref<294xf32, #tpu.memory_space<smem>>
    %1412 = vector.extract_strided_slice %59 {offsets = [2, 0], sizes = [4, 16], strides = [1, 1]} : vector<10x16xf32> to vector<4x16xf32>
    %1413 = vector.broadcast %1411 : f32 to vector<4x16xf32>
    %1414 = arith.mulf %1413, %1412 : vector<4x16xf32>
    %1415 = arith.addf %1410, %1414 : vector<4x16xf32>
    %1416 = arith.addf %1386, %1415 : vector<4x16xf32>
    %c240 = arith.constant 240 : index
    %1417 = memref.load %arg2[%c240] : memref<294xf32, #tpu.memory_space<smem>>
    %1418 = vector.extract_strided_slice %62 {offsets = [6, 0], sizes = [16, 16], strides = [1, 1]} : vector<22x16xf32> to vector<16x16xf32>
    %1419 = vector.broadcast %1417 : f32 to vector<16x16xf32>
    %1420 = arith.mulf %1419, %1418 : vector<16x16xf32>
    %c289 = arith.constant 289 : index
    %1421 = memref.load %arg2[%c289] : memref<294xf32, #tpu.memory_space<smem>>
    %1422 = vector.extract_strided_slice %69 {offsets = [6, 0], sizes = [16, 16], strides = [1, 1]} : vector<22x16xf32> to vector<16x16xf32>
    %1423 = vector.broadcast %1421 : f32 to vector<16x16xf32>
    %1424 = arith.mulf %1423, %1422 : vector<16x16xf32>
    %1425 = arith.addf %1420, %1424 : vector<16x16xf32>
    %1426 = arith.addf %1396, %1425 : vector<16x16xf32>
    %c45 = arith.constant 45 : index
    %1427 = memref.load %arg2[%c45] : memref<294xf32, #tpu.memory_space<smem>>
    %1428 = vector.extract_strided_slice %35 {offsets = [6, 0], sizes = [4, 16], strides = [1, 1]} : vector<10x16xf32> to vector<4x16xf32>
    %1429 = vector.broadcast %1427 : f32 to vector<4x16xf32>
    %1430 = arith.mulf %1429, %1428 : vector<4x16xf32>
    %c94 = arith.constant 94 : index
    %1431 = memref.load %arg2[%c94] : memref<294xf32, #tpu.memory_space<smem>>
    %1432 = vector.extract_strided_slice %42 {offsets = [6, 0], sizes = [4, 16], strides = [1, 1]} : vector<10x16xf32> to vector<4x16xf32>
    %1433 = vector.broadcast %1431 : f32 to vector<4x16xf32>
    %1434 = arith.mulf %1433, %1432 : vector<4x16xf32>
    %1435 = arith.addf %1430, %1434 : vector<4x16xf32>
    %1436 = arith.addf %1406, %1435 : vector<4x16xf32>
    %c143 = arith.constant 143 : index
    %1437 = memref.load %arg2[%c143] : memref<294xf32, #tpu.memory_space<smem>>
    %1438 = vector.extract_strided_slice %52 {offsets = [3, 0], sizes = [4, 16], strides = [1, 1]} : vector<10x16xf32> to vector<4x16xf32>
    %1439 = vector.broadcast %1437 : f32 to vector<4x16xf32>
    %1440 = arith.mulf %1439, %1438 : vector<4x16xf32>
    %c192 = arith.constant 192 : index
    %1441 = memref.load %arg2[%c192] : memref<294xf32, #tpu.memory_space<smem>>
    %1442 = vector.extract_strided_slice %59 {offsets = [3, 0], sizes = [4, 16], strides = [1, 1]} : vector<10x16xf32> to vector<4x16xf32>
    %1443 = vector.broadcast %1441 : f32 to vector<4x16xf32>
    %1444 = arith.mulf %1443, %1442 : vector<4x16xf32>
    %1445 = arith.addf %1440, %1444 : vector<4x16xf32>
    %1446 = arith.addf %1416, %1445 : vector<4x16xf32>
    %c241 = arith.constant 241 : index
    %1447 = memref.load %arg2[%c241] : memref<294xf32, #tpu.memory_space<smem>>
    %1448 = vector.extract_strided_slice %63 {offsets = [6, 0], sizes = [16, 16], strides = [1, 1]} : vector<22x16xf32> to vector<16x16xf32>
    %1449 = vector.broadcast %1447 : f32 to vector<16x16xf32>
    %1450 = arith.mulf %1449, %1448 : vector<16x16xf32>
    %c290 = arith.constant 290 : index
    %1451 = memref.load %arg2[%c290] : memref<294xf32, #tpu.memory_space<smem>>
    %1452 = vector.extract_strided_slice %70 {offsets = [6, 0], sizes = [16, 16], strides = [1, 1]} : vector<22x16xf32> to vector<16x16xf32>
    %1453 = vector.broadcast %1451 : f32 to vector<16x16xf32>
    %1454 = arith.mulf %1453, %1452 : vector<16x16xf32>
    %1455 = arith.addf %1450, %1454 : vector<16x16xf32>
    %1456 = arith.addf %1426, %1455 : vector<16x16xf32>
    %c46 = arith.constant 46 : index
    %1457 = memref.load %arg2[%c46] : memref<294xf32, #tpu.memory_space<smem>>
    %1458 = vector.extract_strided_slice %36 {offsets = [6, 0], sizes = [4, 16], strides = [1, 1]} : vector<10x16xf32> to vector<4x16xf32>
    %1459 = vector.broadcast %1457 : f32 to vector<4x16xf32>
    %1460 = arith.mulf %1459, %1458 : vector<4x16xf32>
    %c95 = arith.constant 95 : index
    %1461 = memref.load %arg2[%c95] : memref<294xf32, #tpu.memory_space<smem>>
    %1462 = vector.extract_strided_slice %43 {offsets = [6, 0], sizes = [4, 16], strides = [1, 1]} : vector<10x16xf32> to vector<4x16xf32>
    %1463 = vector.broadcast %1461 : f32 to vector<4x16xf32>
    %1464 = arith.mulf %1463, %1462 : vector<4x16xf32>
    %1465 = arith.addf %1460, %1464 : vector<4x16xf32>
    %1466 = arith.addf %1436, %1465 : vector<4x16xf32>
    %c144 = arith.constant 144 : index
    %1467 = memref.load %arg2[%c144] : memref<294xf32, #tpu.memory_space<smem>>
    %1468 = vector.extract_strided_slice %52 {offsets = [4, 0], sizes = [4, 16], strides = [1, 1]} : vector<10x16xf32> to vector<4x16xf32>
    %1469 = vector.broadcast %1467 : f32 to vector<4x16xf32>
    %1470 = arith.mulf %1469, %1468 : vector<4x16xf32>
    %c193 = arith.constant 193 : index
    %1471 = memref.load %arg2[%c193] : memref<294xf32, #tpu.memory_space<smem>>
    %1472 = vector.extract_strided_slice %59 {offsets = [4, 0], sizes = [4, 16], strides = [1, 1]} : vector<10x16xf32> to vector<4x16xf32>
    %1473 = vector.broadcast %1471 : f32 to vector<4x16xf32>
    %1474 = arith.mulf %1473, %1472 : vector<4x16xf32>
    %1475 = arith.addf %1470, %1474 : vector<4x16xf32>
    %1476 = arith.addf %1446, %1475 : vector<4x16xf32>
    %c242 = arith.constant 242 : index
    %1477 = memref.load %arg2[%c242] : memref<294xf32, #tpu.memory_space<smem>>
    %1478 = vector.extract_strided_slice %64 {offsets = [6, 0], sizes = [16, 16], strides = [1, 1]} : vector<22x16xf32> to vector<16x16xf32>
    %1479 = vector.broadcast %1477 : f32 to vector<16x16xf32>
    %1480 = arith.mulf %1479, %1478 : vector<16x16xf32>
    %c291 = arith.constant 291 : index
    %1481 = memref.load %arg2[%c291] : memref<294xf32, #tpu.memory_space<smem>>
    %1482 = vector.extract_strided_slice %71 {offsets = [6, 0], sizes = [16, 16], strides = [1, 1]} : vector<22x16xf32> to vector<16x16xf32>
    %1483 = vector.broadcast %1481 : f32 to vector<16x16xf32>
    %1484 = arith.mulf %1483, %1482 : vector<16x16xf32>
    %1485 = arith.addf %1480, %1484 : vector<16x16xf32>
    %1486 = arith.addf %1456, %1485 : vector<16x16xf32>
    %c47 = arith.constant 47 : index
    %1487 = memref.load %arg2[%c47] : memref<294xf32, #tpu.memory_space<smem>>
    %1488 = vector.extract_strided_slice %37 {offsets = [6, 0], sizes = [4, 16], strides = [1, 1]} : vector<10x16xf32> to vector<4x16xf32>
    %1489 = vector.broadcast %1487 : f32 to vector<4x16xf32>
    %1490 = arith.mulf %1489, %1488 : vector<4x16xf32>
    %c96 = arith.constant 96 : index
    %1491 = memref.load %arg2[%c96] : memref<294xf32, #tpu.memory_space<smem>>
    %1492 = vector.extract_strided_slice %44 {offsets = [6, 0], sizes = [4, 16], strides = [1, 1]} : vector<10x16xf32> to vector<4x16xf32>
    %1493 = vector.broadcast %1491 : f32 to vector<4x16xf32>
    %1494 = arith.mulf %1493, %1492 : vector<4x16xf32>
    %1495 = arith.addf %1490, %1494 : vector<4x16xf32>
    %1496 = arith.addf %1466, %1495 : vector<4x16xf32>
    %c145 = arith.constant 145 : index
    %1497 = memref.load %arg2[%c145] : memref<294xf32, #tpu.memory_space<smem>>
    %1498 = vector.extract_strided_slice %52 {offsets = [5, 0], sizes = [4, 16], strides = [1, 1]} : vector<10x16xf32> to vector<4x16xf32>
    %1499 = vector.broadcast %1497 : f32 to vector<4x16xf32>
    %1500 = arith.mulf %1499, %1498 : vector<4x16xf32>
    %c194 = arith.constant 194 : index
    %1501 = memref.load %arg2[%c194] : memref<294xf32, #tpu.memory_space<smem>>
    %1502 = vector.extract_strided_slice %59 {offsets = [5, 0], sizes = [4, 16], strides = [1, 1]} : vector<10x16xf32> to vector<4x16xf32>
    %1503 = vector.broadcast %1501 : f32 to vector<4x16xf32>
    %1504 = arith.mulf %1503, %1502 : vector<4x16xf32>
    %1505 = arith.addf %1500, %1504 : vector<4x16xf32>
    %1506 = arith.addf %1476, %1505 : vector<4x16xf32>
    %c243 = arith.constant 243 : index
    %1507 = memref.load %arg2[%c243] : memref<294xf32, #tpu.memory_space<smem>>
    %1508 = vector.extract_strided_slice %65 {offsets = [6, 0], sizes = [16, 16], strides = [1, 1]} : vector<22x16xf32> to vector<16x16xf32>
    %1509 = vector.broadcast %1507 : f32 to vector<16x16xf32>
    %1510 = arith.mulf %1509, %1508 : vector<16x16xf32>
    %c292 = arith.constant 292 : index
    %1511 = memref.load %arg2[%c292] : memref<294xf32, #tpu.memory_space<smem>>
    %1512 = vector.extract_strided_slice %72 {offsets = [6, 0], sizes = [16, 16], strides = [1, 1]} : vector<22x16xf32> to vector<16x16xf32>
    %1513 = vector.broadcast %1511 : f32 to vector<16x16xf32>
    %1514 = arith.mulf %1513, %1512 : vector<16x16xf32>
    %1515 = arith.addf %1510, %1514 : vector<16x16xf32>
    %1516 = arith.addf %1486, %1515 : vector<16x16xf32>
    %c48 = arith.constant 48 : index
    %1517 = memref.load %arg2[%c48] : memref<294xf32, #tpu.memory_space<smem>>
    %1518 = vector.extract_strided_slice %38 {offsets = [6, 0], sizes = [4, 16], strides = [1, 1]} : vector<10x16xf32> to vector<4x16xf32>
    %1519 = vector.broadcast %1517 : f32 to vector<4x16xf32>
    %1520 = arith.mulf %1519, %1518 : vector<4x16xf32>
    %c97 = arith.constant 97 : index
    %1521 = memref.load %arg2[%c97] : memref<294xf32, #tpu.memory_space<smem>>
    %1522 = vector.extract_strided_slice %45 {offsets = [6, 0], sizes = [4, 16], strides = [1, 1]} : vector<10x16xf32> to vector<4x16xf32>
    %1523 = vector.broadcast %1521 : f32 to vector<4x16xf32>
    %1524 = arith.mulf %1523, %1522 : vector<4x16xf32>
    %1525 = arith.addf %1520, %1524 : vector<4x16xf32>
    %1526 = arith.addf %1496, %1525 : vector<4x16xf32>
    %c146 = arith.constant 146 : index
    %1527 = memref.load %arg2[%c146] : memref<294xf32, #tpu.memory_space<smem>>
    %1528 = vector.extract_strided_slice %52 {offsets = [6, 0], sizes = [4, 16], strides = [1, 1]} : vector<10x16xf32> to vector<4x16xf32>
    %1529 = vector.broadcast %1527 : f32 to vector<4x16xf32>
    %1530 = arith.mulf %1529, %1528 : vector<4x16xf32>
    %c195 = arith.constant 195 : index
    %1531 = memref.load %arg2[%c195] : memref<294xf32, #tpu.memory_space<smem>>
    %1532 = vector.extract_strided_slice %59 {offsets = [6, 0], sizes = [4, 16], strides = [1, 1]} : vector<10x16xf32> to vector<4x16xf32>
    %1533 = vector.broadcast %1531 : f32 to vector<4x16xf32>
    %1534 = arith.mulf %1533, %1532 : vector<4x16xf32>
    %1535 = arith.addf %1530, %1534 : vector<4x16xf32>
    %1536 = arith.addf %1506, %1535 : vector<4x16xf32>
    %c244 = arith.constant 244 : index
    %1537 = memref.load %arg2[%c244] : memref<294xf32, #tpu.memory_space<smem>>
    %1538 = vector.extract_strided_slice %66 {offsets = [6, 0], sizes = [16, 16], strides = [1, 1]} : vector<22x16xf32> to vector<16x16xf32>
    %1539 = vector.broadcast %1537 : f32 to vector<16x16xf32>
    %1540 = arith.mulf %1539, %1538 : vector<16x16xf32>
    %c293 = arith.constant 293 : index
    %1541 = memref.load %arg2[%c293] : memref<294xf32, #tpu.memory_space<smem>>
    %1542 = vector.extract_strided_slice %73 {offsets = [6, 0], sizes = [16, 16], strides = [1, 1]} : vector<22x16xf32> to vector<16x16xf32>
    %1543 = vector.broadcast %1541 : f32 to vector<16x16xf32>
    %1544 = arith.mulf %1543, %1542 : vector<16x16xf32>
    %1545 = arith.addf %1540, %1544 : vector<16x16xf32>
    %1546 = arith.addf %1516, %1545 : vector<16x16xf32>
    %c0_129 = arith.constant 0 : index
    %1547 = memref.load %arg3[%c0_129] : memref<6xf32, #tpu.memory_space<smem>>
    %1548 = vector.broadcast %1547 : f32 to vector<4x16xf32>
    %1549 = arith.mulf %1526, %1548 : vector<4x16xf32>
    %c1_130 = arith.constant 1 : index
    %1550 = memref.load %arg3[%c1_130] : memref<6xf32, #tpu.memory_space<smem>>
    %1551 = vector.broadcast %1550 : f32 to vector<4x16xf32>
    %1552 = arith.addf %1549, %1551 : vector<4x16xf32>
    %1553 = arith.negf %1552 : vector<4x16xf32>
    %1554 = math.exp %1553 : vector<4x16xf32>
    %cst_131 = arith.constant 1.000000e+00 : f32
    %1555 = vector.broadcast %cst_131 : f32 to vector<4x16xf32>
    %1556 = arith.addf %1555, %1554 : vector<4x16xf32>
    %1557 = arith.divf %1555, %1556 : vector<4x16xf32>
    %c2_132 = arith.constant 2 : index
    %1558 = memref.load %arg3[%c2_132] : memref<6xf32, #tpu.memory_space<smem>>
    %1559 = vector.broadcast %1558 : f32 to vector<4x16xf32>
    %1560 = arith.mulf %1536, %1559 : vector<4x16xf32>
    %c3_133 = arith.constant 3 : index
    %1561 = memref.load %arg3[%c3_133] : memref<6xf32, #tpu.memory_space<smem>>
    %1562 = vector.broadcast %1561 : f32 to vector<4x16xf32>
    %1563 = arith.addf %1560, %1562 : vector<4x16xf32>
    %1564 = arith.negf %1563 : vector<4x16xf32>
    %1565 = math.exp %1564 : vector<4x16xf32>
    %cst_134 = arith.constant 1.000000e+00 : f32
    %1566 = vector.broadcast %cst_134 : f32 to vector<4x16xf32>
    %1567 = arith.addf %1566, %1565 : vector<4x16xf32>
    %1568 = arith.divf %1566, %1567 : vector<4x16xf32>
    %c4_135 = arith.constant 4 : index
    %1569 = memref.load %arg3[%c4_135] : memref<6xf32, #tpu.memory_space<smem>>
    %1570 = vector.broadcast %1569 : f32 to vector<16x16xf32>
    %1571 = arith.mulf %1546, %1570 : vector<16x16xf32>
    %c5_136 = arith.constant 5 : index
    %1572 = memref.load %arg3[%c5_136] : memref<6xf32, #tpu.memory_space<smem>>
    %1573 = vector.broadcast %1572 : f32 to vector<16x16xf32>
    %1574 = arith.addf %1571, %1573 : vector<16x16xf32>
    %1575 = arith.negf %1574 : vector<16x16xf32>
    %1576 = math.exp %1575 : vector<16x16xf32>
    %cst_137 = arith.constant 1.000000e+00 : f32
    %1577 = vector.broadcast %cst_137 : f32 to vector<16x16xf32>
    %1578 = arith.addf %1577, %1576 : vector<16x16xf32>
    %1579 = arith.divf %1577, %1578 : vector<16x16xf32>
    %1580 = vector.shape_cast %1557 : vector<4x16xf32> to vector<4x1x16xf32>
    %1581 = vector.shape_cast %1568 : vector<4x16xf32> to vector<4x16x1xf32>
    %1582 = vector.broadcast %1580 : vector<4x1x16xf32> to vector<4x16x16xf32>
    %1583 = vector.broadcast %1581 : vector<4x16x1xf32> to vector<4x16x16xf32>
    %1584 = arith.addf %1582, %1583 : vector<4x16x16xf32>
    %1585 = vector.shape_cast %1579 : vector<16x16xf32> to vector<1x16x16xf32>
    %1586 = vector.broadcast %1585 : vector<1x16x16xf32> to vector<4x16x16xf32>
    %1587 = arith.addf %1584, %1586 : vector<4x16x16xf32>
    %cst_138 = arith.constant 0.333333343 : f32
    %1588 = vector.broadcast %cst_138 : f32 to vector<4x16x16xf32>
    %1589 = arith.mulf %1587, %1588 : vector<4x16x16xf32>
    %1590 = arith.mulf %1, %1589 : vector<4x16x16xf32>
    %c0_139 = arith.constant 0 : index
    %c0_140 = arith.constant 0 : index
    %c0_141 = arith.constant 0 : index
    %c0_142 = arith.constant 0 : index
    %1591 = vector.load %arg4[%c0_139, %c0_140, %c0_141, %c0_142] : memref<1x4x16x16xf32, #tpu.memory_space<vmem>>, vector<1x4x16x16xf32>
    %1592 = vector.shape_cast %1591 : vector<1x4x16x16xf32> to vector<4x16x16xf32>
    %1593 = vector.shape_cast %1590 : vector<4x16x16xf32> to vector<1x4x16x16xf32>
    tpu.vector_store %arg4[%c0_139, %c0_140, %c0_141, %c0_142], %1593 {strides = array<i32>} : memref<1x4x16x16xf32, #tpu.memory_space<vmem>>, vector<1x4x16x16xf32>,
    return
  }
  func.func @transform_0(%arg0: i32) -> (i32, i32, i32, i32) {
    %c0_i32 = arith.constant 0 : i32
    %c0_i32_0 = arith.constant 0 : i32
    %c0_i32_1 = arith.constant 0 : i32
    %c0_i32_2 = arith.constant 0 : i32
    return %arg0, %c0_i32, %c0_i32_0, %c0_i32_1 : i32, i32, i32, i32
  }
  func.func @transform_1(%arg0: i32) -> i32 {
    %c0_i32 = arith.constant 0 : i32
    %c0_i32_0 = arith.constant 0 : i32
    return %c0_i32 : i32
  }
  func.func @transform_2(%arg0: i32) -> i32 {
    %c0_i32 = arith.constant 0 : i32
    %c0_i32_0 = arith.constant 0 : i32
    return %c0_i32 : i32
  }
  func.func @transform_3(%arg0: i32) -> (i32, i32, i32, i32) {
    %c0_i32 = arith.constant 0 : i32
    %c0_i32_0 = arith.constant 0 : i32
    %c0_i32_1 = arith.constant 0 : i32
    %c0_i32_2 = arith.constant 0 : i32
    return %arg0, %c0_i32, %c0_i32_0, %c0_i32_1 : i32, i32, i32, i32
  }
}

</mosaic_0001>

<llo_original>
// kernel: tpu_custom_call.1
$region0: #{tpu_custom_call.1}
  #allocation0 [shape = 'u32[]', space=smem, size = 0x4, offset = 0x4, fixed_abs, tag = 'smem constant byte address 0x4 - core index']
  #allocation1 [shape = 'u32[72,128]{1,0:T(1,128)}', space=vmem, size = 0x9000, scoped, tag = 'internal scratch']
  #allocation2 [shape = 'f32[10,22]{1,0:T(8,128)}', space=vmem, size = 0x2000, scoped, tag = 'scratch operand']
  #allocation3 [shape = 'f32[10,22]{1,0:T(8,128)}', space=vmem, size = 0x2000, scoped, tag = 'scratch operand']
  #allocation4 [shape = 'f32[10,22]{1,0:T(8,128)}', space=vmem, size = 0x2000, scoped, tag = 'scratch operand']
  #allocation5 [shape = 'f32[10,22]{1,0:T(8,128)}', space=vmem, size = 0x2000, scoped, tag = 'scratch operand']
  #allocation6 [shape = 'f32[22,22]{1,0:T(8,128)}', space=vmem, size = 0x3000, scoped, tag = 'scratch operand']
  #allocation7 [shape = 'f32[22,22]{1,0:T(8,128)}', space=vmem, size = 0x3000, scoped, tag = 'scratch operand']
  %s0 = inlined_call_operand.hbm [shape: f32[2,4,16,16], index: 0, kind: input, shape index: {}]
  %s1 = inlined_call_operand.hbm [shape: f32[294], index: 1, kind: input, shape index: {}]
  %s2 = inlined_call_operand.vmem [shape: f32[6], index: 2, kind: input, shape index: {}]
  %s3 = inlined_call_operand.hbm [shape: f32[2,4,16,16], index: 3, kind: output, shape index: {}]
  %s4 = sld [smem:[#allocation0]]
  $region57: #{tpu_custom_call.1} parent=0
    _
  %s6 = ssub.s32 1, %s4
  %s7 = scalar_select 0, %s6, %s4
  $region1: #{tpu_custom_call.1} parent=0
    #allocation8 [shape = 'u8[65536]{0}', space=vmem, size = 0x10000, scoped, tag = 'input window, operand 0']
    #allocation9 [shape = 's32[2]{0}', space=sflag, size = 0x8, scoped, tag = 'scoped memory for tpu_custom_call.1']
    #allocation10 [shape = 's32[2]{0}', space=sflag, size = 0x8, scoped, tag = 'scoped memory for tpu_custom_call.1']
    #allocation11 [shape = 's32[2]{0}', space=sflag, size = 0x8, scoped, tag = 'scoped memory for tpu_custom_call.1']
    #allocation12 [shape = 's32[2]{0}', space=sflag, size = 0x8, scoped, tag = 'scoped memory for tpu_custom_call.1']
    #allocation13 [shape = 'u8[1536]{0}', space=smem, size = 0x600, scoped, tag = 'input window, operand 1, single buffered']
    #allocation14 [shape = 'u8[512]{0}', space=smem, size = 0x200, scoped, tag = 'input window, operand 2, single buffered']
    #allocation15 [shape = 'u8[65536]{0}', space=vmem, size = 0x10000, scoped, tag = 'output window, operand 0']
    %8 = vsyncpa [#allocation9], 0
    %s9 = scalar_lea.sflag [#allocation9], 1
    %10 = vsyncpa %s9, 0
    %11 = vsyncpa [#allocation11], 0
    %12 = vsyncpa [#allocation12], 0
    %13 = vsyncpa [#allocation10], 0
    %s14 = scalar_lea.sflag [#allocation10], 1
    %15 = vsyncpa %s14, 0
    loop: start=0, step=1, limit=4
    $region2: #{tpu_custom_call.1} parent=1 // loop_pre_header
      _
    $region3: #{tpu_custom_call.1} parent=1 // loop_header
      %s17 = sphi 0, %s21
      %p18 = scmp.ge.s32.totalorder %s17, 4
      %s27 = sphi 0, %s29
      %s30 = sphi 0, %s27
      %s31 = sphi 0, %s30
      %s47 = sphi 0, %s31
      %s51 = sphi 0, %s51
      %s53 = sphi 0, %s51
      %s54 = sphi 0, %s53
      %s68 = sphi 0, %s54
      %s72 = sphi 0, %s72
      %s74 = sphi 0, %s72
      %s75 = sphi 0, %s74
      %s89 = sphi 0, %s75
      %s95 = sphi 0, %s97
      %s98 = sphi 0, %s95
      %s99 = sphi 0, %s98
      %s115 = sphi 0, %s99
    $region4: #{tpu_custom_call.1} parent=1 // loop_header_branch
      %20 = sbr.rel (%p18) target = $region8
    $region5: #{tpu_custom_call.1} parent=1 // loop_body
      %s22 = ssub.s32 %s17, 1
      %s23 = ssub.s32 %s17, 2
      %s24 = sadd.s32 %s17, 1
      %s25 = ssub.s32 %s17, %s24
      %p26 = scmp.eq.s32.totalorder %s25, 0
      %s28 = sadd.s32 %s27, 1
      %s29 = scalar_select %p26, %s27, %s28
      %p32 = pneg %p26
      %p33 = scmp.eq.s32.totalorder %s17, 1
      %p34 = por %p32, %p33
      %p35 = scmp.ne.s32.totalorder %s27, %s30
      %p36 = scmp.eq.s32.totalorder %s17, 0
      %p37 = por %p35, %p36
      %p38 = scmp.ne.s32.totalorder %s27, %s30
      %p39 = scmp.eq.s32.totalorder %s22, 1
      %p40 = por %p38, %p39
      %p41 = scmp.ne.s32.totalorder %s30, %s31
      %p42 = scmp.eq.s32.totalorder %s22, 0
      %p43 = por %p41, %p42
      %p44 = scmp.ne.s32.totalorder %s30, %s31
      %p45 = scmp.eq.s32.totalorder %s23, 1
      %p46 = por %p44, %p45
      %p48 = scmp.ne.s32.totalorder %s31, %s47
      %p49 = scmp.eq.s32.totalorder %s23, 0
      %p50 = por %p48, %p49
      %s52 = sadd.s32 %s51, 1
      %p55 = scmp.eq.s32.totalorder %s17, 1
      %p56 = scmp.ne.s32.totalorder %s51, %s53
      %p57 = scmp.eq.s32.totalorder %s17, 0
      %p58 = por %p56, %p57
      %p59 = scmp.ne.s32.totalorder %s51, %s53
      %p60 = scmp.eq.s32.totalorder %s22, 1
      %p61 = por %p59, %p60
      %p62 = scmp.ne.s32.totalorder %s53, %s54
      %p63 = scmp.eq.s32.totalorder %s22, 0
      %p64 = por %p62, %p63
      %p65 = scmp.ne.s32.totalorder %s53, %s54
      %p66 = scmp.eq.s32.totalorder %s23, 1
      %p67 = por %p65, %p66
      %p69 = scmp.ne.s32.totalorder %s54, %s68
      %p70 = scmp.eq.s32.totalorder %s23, 0
      %p71 = por %p69, %p70
      %s73 = sadd.s32 %s72, 1
      %p76 = scmp.eq.s32.totalorder %s17, 1
      %p77 = scmp.ne.s32.totalorder %s72, %s74
      %p78 = scmp.eq.s32.totalorder %s17, 0
      %p79 = por %p77, %p78
      %p80 = scmp.ne.s32.totalorder %s72, %s74
      %p81 = scmp.eq.s32.totalorder %s22, 1
      %p82 = por %p80, %p81
      %p83 = scmp.ne.s32.totalorder %s74, %s75
      %p84 = scmp.eq.s32.totalorder %s22, 0
      %p85 = por %p83, %p84
      %p86 = scmp.ne.s32.totalorder %s74, %s75
      %p87 = scmp.eq.s32.totalorder %s23, 1
      %p88 = por %p86, %p87
      %p90 = scmp.ne.s32.totalorder %s75, %s89
      %p91 = scmp.eq.s32.totalorder %s23, 0
      %p92 = por %p90, %p91
      %s93 = ssub.s32 %s17, %s24
      %p94 = scmp.eq.s32.totalorder %s93, 0
      %s96 = sadd.s32 %s95, 1
      %s97 = scalar_select %p94, %s95, %s96
      %p100 = pneg %p94
      %p101 = scmp.eq.s32.totalorder %s17, 1
      %p102 = por %p100, %p101
      %p103 = scmp.ne.s32.totalorder %s95, %s98
      %p104 = scmp.eq.s32.totalorder %s17, 0
      %p105 = por %p103, %p104
      %p106 = scmp.ne.s32.totalorder %s95, %s98
      %p107 = scmp.eq.s32.totalorder %s22, 1
      %p108 = por %p106, %p107
      %p109 = scmp.ne.s32.totalorder %s98, %s99
      %p110 = scmp.eq.s32.totalorder %s22, 0
      %p111 = por %p109, %p110
      %p112 = scmp.ne.s32.totalorder %s98, %s99
      %p113 = scmp.eq.s32.totalorder %s23, 1
      %p114 = por %p112, %p113
      %p116 = scmp.ne.s32.totalorder %s99, %s115
      %p117 = scmp.eq.s32.totalorder %s23, 0
      %p118 = por %p116, %p117
      %p119 = scmp.le.s32.totalorder 1, %s17
      %p120 = scmp.lt.s32.totalorder %s17, 3
      %p121 = pnand %p119, %p120
      %p122 = pneg %p121
      // Predicated region
      $region9: #{tpu_custom_call.1} parent=5 // pred_check
        _
      $region10: #{tpu_custom_call.1} parent=5 // pred_check_branch
        %124 = sbr.rel (%p121) target = $region12
      $region11: #{tpu_custom_call.1} parent=5 // pred_region
        %s125 = ssub.s32 %s17, 1
        // Predicated region
        $region13: #{tpu_custom_call.1} parent=11 // pred_check
          %p126 = pneg %p64
        $region14: #{tpu_custom_call.1} parent=11 // pred_check_branch
          %128 = sbr.rel (%p126) target = $region16
        $region15: #{tpu_custom_call.1} parent=11 // pred_region
          %130 = vsyncadd [#allocation11], 0
          %s132 = sshll.u32 %s1, 4
          %s133 = int_to_ptr.hbm [resolvable:$true] %s132
          %135 = dma.hbm_to_smem %s133, 48, [#allocation13], [#allocation11]
        $region16: #{tpu_custom_call.1} parent=11 // pred_fallthru
          _
        // Predicated region
        $region17: #{tpu_custom_call.1} parent=11 // pred_check
          %p136 = pneg %p85
        $region18: #{tpu_custom_call.1} parent=11 // pred_check_branch
          %138 = sbr.rel (%p136) target = $region20
        $region19: #{tpu_custom_call.1} parent=11 // pred_region
          %140 = vsyncadd [#allocation12], 0
          %s142 = sshll.u32 %s2, 4
          %s143 = int_to_ptr.vmem [resolvable:$true] %s142
          %145 = dma.vmem_to_smem %s143, 16, [#allocation14], [#allocation12]
        $region20: #{tpu_custom_call.1} parent=11 // pred_fallthru
          _
      $region12: #{tpu_custom_call.1} parent=5 // pred_fallthru
        _
      %p146 = scmp.lt.s32.totalorder %s17, 2
      // Predicated region
      $region21: #{tpu_custom_call.1} parent=5 // pred_check
        %p147 = pneg %p146
      $region22: #{tpu_custom_call.1} parent=5 // pred_check_branch
        %149 = sbr.rel (%p147) target = $region24
      $region23: #{tpu_custom_call.1} parent=5 // pred_region
        // Predicated region
        $region25: #{tpu_custom_call.1} parent=23 // pred_check
          %p150 = pneg %p37
        $region26: #{tpu_custom_call.1} parent=23 // pred_check_branch
          %152 = sbr.rel (%p150) target = $region28
        $region27: #{tpu_custom_call.1} parent=23 // pred_region
          %s153 = sand.u32 %s27, 1
          %s154 = scalar_lea.sflag [#allocation9], %s153
          %s155 = sand.u32 %s27, 1
          %s156 = smul.addr %s155, 64
          %s157 = scalar_lea.vmem [#allocation8], %s156
          %159 = vsyncadd %s154, 0
          %s160 = smul.addr %s17, 8
          %s161 = smul.addr %s160, 8
          %s162 = scalar_lea.hbm %s0, %s161
          %s163 = sshll.u32 %s162, 4
          %s164 = int_to_ptr.hbm [resolvable:$true] %s163
          %s165 = sshll.u32 %s157, 4
          %s166 = int_to_ptr.vmem [resolvable:$true] %s165
          %171 = dma.hbm_to_vmem [thread:$0]  %s164, 1024, %s166, %s154, 128, 128, 8
        $region28: #{tpu_custom_call.1} parent=23 // pred_fallthru
          _
      $region24: #{tpu_custom_call.1} parent=5 // pred_fallthru
        _
      %p172 = scmp.le.s32.totalorder 1, %s17
      %p173 = scmp.lt.s32.totalorder %s17, 3
      %p174 = pnand %p172, %p173
      %p175 = pneg %p174
      // Predicated region
      $region29: #{tpu_custom_call.1} parent=5 // pred_check
        _
      $region30: #{tpu_custom_call.1} parent=5 // pred_check_branch
        %177 = sbr.rel (%p174) target = $region32
      $region31: #{tpu_custom_call.1} parent=5 // pred_region
        %s178 = ssub.s32 %s17, 1
        %s179 = sand.u32 %s30, 1
        %s180 = scalar_lea.sflag [#allocation9], %s179
        %s181 = sand.u32 %s30, 1
        %s182 = smul.addr %s181, 64
        %s183 = scalar_lea.vmem [#allocation8], %s182
        // Predicated region
        $region33: #{tpu_custom_call.1} parent=31 // pred_check
          %p184 = pneg %p43
        $region34: #{tpu_custom_call.1} parent=31 // pred_check_branch
          %186 = sbr.rel (%p184) target = $region36
        $region35: #{tpu_custom_call.1} parent=31 // pred_region
          %188 = dma.done %s180, 1024
        $region36: #{tpu_custom_call.1} parent=31 // pred_fallthru
          _
        // Predicated region
        $region37: #{tpu_custom_call.1} parent=31 // pred_check
          %p189 = pneg %p64
        $region38: #{tpu_custom_call.1} parent=31 // pred_check_branch
          %191 = sbr.rel (%p189) target = $region40
        $region39: #{tpu_custom_call.1} parent=31 // pred_region
          %193 = dma.done [#allocation11], 48
        $region40: #{tpu_custom_call.1} parent=31 // pred_fallthru
          _
        // Predicated region
        $region41: #{tpu_custom_call.1} parent=31 // pred_check
          %p194 = pneg %p85
        $region42: #{tpu_custom_call.1} parent=31 // pred_check_branch
          %196 = sbr.rel (%p194) target = $region44
        $region43: #{tpu_custom_call.1} parent=31 // pred_region
          %198 = dma.done [#allocation12], 16
        $region44: #{tpu_custom_call.1} parent=31 // pred_fallthru
          _
        %199 = sfence
        %s200 = sand.u32 %s30, 1
        %s201 = scalar_lea.sflag [#allocation9], %s200
        %s202 = sand.u32 %s30, 1
        %s203 = smul.addr %s202, 64
        %s204 = scalar_lea.vmem [#allocation8], %s203
        %p205 = pneg %p43
        %p206 = pneg %p40
        %p207 = pneg %p64
        %p208 = pneg %p61
        %p209 = pneg %p85
        %p210 = pneg %p82
        %p211 = pneg %p111
        %p212 = pneg %p108
        %s213 = sand.u32 %s98, 1
        %s214 = scalar_lea.sflag [#allocation10], %s213
        %s215 = sand.u32 %s98, 1
        %s216 = smul.addr %s215, 64
        %s217 = scalar_lea.vmem [#allocation15], %s216
        %v218 = vld [vmem:[%s183] sm:$0xff]
        %v219 = vld [vmem:[%s183 + $0x8] sm:$0xff]
        %v220 = vld [vmem:[%s183 + $0x10] sm:$0xff]
        %v221 = vld [vmem:[%s183 + $0x18] sm:$0xff]
        %v222 = vld [vmem:[%s183 + $0x20] sm:$0xff]
        %v223 = vld [vmem:[%s183 + $0x28] sm:$0xff]
        %v224 = vld [vmem:[%s183 + $0x30] sm:$0xff]
        %v225 = vld [vmem:[%s183 + $0x38] sm:$0xff]
        %vm226 = vcmask 130048
        %v227 = vsel %vm226, %v218, -inf
        %v228 = vsel %vm226, %v219, -inf
        %v229 = vmax.f32 %v227, %v228
        %v230 = vrot.slane %v229, 4
        %v231 = vmax.f32 %v229, %v230
        %v232 = vrot.slane %v231, 2
        %v233 = vmax.f32 %v231, %v232
        %v234 = vrot.slane %v233, 1
        %v235 = vmax.f32 %v233, %v234
        %v236 = vsel %vm226, %v220, -inf
        %v237 = vsel %vm226, %v221, -inf
        %v238 = vmax.f32 %v236, %v237
        %v239 = vrot.slane %v238, 4
        %v240 = vmax.f32 %v238, %v239
        %v241 = vrot.slane %v240, 2
        %v242 = vmax.f32 %v240, %v241
        %v243 = vrot.slane %v242, 1
        %v244 = vmax.f32 %v242, %v243
        %v245 = vsel %vm226, %v222, -inf
        %v246 = vsel %vm226, %v223, -inf
        %v247 = vmax.f32 %v245, %v246
        %v248 = vrot.slane %v247, 4
        %v249 = vmax.f32 %v247, %v248
        %v250 = vrot.slane %v249, 2
        %v251 = vmax.f32 %v249, %v250
        %v252 = vrot.slane %v251, 1
        %v253 = vmax.f32 %v251, %v252
        %v254 = vsel %vm226, %v224, -inf
        %v255 = vsel %vm226, %v225, -inf
        %v256 = vmax.f32 %v254, %v255
        %v257 = vrot.slane %v256, 4
        %v258 = vmax.f32 %v256, %v257
        %v259 = vrot.slane %v258, 2
        %v260 = vmax.f32 %v258, %v259
        %v261 = vrot.slane %v260, 1
        %v262 = vmax.f32 %v260, %v261
        %v263 = vsel %vm226, %v218, 0.0
        %v264 = vsel %vm226, %v219, 0.0
        %v265 = vadd.f32 %v263, %v264
        %v266 = vrot.slane %v265, 4
        %v267 = vadd.f32 %v265, %v266
        %v268 = vrot.slane %v267, 2
        %v269 = vadd.f32 %v267, %v268
        %v270 = vrot.slane %v269, 1
        %v271 = vadd.f32 %v269, %v270
        %v272 = vsel %vm226, %v220, 0.0
        %v273 = vsel %vm226, %v221, 0.0
        %v274 = vadd.f32 %v272, %v273
        %v275 = vrot.slane %v274, 4
        %v276 = vadd.f32 %v274, %v275
        %v277 = vrot.slane %v276, 2
        %v278 = vadd.f32 %v276, %v277
        %v279 = vrot.slane %v278, 1
        %v280 = vadd.f32 %v278, %v279
        %v281 = vsel %vm226, %v222, 0.0
        %v282 = vsel %vm226, %v223, 0.0
        %v283 = vadd.f32 %v281, %v282
        %v284 = vrot.slane %v283, 4
        %v285 = vadd.f32 %v283, %v284
        %v286 = vrot.slane %v285, 2
        %v287 = vadd.f32 %v285, %v286
        %v288 = vrot.slane %v287, 1
        %v289 = vadd.f32 %v287, %v288
        %v290 = vsel %vm226, %v224, 0.0
        %v291 = vsel %vm226, %v225, 0.0
        %v292 = vadd.f32 %v290, %v291
        %v293 = vrot.slane %v292, 4
        %v294 = vadd.f32 %v292, %v293
        %v295 = vrot.slane %v294, 2
        %v296 = vadd.f32 %v294, %v295
        %v297 = vrot.slane %v296, 1
        %v298 = vadd.f32 %v296, %v297
        %v299 = vmul.f32 %v271, 0.0625
        %v300 = vmul.f32 %v280, 0.0625
        %v301 = vmul.f32 %v289, 0.0625
        %v302 = vmul.f32 %v298, 0.0625
        %303 = vmax.xlane.f32.xlu0 %v227
        %v304 = vpop.xlane.xlu0 %303
        %305 = vmax.xlane.f32.xlu0 %v228
        %v306 = vpop.xlane.xlu0 %305
        %307 = vmax.xlane.f32.xlu0 %v236
        %v308 = vpop.xlane.xlu0 %307
        %309 = vmax.xlane.f32.xlu0 %v237
        %v310 = vpop.xlane.xlu0 %309
        %311 = vmax.xlane.f32.xlu0 %v245
        %v312 = vpop.xlane.xlu0 %311
        %313 = vmax.xlane.f32.xlu0 %v246
        %v314 = vpop.xlane.xlu0 %313
        %315 = vmax.xlane.f32.xlu0 %v254
        %v316 = vpop.xlane.xlu0 %315
        %317 = vmax.xlane.f32.xlu0 %v255
        %v318 = vpop.xlane.xlu0 %317
        %319 = vadd.xlane.f32.xlu0 %v263
        %v320 = vpop.xlane.xlu0 %319
        %321 = vadd.xlane.f32.xlu0 %v264
        %v322 = vpop.xlane.xlu0 %321
        %323 = vadd.xlane.f32.xlu0 %v272
        %v324 = vpop.xlane.xlu0 %323
        %325 = vadd.xlane.f32.xlu0 %v273
        %v326 = vpop.xlane.xlu0 %325
        %327 = vadd.xlane.f32.xlu0 %v281
        %v328 = vpop.xlane.xlu0 %327
        %329 = vadd.xlane.f32.xlu0 %v282
        %v330 = vpop.xlane.xlu0 %329
        %331 = vadd.xlane.f32.xlu0 %v290
        %v332 = vpop.xlane.xlu0 %331
        %333 = vadd.xlane.f32.xlu0 %v291
        %v334 = vpop.xlane.xlu0 %333
        %v335 = vmul.f32 %v320, 0.0625
        %v336 = vmul.f32 %v322, 0.0625
        %v337 = vmul.f32 %v324, 0.0625
        %v338 = vmul.f32 %v326, 0.0625
        %v339 = vmul.f32 %v328, 0.0625
        %v340 = vmul.f32 %v330, 0.0625
        %v341 = vmul.f32 %v332, 0.0625
        %v342 = vmul.f32 %v334, 0.0625
        %v343 = vmax.f32 %v227, %v245
        %v344 = vmax.f32 %v236, %v254
        %v345 = vmax.f32 %v343, %v344
        %v346 = vmax.f32 %v228, %v246
        %v347 = vmax.f32 %v237, %v255
        %v348 = vmax.f32 %v346, %v347
        %v349 = vadd.f32 %v263, %v272
        %v350 = vadd.f32 %v349, %v281
        %v351 = vadd.f32 %v350, %v290
        %v352 = vadd.f32 %v264, %v273
        %v353 = vadd.f32 %v352, %v282
        %v354 = vadd.f32 %v353, %v291
        %v355 = vmul.f32 %v351, 0.25
        %v356 = vmul.f32 %v354, 0.25
        %vm357 = vcmask 179200
        %358 = vst.msk [vmem:[#allocation2] sm:$0xff] %vm357, 0.0
        %vm359 = vcmask 173056
        %360 = vst.msk [vmem:[#allocation2 + $0x8] sm:$0x3] %vm359, 0.0
        %361 = vst.msk [vmem:[#allocation3] sm:$0xff] %vm357, 0.0
        %362 = vst.msk [vmem:[#allocation3 + $0x8] sm:$0x3] %vm359, 0.0
        %363 = vst.msk [vmem:[#allocation4] sm:$0xff] %vm357, 0.0
        %364 = vst.msk [vmem:[#allocation4 + $0x8] sm:$0x3] %vm359, 0.0
        %365 = vst.msk [vmem:[#allocation5] sm:$0xff] %vm357, 0.0
        %366 = vst.msk [vmem:[#allocation5 + $0x8] sm:$0x3] %vm359, 0.0
        %367 = vst.msk [vmem:[#allocation6] sm:$0xff] %vm357, 0.0
        %368 = vst.msk [vmem:[#allocation6 + $0x8] sm:$0xff] %vm357, 0.0
        %vm369 = vcmask 177152
        %370 = vst.msk [vmem:[#allocation6 + $0x10] sm:$0x3f] %vm369, 0.0
        %371 = vst.msk [vmem:[#allocation7] sm:$0xff] %vm357, 0.0
        %372 = vst.msk [vmem:[#allocation7 + $0x8] sm:$0xff] %vm357, 0.0
        %373 = vst.msk [vmem:[#allocation7 + $0x10] sm:$0x3f] %vm369, 0.0
        %vm378 = vcmask 1041409
        %v379 = vsel %vm378, %v244, %v235
        %vm380 = vcmask 1042434
        %v381 = vsel %vm380, %v253, %v379
        %vm382 = vcmask 1043459
        %v383 = vsel %vm382, %v262, %v381
        %384 = vrot.lane.b32.xlu0 %v383, 3
        %v385 = vpop.permute.xlu0 %384
        %vm387 = vcmask 150552
        %388 = vst.msk [vmem:[#allocation2 + $0x3] sm:$0xf] %vm387, %v385
        %v393 = vsel %vm378, %v300, %v299
        %v394 = vsel %vm380, %v301, %v393
        %v395 = vsel %vm382, %v302, %v394
        %396 = vrot.lane.b32.xlu0 %v395, 3
        %v397 = vpop.permute.xlu0 %396
        %399 = vst.msk [vmem:[#allocation3 + $0x3] sm:$0xf] %vm387, %v397
        %v408 = vlaneseq
        %v409 = vand.u32 %v408, 127
        %v410 = vadd.s32 %v409, 4294967293
        %v411 = vperm.slane %v304, %v410
        %v412 = vadd.s32 %v409, 4294967285
        %v413 = vperm.slane %v306, %v412
        %vm414 = vcmask 154712
        %v415 = vsel %vm414, %v413, %v411
        %v416 = vperm.slane %v308, %v410
        %v417 = vperm.slane %v310, %v412
        %v418 = vsel %vm414, %v417, %v416
        %v419 = vperm.slane %v312, %v410
        %v420 = vperm.slane %v314, %v412
        %v421 = vsel %vm414, %v420, %v419
        %v422 = vperm.slane %v316, %v410
        %v423 = vperm.slane %v318, %v412
        %v424 = vsel %vm414, %v423, %v422
        %v425 = vsel %vm378, %v418, %v415
        %v426 = vsel %vm380, %v421, %v425
        %v427 = vsel %vm382, %v424, %v426
        %429 = vst.msk [vmem:[#allocation4 + $0x3] sm:$0xf] %vm387, %v427
        %v438 = vperm.slane %v335, %v410
        %v439 = vperm.slane %v336, %v412
        %v440 = vsel %vm414, %v439, %v438
        %v441 = vperm.slane %v337, %v410
        %v442 = vperm.slane %v338, %v412
        %v443 = vsel %vm414, %v442, %v441
        %v444 = vperm.slane %v339, %v410
        %v445 = vperm.slane %v340, %v412
        %v446 = vsel %vm414, %v445, %v444
        %v447 = vperm.slane %v341, %v410
        %v448 = vperm.slane %v342, %v412
        %v449 = vsel %vm414, %v448, %v447
        %v450 = vsel %vm378, %v443, %v440
        %v451 = vsel %vm380, %v446, %v450
        %v452 = vsel %vm382, %v449, %v451
        %454 = vst.msk [vmem:[#allocation5 + $0x3] sm:$0xf] %vm387, %v452
        %457 = vrot.lane.b32.xlu0 %v345, 3
        %v458 = vpop.permute.xlu0 %457
        %459 = vrot.lane.b32.xlu0 %v348, 3
        %v460 = vpop.permute.xlu0 %459
        %vm463 = vcmask 154648
        %464 = vst.msk [vmem:[#allocation6 + $0x3] sm:$0xff] %vm463, %v458
        %465 = vst.msk [vmem:[#allocation6 + $0xb] sm:$0xff] %vm463, %v460
        %468 = vrot.lane.b32.xlu0 %v355, 3
        %v469 = vpop.permute.xlu0 %468
        %470 = vrot.lane.b32.xlu0 %v356, 3
        %v471 = vpop.permute.xlu0 %470
        %474 = vst.msk [vmem:[#allocation7 + $0x3] sm:$0xff] %vm463, %v469
        %475 = vst.msk [vmem:[#allocation7 + $0xb] sm:$0xff] %vm463, %v471
        %v476 = vld [vmem:[#allocation2] sm:$0xff]
        %v477 = vld [vmem:[#allocation2 + $0x8] sm:$0x3]
        %v478 = vld [vmem:[#allocation3] sm:$0xff]
        %v479 = vld [vmem:[#allocation3 + $0x8] sm:$0x3]
        %v480 = vld [vmem:[#allocation4] sm:$0xff]
        %v481 = vld [vmem:[#allocation4 + $0x8] sm:$0x3]
        %v482 = vld [vmem:[#allocation5] sm:$0xff]
        %v483 = vld [vmem:[#allocation5 + $0x8] sm:$0x3]
        %v484 = vld [vmem:[#allocation6] sm:$0xff]
        %v485 = vld [vmem:[#allocation6 + $0x8] sm:$0xff]
        %v486 = vld [vmem:[#allocation6 + $0x10] sm:$0x3f]
        %v487 = vld [vmem:[#allocation7] sm:$0xff]
        %v488 = vld [vmem:[#allocation7 + $0x8] sm:$0xff]
        %v489 = vld [vmem:[#allocation7 + $0x10] sm:$0x3f]
        %s490 = sld [smem:[#allocation13]]
        %v491 = vstv %s490
        %v492 = vmul.f32 %v491, %v476
        %s493 = sld [smem:[#allocation13 + $0x31]]
        %v494 = vstv %s493
        %v495 = vmul.f32 %v494, %v478
        %v496 = vadd.f32 %v492, %v495
        %v497 = vadd.f32 %v496, 0.0
        %s498 = sld [smem:[#allocation13 + $0x62]]
        %v499 = vstv %s498
        %v500 = vmul.f32 %v499, %v480
        %s501 = sld [smem:[#allocation13 + $0x93]]
        %v502 = vstv %s501
        %v503 = vmul.f32 %v502, %v482
        %v504 = vadd.f32 %v500, %v503
        %v505 = vadd.f32 %v504, 0.0
        %s506 = sld [smem:[#allocation13 + $0xc4]]
        %v507 = vstv %s506
        %v508 = vmul.f32 %v507, %v484
        %v509 = vmul.f32 %v507, %v485
        %s510 = sld [smem:[#allocation13 + $0xf5]]
        %v511 = vstv %s510
        %v512 = vmul.f32 %v511, %v487
        %v513 = vmul.f32 %v511, %v488
        %v514 = vadd.f32 %v508, %v512
        %v515 = vadd.f32 %v509, %v513
        %v516 = vadd.f32 %v514, 0.0
        %v517 = vadd.f32 %v515, 0.0
        %s518 = sld [smem:[#allocation13 + $0x1]]
        %v519 = vstv %s518
        %v520 = vmul.f32 %v519, %v476
        %s521 = sld [smem:[#allocation13 + $0x32]]
        %v522 = vstv %s521
        %v523 = vmul.f32 %v522, %v478
        %v524 = vadd.f32 %v520, %v523
        %526 = vrot.lane.b32.xlu0 %v524, 127
        %v527 = vpop.permute.xlu0 %526
        %v529 = vadd.f32 %v497, %v527
        %s530 = sld [smem:[#allocation13 + $0x63]]
        %v531 = vstv %s530
        %v532 = vmul.f32 %v531, %v480
        %s533 = sld [smem:[#allocation13 + $0x94]]
        %v534 = vstv %s533
        %v535 = vmul.f32 %v534, %v482
        %v536 = vadd.f32 %v532, %v535
        %v538 = vrot.slane %v536, 1
        %v540 = vadd.f32 %v505, %v538
        %s541 = sld [smem:[#allocation13 + $0xc5]]
        %v542 = vstv %s541
        %v543 = vmul.f32 %v542, %v484
        %v544 = vmul.f32 %v542, %v485
        %s545 = sld [smem:[#allocation13 + $0xf6]]
        %v546 = vstv %s545
        %v547 = vmul.f32 %v546, %v487
        %v548 = vmul.f32 %v546, %v488
        %v549 = vadd.f32 %v543, %v547
        %v550 = vadd.f32 %v544, %v548
        %553 = vrot.lane.b32.xlu0 %v549, 127
        %v554 = vpop.permute.xlu0 %553
        %555 = vrot.lane.b32.xlu0 %v550, 127
        %v556 = vpop.permute.xlu0 %555
        %v559 = vadd.f32 %v516, %v554
        %v560 = vadd.f32 %v517, %v556
        %s561 = sld [smem:[#allocation13 + $0x2]]
        %v562 = vstv %s561
        %v563 = vmul.f32 %v562, %v476
        %s564 = sld [smem:[#allocation13 + $0x33]]
        %v565 = vstv %s564
        %v566 = vmul.f32 %v565, %v478
        %v567 = vadd.f32 %v563, %v566
        %569 = vrot.lane.b32.xlu0 %v567, 126
        %v570 = vpop.permute.xlu0 %569
        %v572 = vadd.f32 %v529, %v570
        %s573 = sld [smem:[#allocation13 + $0x64]]
        %v574 = vstv %s573
        %v575 = vmul.f32 %v574, %v480
        %s576 = sld [smem:[#allocation13 + $0x95]]
        %v577 = vstv %s576
        %v578 = vmul.f32 %v577, %v482
        %v579 = vadd.f32 %v575, %v578
        %v581 = vrot.slane %v579, 2
        %v583 = vadd.f32 %v540, %v581
        %s584 = sld [smem:[#allocation13 + $0xc6]]
        %v585 = vstv %s584
        %v586 = vmul.f32 %v585, %v484
        %v587 = vmul.f32 %v585, %v485
        %s588 = sld [smem:[#allocation13 + $0xf7]]
        %v589 = vstv %s588
        %v590 = vmul.f32 %v589, %v487
        %v591 = vmul.f32 %v589, %v488
        %v592 = vadd.f32 %v586, %v590
        %v593 = vadd.f32 %v587, %v591
        %596 = vrot.lane.b32.xlu0 %v592, 126
        %v597 = vpop.permute.xlu0 %596
        %598 = vrot.lane.b32.xlu0 %v593, 126
        %v599 = vpop.permute.xlu0 %598
        %v602 = vadd.f32 %v559, %v597
        %v603 = vadd.f32 %v560, %v599
        %s604 = sld [smem:[#allocation13 + $0x3]]
        %v605 = vstv %s604
        %v606 = vmul.f32 %v605, %v476
        %s607 = sld [smem:[#allocation13 + $0x34]]
        %v608 = vstv %s607
        %v609 = vmul.f32 %v608, %v478
        %v610 = vadd.f32 %v606, %v609
        %612 = vrot.lane.b32.xlu0 %v610, 125
        %v613 = vpop.permute.xlu0 %612
        %v615 = vadd.f32 %v572, %v613
        %s616 = sld [smem:[#allocation13 + $0x65]]
        %v617 = vstv %s616
        %v618 = vmul.f32 %v617, %v480
        %s619 = sld [smem:[#allocation13 + $0x96]]
        %v620 = vstv %s619
        %v621 = vmul.f32 %v620, %v482
        %v622 = vadd.f32 %v618, %v621
        %v624 = vrot.slane %v622, 3
        %v626 = vadd.f32 %v583, %v624
        %s627 = sld [smem:[#allocation13 + $0xc7]]
        %v628 = vstv %s627
        %v629 = vmul.f32 %v628, %v484
        %v630 = vmul.f32 %v628, %v485
        %s631 = sld [smem:[#allocation13 + $0xf8]]
        %v632 = vstv %s631
        %v633 = vmul.f32 %v632, %v487
        %v634 = vmul.f32 %v632, %v488
        %v635 = vadd.f32 %v629, %v633
        %v636 = vadd.f32 %v630, %v634
        %639 = vrot.lane.b32.xlu0 %v635, 125
        %v640 = vpop.permute.xlu0 %639
        %641 = vrot.lane.b32.xlu0 %v636, 125
        %v642 = vpop.permute.xlu0 %641
        %v645 = vadd.f32 %v602, %v640
        %v646 = vadd.f32 %v603, %v642
        %s647 = sld [smem:[#allocation13 + $0x4]]
        %v648 = vstv %s647
        %v649 = vmul.f32 %v648, %v476
        %s650 = sld [smem:[#allocation13 + $0x35]]
        %v651 = vstv %s650
        %v652 = vmul.f32 %v651, %v478
        %v653 = vadd.f32 %v649, %v652
        %655 = vrot.lane.b32.xlu0 %v653, 124
        %v656 = vpop.permute.xlu0 %655
        %v658 = vadd.f32 %v615, %v656
        %s659 = sld [smem:[#allocation13 + $0x66]]
        %v660 = vstv %s659
        %v661 = vmul.f32 %v660, %v480
        %s662 = sld [smem:[#allocation13 + $0x97]]
        %v663 = vstv %s662
        %v664 = vmul.f32 %v663, %v482
        %v665 = vadd.f32 %v661, %v664
        %v667 = vrot.slane %v665, 4
        %v669 = vadd.f32 %v626, %v667
        %s670 = sld [smem:[#allocation13 + $0xc8]]
        %v671 = vstv %s670
        %v672 = vmul.f32 %v671, %v484
        %v673 = vmul.f32 %v671, %v485
        %s674 = sld [smem:[#allocation13 + $0xf9]]
        %v675 = vstv %s674
        %v676 = vmul.f32 %v675, %v487
        %v677 = vmul.f32 %v675, %v488
        %v678 = vadd.f32 %v672, %v676
        %v679 = vadd.f32 %v673, %v677
        %682 = vrot.lane.b32.xlu0 %v678, 124
        %v683 = vpop.permute.xlu0 %682
        %684 = vrot.lane.b32.xlu0 %v679, 124
        %v685 = vpop.permute.xlu0 %684
        %v688 = vadd.f32 %v645, %v683
        %v689 = vadd.f32 %v646, %v685
        %s690 = sld [smem:[#allocation13 + $0x5]]
        %v691 = vstv %s690
        %v692 = vmul.f32 %v691, %v476
        %s693 = sld [smem:[#allocation13 + $0x36]]
        %v694 = vstv %s693
        %v695 = vmul.f32 %v694, %v478
        %v696 = vadd.f32 %v692, %v695
        %698 = vrot.lane.b32.xlu0 %v696, 123
        %v699 = vpop.permute.xlu0 %698
        %v701 = vadd.f32 %v658, %v699
        %s702 = sld [smem:[#allocation13 + $0x67]]
        %v703 = vstv %s702
        %v704 = vmul.f32 %v703, %v480
        %v705 = vmul.f32 %v703, %v481
        %s706 = sld [smem:[#allocation13 + $0x98]]
        %v707 = vstv %s706
        %v708 = vmul.f32 %v707, %v482
        %v709 = vmul.f32 %v707, %v483
        %v710 = vadd.f32 %v704, %v708
        %v711 = vadd.f32 %v705, %v709
        %vm714 = vcmask 1042432
        %v715 = vrot.slane %v710, 5
        %v716 = vrot.slane %v711, 5
        %v717 = vsel %vm714, %v715, %v716
        %v719 = vadd.f32 %v669, %v717
        %s720 = sld [smem:[#allocation13 + $0xc9]]
        %v721 = vstv %s720
        %v722 = vmul.f32 %v721, %v484
        %v723 = vmul.f32 %v721, %v485
        %s724 = sld [smem:[#allocation13 + $0xfa]]
        %v725 = vstv %s724
        %v726 = vmul.f32 %v725, %v487
        %v727 = vmul.f32 %v725, %v488
        %v728 = vadd.f32 %v722, %v726
        %v729 = vadd.f32 %v723, %v727
        %732 = vrot.lane.b32.xlu0 %v728, 123
        %v733 = vpop.permute.xlu0 %732
        %734 = vrot.lane.b32.xlu0 %v729, 123
        %v735 = vpop.permute.xlu0 %734
        %v738 = vadd.f32 %v688, %v733
        %v739 = vadd.f32 %v689, %v735
        %s740 = sld [smem:[#allocation13 + $0x6]]
        %v741 = vstv %s740
        %v742 = vmul.f32 %v741, %v476
        %s743 = sld [smem:[#allocation13 + $0x37]]
        %v744 = vstv %s743
        %v745 = vmul.f32 %v744, %v478
        %v746 = vadd.f32 %v742, %v745
        %748 = vrot.lane.b32.xlu0 %v746, 122
        %v749 = vpop.permute.xlu0 %748
        %v751 = vadd.f32 %v701, %v749
        %s752 = sld [smem:[#allocation13 + $0x68]]
        %v753 = vstv %s752
        %v754 = vmul.f32 %v753, %v480
        %v755 = vmul.f32 %v753, %v481
        %s756 = sld [smem:[#allocation13 + $0x99]]
        %v757 = vstv %s756
        %v758 = vmul.f32 %v757, %v482
        %v759 = vmul.f32 %v757, %v483
        %v760 = vadd.f32 %v754, %v758
        %v761 = vadd.f32 %v755, %v759
        %vm764 = vcmask 1041408
        %v765 = vrot.slane %v760, 6
        %v766 = vrot.slane %v761, 6
        %v767 = vsel %vm764, %v765, %v766
        %v769 = vadd.f32 %v719, %v767
        %s770 = sld [smem:[#allocation13 + $0xca]]
        %v771 = vstv %s770
        %v772 = vmul.f32 %v771, %v484
        %v773 = vmul.f32 %v771, %v485
        %s774 = sld [smem:[#allocation13 + $0xfb]]
        %v775 = vstv %s774
        %v776 = vmul.f32 %v775, %v487
        %v777 = vmul.f32 %v775, %v488
        %v778 = vadd.f32 %v772, %v776
        %v779 = vadd.f32 %v773, %v777
        %782 = vrot.lane.b32.xlu0 %v778, 122
        %v783 = vpop.permute.xlu0 %782
        %784 = vrot.lane.b32.xlu0 %v779, 122
        %v785 = vpop.permute.xlu0 %784
        %v788 = vadd.f32 %v738, %v783
        %v789 = vadd.f32 %v739, %v785
        %s790 = sld [smem:[#allocation13 + $0x7]]
        %v791 = vstv %s790
        %v792 = vmul.f32 %v791, %v476
        %s793 = sld [smem:[#allocation13 + $0x38]]
        %v794 = vstv %s793
        %v795 = vmul.f32 %v794, %v478
        %v796 = vadd.f32 %v792, %v795
        %v798 = vrot.slane %v796, 1
        %v800 = vadd.f32 %v751, %v798
        %s801 = sld [smem:[#allocation13 + $0x69]]
        %v802 = vstv %s801
        %v803 = vmul.f32 %v802, %v480
        %s804 = sld [smem:[#allocation13 + $0x9a]]
        %v805 = vstv %s804
        %v806 = vmul.f32 %v805, %v482
        %v807 = vadd.f32 %v803, %v806
        %809 = vrot.lane.b32.xlu0 %v807, 127
        %v810 = vpop.permute.xlu0 %809
        %v812 = vadd.f32 %v769, %v810
        %s813 = sld [smem:[#allocation13 + $0xcb]]
        %v814 = vstv %s813
        %v815 = vmul.f32 %v814, %v484
        %v816 = vmul.f32 %v814, %v485
        %v817 = vmul.f32 %v814, %v486
        %s818 = sld [smem:[#allocation13 + $0xfc]]
        %v819 = vstv %s818
        %v820 = vmul.f32 %v819, %v487
        %v821 = vmul.f32 %v819, %v488
        %v822 = vmul.f32 %v819, %v489
        %v823 = vadd.f32 %v815, %v820
        %v824 = vadd.f32 %v816, %v821
        %v825 = vadd.f32 %v817, %v822
        %vm829 = vcmask 1046528
        %v830 = vrot.slane %v823, 1
        %v831 = vrot.slane %v824, 1
        %v832 = vsel %vm829, %v830, %v831
        %v833 = vrot.slane %v825, 1
        %v834 = vsel %vm829, %v831, %v833
        %v837 = vadd.f32 %v788, %v832
        %v838 = vadd.f32 %v789, %v834
        %s839 = sld [smem:[#allocation13 + $0x8]]
        %v840 = vstv %s839
        %v841 = vmul.f32 %v840, %v476
        %s842 = sld [smem:[#allocation13 + $0x39]]
        %v843 = vstv %s842
        %v844 = vmul.f32 %v843, %v478
        %v845 = vadd.f32 %v841, %v844
        %v847 = vrot.slane %v845, 1
        %848 = vrot.lane.b32.xlu0 %v847, 127
        %v849 = vpop.permute.xlu0 %848
        %v851 = vadd.f32 %v800, %v849
        %s852 = sld [smem:[#allocation13 + $0x6a]]
        %v853 = vstv %s852
        %v854 = vmul.f32 %v853, %v480
        %s855 = sld [smem:[#allocation13 + $0x9b]]
        %v856 = vstv %s855
        %v857 = vmul.f32 %v856, %v482
        %v858 = vadd.f32 %v854, %v857
        %v860 = vrot.slane %v858, 1
        %861 = vrot.lane.b32.xlu0 %v860, 127
        %v862 = vpop.permute.xlu0 %861
        %v864 = vadd.f32 %v812, %v862
        %s865 = sld [smem:[#allocation13 + $0xcc]]
        %v866 = vstv %s865
        %v867 = vmul.f32 %v866, %v484
        %v868 = vmul.f32 %v866, %v485
        %v869 = vmul.f32 %v866, %v486
        %s870 = sld [smem:[#allocation13 + $0xfd]]
        %v871 = vstv %s870
        %v872 = vmul.f32 %v871, %v487
        %v873 = vmul.f32 %v871, %v488
        %v874 = vmul.f32 %v871, %v489
        %v875 = vadd.f32 %v867, %v872
        %v876 = vadd.f32 %v868, %v873
        %v877 = vadd.f32 %v869, %v874
        %v881 = vrot.slane %v875, 1
        %v882 = vrot.slane %v876, 1
        %v883 = vsel %vm829, %v881, %v882
        %v884 = vrot.slane %v877, 1
        %v885 = vsel %vm829, %v882, %v884
        %886 = vrot.lane.b32.xlu0 %v883, 127
        %v887 = vpop.permute.xlu0 %886
        %888 = vrot.lane.b32.xlu0 %v885, 127
        %v889 = vpop.permute.xlu0 %888
        %v892 = vadd.f32 %v837, %v887
        %v893 = vadd.f32 %v838, %v889
        %s894 = sld [smem:[#allocation13 + $0x9]]
        %v895 = vstv %s894
        %v896 = vmul.f32 %v895, %v476
        %s897 = sld [smem:[#allocation13 + $0x3a]]
        %v898 = vstv %s897
        %v899 = vmul.f32 %v898, %v478
        %v900 = vadd.f32 %v896, %v899
        %v902 = vrot.slane %v900, 1
        %903 = vrot.lane.b32.xlu0 %v902, 126
        %v904 = vpop.permute.xlu0 %903
        %v906 = vadd.f32 %v851, %v904
        %s907 = sld [smem:[#allocation13 + $0x6b]]
        %v908 = vstv %s907
        %v909 = vmul.f32 %v908, %v480
        %s910 = sld [smem:[#allocation13 + $0x9c]]
        %v911 = vstv %s910
        %v912 = vmul.f32 %v911, %v482
        %v913 = vadd.f32 %v909, %v912
        %v915 = vrot.slane %v913, 2
        %916 = vrot.lane.b32.xlu0 %v915, 127
        %v917 = vpop.permute.xlu0 %916
        %v919 = vadd.f32 %v864, %v917
        %s920 = sld [smem:[#allocation13 + $0xcd]]
        %v921 = vstv %s920
        %v922 = vmul.f32 %v921, %v484
        %v923 = vmul.f32 %v921, %v485
        %v924 = vmul.f32 %v921, %v486
        %s925 = sld [smem:[#allocation13 + $0xfe]]
        %v926 = vstv %s925
        %v927 = vmul.f32 %v926, %v487
        %v928 = vmul.f32 %v926, %v488
        %v929 = vmul.f32 %v926, %v489
        %v930 = vadd.f32 %v922, %v927
        %v931 = vadd.f32 %v923, %v928
        %v932 = vadd.f32 %v924, %v929
        %v936 = vrot.slane %v930, 1
        %v937 = vrot.slane %v931, 1
        %v938 = vsel %vm829, %v936, %v937
        %v939 = vrot.slane %v932, 1
        %v940 = vsel %vm829, %v937, %v939
        %941 = vrot.lane.b32.xlu0 %v938, 126
        %v942 = vpop.permute.xlu0 %941
        %943 = vrot.lane.b32.xlu0 %v940, 126
        %v944 = vpop.permute.xlu0 %943
        %v947 = vadd.f32 %v892, %v942
        %v948 = vadd.f32 %v893, %v944
        %s949 = sld [smem:[#allocation13 + $0xa]]
        %v950 = vstv %s949
        %v951 = vmul.f32 %v950, %v476
        %s952 = sld [smem:[#allocation13 + $0x3b]]
        %v953 = vstv %s952
        %v954 = vmul.f32 %v953, %v478
        %v955 = vadd.f32 %v951, %v954
        %v957 = vrot.slane %v955, 1
        %958 = vrot.lane.b32.xlu0 %v957, 125
        %v959 = vpop.permute.xlu0 %958
        %v961 = vadd.f32 %v906, %v959
        %s962 = sld [smem:[#allocation13 + $0x6c]]
        %v963 = vstv %s962
        %v964 = vmul.f32 %v963, %v480
        %s965 = sld [smem:[#allocation13 + $0x9d]]
        %v966 = vstv %s965
        %v967 = vmul.f32 %v966, %v482
        %v968 = vadd.f32 %v964, %v967
        %v970 = vrot.slane %v968, 3
        %971 = vrot.lane.b32.xlu0 %v970, 127
        %v972 = vpop.permute.xlu0 %971
        %v974 = vadd.f32 %v919, %v972
        %s975 = sld [smem:[#allocation13 + $0xce]]
        %v976 = vstv %s975
        %v977 = vmul.f32 %v976, %v484
        %v978 = vmul.f32 %v976, %v485
        %v979 = vmul.f32 %v976, %v486
        %s980 = sld [smem:[#allocation13 + $0xff]]
        %v981 = vstv %s980
        %v982 = vmul.f32 %v981, %v487
        %v983 = vmul.f32 %v981, %v488
        %v984 = vmul.f32 %v981, %v489
        %v985 = vadd.f32 %v977, %v982
        %v986 = vadd.f32 %v978, %v983
        %v987 = vadd.f32 %v979, %v984
        %v991 = vrot.slane %v985, 1
        %v992 = vrot.slane %v986, 1
        %v993 = vsel %vm829, %v991, %v992
        %v994 = vrot.slane %v987, 1
        %v995 = vsel %vm829, %v992, %v994
        %996 = vrot.lane.b32.xlu0 %v993, 125
        %v997 = vpop.permute.xlu0 %996
        %998 = vrot.lane.b32.xlu0 %v995, 125
        %v999 = vpop.permute.xlu0 %998
        %v1002 = vadd.f32 %v947, %v997
        %v1003 = vadd.f32 %v948, %v999
        %s1004 = sld [smem:[#allocation13 + $0xb]]
        %v1005 = vstv %s1004
        %v1006 = vmul.f32 %v1005, %v476
        %s1007 = sld [smem:[#allocation13 + $0x3c]]
        %v1008 = vstv %s1007
        %v1009 = vmul.f32 %v1008, %v478
        %v1010 = vadd.f32 %v1006, %v1009
        %v1012 = vrot.slane %v1010, 1
        %1013 = vrot.lane.b32.xlu0 %v1012, 124
        %v1014 = vpop.permute.xlu0 %1013
        %v1016 = vadd.f32 %v961, %v1014
        %s1017 = sld [smem:[#allocation13 + $0x6d]]
        %v1018 = vstv %s1017
        %v1019 = vmul.f32 %v1018, %v480
        %s1020 = sld [smem:[#allocation13 + $0x9e]]
        %v1021 = vstv %s1020
        %v1022 = vmul.f32 %v1021, %v482
        %v1023 = vadd.f32 %v1019, %v1022
        %v1025 = vrot.slane %v1023, 4
        %1026 = vrot.lane.b32.xlu0 %v1025, 127
        %v1027 = vpop.permute.xlu0 %1026
        %v1029 = vadd.f32 %v974, %v1027
        %s1030 = sld [smem:[#allocation13 + $0xcf]]
        %v1031 = vstv %s1030
        %v1032 = vmul.f32 %v1031, %v484
        %v1033 = vmul.f32 %v1031, %v485
        %v1034 = vmul.f32 %v1031, %v486
        %s1035 = sld [smem:[#allocation13 + $0x100]]
        %v1036 = vstv %s1035
        %v1037 = vmul.f32 %v1036, %v487
        %v1038 = vmul.f32 %v1036, %v488
        %v1039 = vmul.f32 %v1036, %v489
        %v1040 = vadd.f32 %v1032, %v1037
        %v1041 = vadd.f32 %v1033, %v1038
        %v1042 = vadd.f32 %v1034, %v1039
        %v1046 = vrot.slane %v1040, 1
        %v1047 = vrot.slane %v1041, 1
        %v1048 = vsel %vm829, %v1046, %v1047
        %v1049 = vrot.slane %v1042, 1
        %v1050 = vsel %vm829, %v1047, %v1049
        %1051 = vrot.lane.b32.xlu0 %v1048, 124
        %v1052 = vpop.permute.xlu0 %1051
        %1053 = vrot.lane.b32.xlu0 %v1050, 124
        %v1054 = vpop.permute.xlu0 %1053
        %v1057 = vadd.f32 %v1002, %v1052
        %v1058 = vadd.f32 %v1003, %v1054
        %s1059 = sld [smem:[#allocation13 + $0xc]]
        %v1060 = vstv %s1059
        %v1061 = vmul.f32 %v1060, %v476
        %s1062 = sld [smem:[#allocation13 + $0x3d]]
        %v1063 = vstv %s1062
        %v1064 = vmul.f32 %v1063, %v478
        %v1065 = vadd.f32 %v1061, %v1064
        %v1067 = vrot.slane %v1065, 1
        %1068 = vrot.lane.b32.xlu0 %v1067, 123
        %v1069 = vpop.permute.xlu0 %1068
        %v1071 = vadd.f32 %v1016, %v1069
        %s1072 = sld [smem:[#allocation13 + $0x6e]]
        %v1073 = vstv %s1072
        %v1074 = vmul.f32 %v1073, %v480
        %v1075 = vmul.f32 %v1073, %v481
        %s1076 = sld [smem:[#allocation13 + $0x9f]]
        %v1077 = vstv %s1076
        %v1078 = vmul.f32 %v1077, %v482
        %v1079 = vmul.f32 %v1077, %v483
        %v1080 = vadd.f32 %v1074, %v1078
        %v1081 = vadd.f32 %v1075, %v1079
        %v1084 = vrot.slane %v1080, 5
        %v1085 = vrot.slane %v1081, 5
        %v1086 = vsel %vm714, %v1084, %v1085
        %1087 = vrot.lane.b32.xlu0 %v1086, 127
        %v1088 = vpop.permute.xlu0 %1087
        %v1090 = vadd.f32 %v1029, %v1088
        %s1091 = sld [smem:[#allocation13 + $0xd0]]
        %v1092 = vstv %s1091
        %v1093 = vmul.f32 %v1092, %v484
        %v1094 = vmul.f32 %v1092, %v485
        %v1095 = vmul.f32 %v1092, %v486
        %s1096 = sld [smem:[#allocation13 + $0x101]]
        %v1097 = vstv %s1096
        %v1098 = vmul.f32 %v1097, %v487
        %v1099 = vmul.f32 %v1097, %v488
        %v1100 = vmul.f32 %v1097, %v489
        %v1101 = vadd.f32 %v1093, %v1098
        %v1102 = vadd.f32 %v1094, %v1099
        %v1103 = vadd.f32 %v1095, %v1100
        %v1107 = vrot.slane %v1101, 1
        %v1108 = vrot.slane %v1102, 1
        %v1109 = vsel %vm829, %v1107, %v1108
        %v1110 = vrot.slane %v1103, 1
        %v1111 = vsel %vm829, %v1108, %v1110
        %1112 = vrot.lane.b32.xlu0 %v1109, 123
        %v1113 = vpop.permute.xlu0 %1112
        %1114 = vrot.lane.b32.xlu0 %v1111, 123
        %v1115 = vpop.permute.xlu0 %1114
        %v1118 = vadd.f32 %v1057, %v1113
        %v1119 = vadd.f32 %v1058, %v1115
        %s1120 = sld [smem:[#allocation13 + $0xd]]
        %v1121 = vstv %s1120
        %v1122 = vmul.f32 %v1121, %v476
        %s1123 = sld [smem:[#allocation13 + $0x3e]]
        %v1124 = vstv %s1123
        %v1125 = vmul.f32 %v1124, %v478
        %v1126 = vadd.f32 %v1122, %v1125
        %v1128 = vrot.slane %v1126, 1
        %1129 = vrot.lane.b32.xlu0 %v1128, 122
        %v1130 = vpop.permute.xlu0 %1129
        %v1132 = vadd.f32 %v1071, %v1130
        %s1133 = sld [smem:[#allocation13 + $0x6f]]
        %v1134 = vstv %s1133
        %v1135 = vmul.f32 %v1134, %v480
        %v1136 = vmul.f32 %v1134, %v481
        %s1137 = sld [smem:[#allocation13 + $0xa0]]
        %v1138 = vstv %s1137
        %v1139 = vmul.f32 %v1138, %v482
        %v1140 = vmul.f32 %v1138, %v483
        %v1141 = vadd.f32 %v1135, %v1139
        %v1142 = vadd.f32 %v1136, %v1140
        %v1145 = vrot.slane %v1141, 6
        %v1146 = vrot.slane %v1142, 6
        %v1147 = vsel %vm764, %v1145, %v1146
        %1148 = vrot.lane.b32.xlu0 %v1147, 127
        %v1149 = vpop.permute.xlu0 %1148
        %v1151 = vadd.f32 %v1090, %v1149
        %s1152 = sld [smem:[#allocation13 + $0xd1]]
        %v1153 = vstv %s1152
        %v1154 = vmul.f32 %v1153, %v484
        %v1155 = vmul.f32 %v1153, %v485
        %v1156 = vmul.f32 %v1153, %v486
        %s1157 = sld [smem:[#allocation13 + $0x102]]
        %v1158 = vstv %s1157
        %v1159 = vmul.f32 %v1158, %v487
        %v1160 = vmul.f32 %v1158, %v488
        %v1161 = vmul.f32 %v1158, %v489
        %v1162 = vadd.f32 %v1154, %v1159
        %v1163 = vadd.f32 %v1155, %v1160
        %v1164 = vadd.f32 %v1156, %v1161
        %v1168 = vrot.slane %v1162, 1
        %v1169 = vrot.slane %v1163, 1
        %v1170 = vsel %vm829, %v1168, %v1169
        %v1171 = vrot.slane %v1164, 1
        %v1172 = vsel %vm829, %v1169, %v1171
        %1173 = vrot.lane.b32.xlu0 %v1170, 122
        %v1174 = vpop.permute.xlu0 %1173
        %1175 = vrot.lane.b32.xlu0 %v1172, 122
        %v1176 = vpop.permute.xlu0 %1175
        %v1179 = vadd.f32 %v1118, %v1174
        %v1180 = vadd.f32 %v1119, %v1176
        %s1181 = sld [smem:[#allocation13 + $0xe]]
        %v1182 = vstv %s1181
        %v1183 = vmul.f32 %v1182, %v476
        %s1184 = sld [smem:[#allocation13 + $0x3f]]
        %v1185 = vstv %s1184
        %v1186 = vmul.f32 %v1185, %v478
        %v1187 = vadd.f32 %v1183, %v1186
        %v1189 = vrot.slane %v1187, 2
        %v1191 = vadd.f32 %v1132, %v1189
        %s1192 = sld [smem:[#allocation13 + $0x70]]
        %v1193 = vstv %s1192
        %v1194 = vmul.f32 %v1193, %v480
        %s1195 = sld [smem:[#allocation13 + $0xa1]]
        %v1196 = vstv %s1195
        %v1197 = vmul.f32 %v1196, %v482
        %v1198 = vadd.f32 %v1194, %v1197
        %1200 = vrot.lane.b32.xlu0 %v1198, 126
        %v1201 = vpop.permute.xlu0 %1200
        %v1203 = vadd.f32 %v1151, %v1201
        %s1204 = sld [smem:[#allocation13 + $0xd2]]
        %v1205 = vstv %s1204
        %v1206 = vmul.f32 %v1205, %v484
        %v1207 = vmul.f32 %v1205, %v485
        %v1208 = vmul.f32 %v1205, %v486
        %s1209 = sld [smem:[#allocation13 + $0x103]]
        %v1210 = vstv %s1209
        %v1211 = vmul.f32 %v1210, %v487
        %v1212 = vmul.f32 %v1210, %v488
        %v1213 = vmul.f32 %v1210, %v489
        %v1214 = vadd.f32 %v1206, %v1211
        %v1215 = vadd.f32 %v1207, %v1212
        %v1216 = vadd.f32 %v1208, %v1213
        %vm1220 = vcmask 1045504
        %v1221 = vrot.slane %v1214, 2
        %v1222 = vrot.slane %v1215, 2
        %v1223 = vsel %vm1220, %v1221, %v1222
        %v1224 = vrot.slane %v1216, 2
        %v1225 = vsel %vm1220, %v1222, %v1224
        %v1228 = vadd.f32 %v1179, %v1223
        %v1229 = vadd.f32 %v1180, %v1225
        %s1230 = sld [smem:[#allocation13 + $0xf]]
        %v1231 = vstv %s1230
        %v1232 = vmul.f32 %v1231, %v476
        %s1233 = sld [smem:[#allocation13 + $0x40]]
        %v1234 = vstv %s1233
        %v1235 = vmul.f32 %v1234, %v478
        %v1236 = vadd.f32 %v1232, %v1235
        %v1238 = vrot.slane %v1236, 2
        %1239 = vrot.lane.b32.xlu0 %v1238, 127
        %v1240 = vpop.permute.xlu0 %1239
        %v1242 = vadd.f32 %v1191, %v1240
        %s1243 = sld [smem:[#allocation13 + $0x71]]
        %v1244 = vstv %s1243
        %v1245 = vmul.f32 %v1244, %v480
        %s1246 = sld [smem:[#allocation13 + $0xa2]]
        %v1247 = vstv %s1246
        %v1248 = vmul.f32 %v1247, %v482
        %v1249 = vadd.f32 %v1245, %v1248
        %v1251 = vrot.slane %v1249, 1
        %1252 = vrot.lane.b32.xlu0 %v1251, 126
        %v1253 = vpop.permute.xlu0 %1252
        %v1255 = vadd.f32 %v1203, %v1253
        %s1256 = sld [smem:[#allocation13 + $0xd3]]
        %v1257 = vstv %s1256
        %v1258 = vmul.f32 %v1257, %v484
        %v1259 = vmul.f32 %v1257, %v485
        %v1260 = vmul.f32 %v1257, %v486
        %s1261 = sld [smem:[#allocation13 + $0x104]]
        %v1262 = vstv %s1261
        %v1263 = vmul.f32 %v1262, %v487
        %v1264 = vmul.f32 %v1262, %v488
        %v1265 = vmul.f32 %v1262, %v489
        %v1266 = vadd.f32 %v1258, %v1263
        %v1267 = vadd.f32 %v1259, %v1264
        %v1268 = vadd.f32 %v1260, %v1265
        %v1272 = vrot.slane %v1266, 2
        %v1273 = vrot.slane %v1267, 2
        %v1274 = vsel %vm1220, %v1272, %v1273
        %v1275 = vrot.slane %v1268, 2
        %v1276 = vsel %vm1220, %v1273, %v1275
        %1277 = vrot.lane.b32.xlu0 %v1274, 127
        %v1278 = vpop.permute.xlu0 %1277
        %1279 = vrot.lane.b32.xlu0 %v1276, 127
        %v1280 = vpop.permute.xlu0 %1279
        %v1283 = vadd.f32 %v1228, %v1278
        %v1284 = vadd.f32 %v1229, %v1280
        %s1285 = sld [smem:[#allocation13 + $0x10]]
        %v1286 = vstv %s1285
        %v1287 = vmul.f32 %v1286, %v476
        %s1288 = sld [smem:[#allocation13 + $0x41]]
        %v1289 = vstv %s1288
        %v1290 = vmul.f32 %v1289, %v478
        %v1291 = vadd.f32 %v1287, %v1290
        %v1293 = vrot.slane %v1291, 2
        %1294 = vrot.lane.b32.xlu0 %v1293, 126
        %v1295 = vpop.permute.xlu0 %1294
        %v1297 = vadd.f32 %v1242, %v1295
        %s1298 = sld [smem:[#allocation13 + $0x72]]
        %v1299 = vstv %s1298
        %v1300 = vmul.f32 %v1299, %v480
        %s1301 = sld [smem:[#allocation13 + $0xa3]]
        %v1302 = vstv %s1301
        %v1303 = vmul.f32 %v1302, %v482
        %v1304 = vadd.f32 %v1300, %v1303
        %v1306 = vrot.slane %v1304, 2
        %1307 = vrot.lane.b32.xlu0 %v1306, 126
        %v1308 = vpop.permute.xlu0 %1307
        %v1310 = vadd.f32 %v1255, %v1308
        %s1311 = sld [smem:[#allocation13 + $0xd4]]
        %v1312 = vstv %s1311
        %v1313 = vmul.f32 %v1312, %v484
        %v1314 = vmul.f32 %v1312, %v485
        %v1315 = vmul.f32 %v1312, %v486
        %s1316 = sld [smem:[#allocation13 + $0x105]]
        %v1317 = vstv %s1316
        %v1318 = vmul.f32 %v1317, %v487
        %v1319 = vmul.f32 %v1317, %v488
        %v1320 = vmul.f32 %v1317, %v489
        %v1321 = vadd.f32 %v1313, %v1318
        %v1322 = vadd.f32 %v1314, %v1319
        %v1323 = vadd.f32 %v1315, %v1320
        %v1327 = vrot.slane %v1321, 2
        %v1328 = vrot.slane %v1322, 2
        %v1329 = vsel %vm1220, %v1327, %v1328
        %v1330 = vrot.slane %v1323, 2
        %v1331 = vsel %vm1220, %v1328, %v1330
        %1332 = vrot.lane.b32.xlu0 %v1329, 126
        %v1333 = vpop.permute.xlu0 %1332
        %1334 = vrot.lane.b32.xlu0 %v1331, 126
        %v1335 = vpop.permute.xlu0 %1334
        %v1338 = vadd.f32 %v1283, %v1333
        %v1339 = vadd.f32 %v1284, %v1335
        %s1340 = sld [smem:[#allocation13 + $0x11]]
        %v1341 = vstv %s1340
        %v1342 = vmul.f32 %v1341, %v476
        %s1343 = sld [smem:[#allocation13 + $0x42]]
        %v1344 = vstv %s1343
        %v1345 = vmul.f32 %v1344, %v478
        %v1346 = vadd.f32 %v1342, %v1345
        %v1348 = vrot.slane %v1346, 2
        %1349 = vrot.lane.b32.xlu0 %v1348, 125
        %v1350 = vpop.permute.xlu0 %1349
        %v1352 = vadd.f32 %v1297, %v1350
        %s1353 = sld [smem:[#allocation13 + $0x73]]
        %v1354 = vstv %s1353
        %v1355 = vmul.f32 %v1354, %v480
        %s1356 = sld [smem:[#allocation13 + $0xa4]]
        %v1357 = vstv %s1356
        %v1358 = vmul.f32 %v1357, %v482
        %v1359 = vadd.f32 %v1355, %v1358
        %v1361 = vrot.slane %v1359, 3
        %1362 = vrot.lane.b32.xlu0 %v1361, 126
        %v1363 = vpop.permute.xlu0 %1362
        %v1365 = vadd.f32 %v1310, %v1363
        %s1366 = sld [smem:[#allocation13 + $0xd5]]
        %v1367 = vstv %s1366
        %v1368 = vmul.f32 %v1367, %v484
        %v1369 = vmul.f32 %v1367, %v485
        %v1370 = vmul.f32 %v1367, %v486
        %s1371 = sld [smem:[#allocation13 + $0x106]]
        %v1372 = vstv %s1371
        %v1373 = vmul.f32 %v1372, %v487
        %v1374 = vmul.f32 %v1372, %v488
        %v1375 = vmul.f32 %v1372, %v489
        %v1376 = vadd.f32 %v1368, %v1373
        %v1377 = vadd.f32 %v1369, %v1374
        %v1378 = vadd.f32 %v1370, %v1375
        %v1382 = vrot.slane %v1376, 2
        %v1383 = vrot.slane %v1377, 2
        %v1384 = vsel %vm1220, %v1382, %v1383
        %v1385 = vrot.slane %v1378, 2
        %v1386 = vsel %vm1220, %v1383, %v1385
        %1387 = vrot.lane.b32.xlu0 %v1384, 125
        %v1388 = vpop.permute.xlu0 %1387
        %1389 = vrot.lane.b32.xlu0 %v1386, 125
        %v1390 = vpop.permute.xlu0 %1389
        %v1393 = vadd.f32 %v1338, %v1388
        %v1394 = vadd.f32 %v1339, %v1390
        %s1395 = sld [smem:[#allocation13 + $0x12]]
        %v1396 = vstv %s1395
        %v1397 = vmul.f32 %v1396, %v476
        %s1398 = sld [smem:[#allocation13 + $0x43]]
        %v1399 = vstv %s1398
        %v1400 = vmul.f32 %v1399, %v478
        %v1401 = vadd.f32 %v1397, %v1400
        %v1403 = vrot.slane %v1401, 2
        %1404 = vrot.lane.b32.xlu0 %v1403, 124
        %v1405 = vpop.permute.xlu0 %1404
        %v1407 = vadd.f32 %v1352, %v1405
        %s1408 = sld [smem:[#allocation13 + $0x74]]
        %v1409 = vstv %s1408
        %v1410 = vmul.f32 %v1409, %v480
        %s1411 = sld [smem:[#allocation13 + $0xa5]]
        %v1412 = vstv %s1411
        %v1413 = vmul.f32 %v1412, %v482
        %v1414 = vadd.f32 %v1410, %v1413
        %v1416 = vrot.slane %v1414, 4
        %1417 = vrot.lane.b32.xlu0 %v1416, 126
        %v1418 = vpop.permute.xlu0 %1417
        %v1420 = vadd.f32 %v1365, %v1418
        %s1421 = sld [smem:[#allocation13 + $0xd6]]
        %v1422 = vstv %s1421
        %v1423 = vmul.f32 %v1422, %v484
        %v1424 = vmul.f32 %v1422, %v485
        %v1425 = vmul.f32 %v1422, %v486
        %s1426 = sld [smem:[#allocation13 + $0x107]]
        %v1427 = vstv %s1426
        %v1428 = vmul.f32 %v1427, %v487
        %v1429 = vmul.f32 %v1427, %v488
        %v1430 = vmul.f32 %v1427, %v489
        %v1431 = vadd.f32 %v1423, %v1428
        %v1432 = vadd.f32 %v1424, %v1429
        %v1433 = vadd.f32 %v1425, %v1430
        %v1437 = vrot.slane %v1431, 2
        %v1438 = vrot.slane %v1432, 2
        %v1439 = vsel %vm1220, %v1437, %v1438
        %v1440 = vrot.slane %v1433, 2
        %v1441 = vsel %vm1220, %v1438, %v1440
        %1442 = vrot.lane.b32.xlu0 %v1439, 124
        %v1443 = vpop.permute.xlu0 %1442
        %1444 = vrot.lane.b32.xlu0 %v1441, 124
        %v1445 = vpop.permute.xlu0 %1444
        %v1448 = vadd.f32 %v1393, %v1443
        %v1449 = vadd.f32 %v1394, %v1445
        %s1450 = sld [smem:[#allocation13 + $0x13]]
        %v1451 = vstv %s1450
        %v1452 = vmul.f32 %v1451, %v476
        %s1453 = sld [smem:[#allocation13 + $0x44]]
        %v1454 = vstv %s1453
        %v1455 = vmul.f32 %v1454, %v478
        %v1456 = vadd.f32 %v1452, %v1455
        %v1458 = vrot.slane %v1456, 2
        %1459 = vrot.lane.b32.xlu0 %v1458, 123
        %v1460 = vpop.permute.xlu0 %1459
        %v1462 = vadd.f32 %v1407, %v1460
        %s1463 = sld [smem:[#allocation13 + $0x75]]
        %v1464 = vstv %s1463
        %v1465 = vmul.f32 %v1464, %v480
        %v1466 = vmul.f32 %v1464, %v481
        %s1467 = sld [smem:[#allocation13 + $0xa6]]
        %v1468 = vstv %s1467
        %v1469 = vmul.f32 %v1468, %v482
        %v1470 = vmul.f32 %v1468, %v483
        %v1471 = vadd.f32 %v1465, %v1469
        %v1472 = vadd.f32 %v1466, %v1470
        %v1475 = vrot.slane %v1471, 5
        %v1476 = vrot.slane %v1472, 5
        %v1477 = vsel %vm714, %v1475, %v1476
        %1478 = vrot.lane.b32.xlu0 %v1477, 126
        %v1479 = vpop.permute.xlu0 %1478
        %v1481 = vadd.f32 %v1420, %v1479
        %s1482 = sld [smem:[#allocation13 + $0xd7]]
        %v1483 = vstv %s1482
        %v1484 = vmul.f32 %v1483, %v484
        %v1485 = vmul.f32 %v1483, %v485
        %v1486 = vmul.f32 %v1483, %v486
        %s1487 = sld [smem:[#allocation13 + $0x108]]
        %v1488 = vstv %s1487
        %v1489 = vmul.f32 %v1488, %v487
        %v1490 = vmul.f32 %v1488, %v488
        %v1491 = vmul.f32 %v1488, %v489
        %v1492 = vadd.f32 %v1484, %v1489
        %v1493 = vadd.f32 %v1485, %v1490
        %v1494 = vadd.f32 %v1486, %v1491
        %v1498 = vrot.slane %v1492, 2
        %v1499 = vrot.slane %v1493, 2
        %v1500 = vsel %vm1220, %v1498, %v1499
        %v1501 = vrot.slane %v1494, 2
        %v1502 = vsel %vm1220, %v1499, %v1501
        %1503 = vrot.lane.b32.xlu0 %v1500, 123
        %v1504 = vpop.permute.xlu0 %1503
        %1505 = vrot.lane.b32.xlu0 %v1502, 123
        %v1506 = vpop.permute.xlu0 %1505
        %v1509 = vadd.f32 %v1448, %v1504
        %v1510 = vadd.f32 %v1449, %v1506
        %s1511 = sld [smem:[#allocation13 + $0x14]]
        %v1512 = vstv %s1511
        %v1513 = vmul.f32 %v1512, %v476
        %s1514 = sld [smem:[#allocation13 + $0x45]]
        %v1515 = vstv %s1514
        %v1516 = vmul.f32 %v1515, %v478
        %v1517 = vadd.f32 %v1513, %v1516
        %v1519 = vrot.slane %v1517, 2
        %1520 = vrot.lane.b32.xlu0 %v1519, 122
        %v1521 = vpop.permute.xlu0 %1520
        %v1523 = vadd.f32 %v1462, %v1521
        %s1524 = sld [smem:[#allocation13 + $0x76]]
        %v1525 = vstv %s1524
        %v1526 = vmul.f32 %v1525, %v480
        %v1527 = vmul.f32 %v1525, %v481
        %s1528 = sld [smem:[#allocation13 + $0xa7]]
        %v1529 = vstv %s1528
        %v1530 = vmul.f32 %v1529, %v482
        %v1531 = vmul.f32 %v1529, %v483
        %v1532 = vadd.f32 %v1526, %v1530
        %v1533 = vadd.f32 %v1527, %v1531
        %v1536 = vrot.slane %v1532, 6
        %v1537 = vrot.slane %v1533, 6
        %v1538 = vsel %vm764, %v1536, %v1537
        %1539 = vrot.lane.b32.xlu0 %v1538, 126
        %v1540 = vpop.permute.xlu0 %1539
        %v1542 = vadd.f32 %v1481, %v1540
        %s1543 = sld [smem:[#allocation13 + $0xd8]]
        %v1544 = vstv %s1543
        %v1545 = vmul.f32 %v1544, %v484
        %v1546 = vmul.f32 %v1544, %v485
        %v1547 = vmul.f32 %v1544, %v486
        %s1548 = sld [smem:[#allocation13 + $0x109]]
        %v1549 = vstv %s1548
        %v1550 = vmul.f32 %v1549, %v487
        %v1551 = vmul.f32 %v1549, %v488
        %v1552 = vmul.f32 %v1549, %v489
        %v1553 = vadd.f32 %v1545, %v1550
        %v1554 = vadd.f32 %v1546, %v1551
        %v1555 = vadd.f32 %v1547, %v1552
        %v1559 = vrot.slane %v1553, 2
        %v1560 = vrot.slane %v1554, 2
        %v1561 = vsel %vm1220, %v1559, %v1560
        %v1562 = vrot.slane %v1555, 2
        %v1563 = vsel %vm1220, %v1560, %v1562
        %1564 = vrot.lane.b32.xlu0 %v1561, 122
        %v1565 = vpop.permute.xlu0 %1564
        %1566 = vrot.lane.b32.xlu0 %v1563, 122
        %v1567 = vpop.permute.xlu0 %1566
        %v1570 = vadd.f32 %v1509, %v1565
        %v1571 = vadd.f32 %v1510, %v1567
        %s1572 = sld [smem:[#allocation13 + $0x15]]
        %v1573 = vstv %s1572
        %v1574 = vmul.f32 %v1573, %v476
        %s1575 = sld [smem:[#allocation13 + $0x46]]
        %v1576 = vstv %s1575
        %v1577 = vmul.f32 %v1576, %v478
        %v1578 = vadd.f32 %v1574, %v1577
        %v1580 = vrot.slane %v1578, 3
        %v1582 = vadd.f32 %v1523, %v1580
        %s1583 = sld [smem:[#allocation13 + $0x77]]
        %v1584 = vstv %s1583
        %v1585 = vmul.f32 %v1584, %v480
        %s1586 = sld [smem:[#allocation13 + $0xa8]]
        %v1587 = vstv %s1586
        %v1588 = vmul.f32 %v1587, %v482
        %v1589 = vadd.f32 %v1585, %v1588
        %1591 = vrot.lane.b32.xlu0 %v1589, 125
        %v1592 = vpop.permute.xlu0 %1591
        %v1594 = vadd.f32 %v1542, %v1592
        %s1595 = sld [smem:[#allocation13 + $0xd9]]
        %v1596 = vstv %s1595
        %v1597 = vmul.f32 %v1596, %v484
        %v1598 = vmul.f32 %v1596, %v485
        %v1599 = vmul.f32 %v1596, %v486
        %s1600 = sld [smem:[#allocation13 + $0x10a]]
        %v1601 = vstv %s1600
        %v1602 = vmul.f32 %v1601, %v487
        %v1603 = vmul.f32 %v1601, %v488
        %v1604 = vmul.f32 %v1601, %v489
        %v1605 = vadd.f32 %v1597, %v1602
        %v1606 = vadd.f32 %v1598, %v1603
        %v1607 = vadd.f32 %v1599, %v1604
        %vm1611 = vcmask 1044480
        %v1612 = vrot.slane %v1605, 3
        %v1613 = vrot.slane %v1606, 3
        %v1614 = vsel %vm1611, %v1612, %v1613
        %v1615 = vrot.slane %v1607, 3
        %v1616 = vsel %vm1611, %v1613, %v1615
        %v1619 = vadd.f32 %v1570, %v1614
        %v1620 = vadd.f32 %v1571, %v1616
        %s1621 = sld [smem:[#allocation13 + $0x16]]
        %v1622 = vstv %s1621
        %v1623 = vmul.f32 %v1622, %v476
        %s1624 = sld [smem:[#allocation13 + $0x47]]
        %v1625 = vstv %s1624
        %v1626 = vmul.f32 %v1625, %v478
        %v1627 = vadd.f32 %v1623, %v1626
        %v1629 = vrot.slane %v1627, 3
        %1630 = vrot.lane.b32.xlu0 %v1629, 127
        %v1631 = vpop.permute.xlu0 %1630
        %v1633 = vadd.f32 %v1582, %v1631
        %s1634 = sld [smem:[#allocation13 + $0x78]]
        %v1635 = vstv %s1634
        %v1636 = vmul.f32 %v1635, %v480
        %s1637 = sld [smem:[#allocation13 + $0xa9]]
        %v1638 = vstv %s1637
        %v1639 = vmul.f32 %v1638, %v482
        %v1640 = vadd.f32 %v1636, %v1639
        %v1642 = vrot.slane %v1640, 1
        %1643 = vrot.lane.b32.xlu0 %v1642, 125
        %v1644 = vpop.permute.xlu0 %1643
        %v1646 = vadd.f32 %v1594, %v1644
        %s1647 = sld [smem:[#allocation13 + $0xda]]
        %v1648 = vstv %s1647
        %v1649 = vmul.f32 %v1648, %v484
        %v1650 = vmul.f32 %v1648, %v485
        %v1651 = vmul.f32 %v1648, %v486
        %s1652 = sld [smem:[#allocation13 + $0x10b]]
        %v1653 = vstv %s1652
        %v1654 = vmul.f32 %v1653, %v487
        %v1655 = vmul.f32 %v1653, %v488
        %v1656 = vmul.f32 %v1653, %v489
        %v1657 = vadd.f32 %v1649, %v1654
        %v1658 = vadd.f32 %v1650, %v1655
        %v1659 = vadd.f32 %v1651, %v1656
        %v1663 = vrot.slane %v1657, 3
        %v1664 = vrot.slane %v1658, 3
        %v1665 = vsel %vm1611, %v1663, %v1664
        %v1666 = vrot.slane %v1659, 3
        %v1667 = vsel %vm1611, %v1664, %v1666
        %1668 = vrot.lane.b32.xlu0 %v1665, 127
        %v1669 = vpop.permute.xlu0 %1668
        %1670 = vrot.lane.b32.xlu0 %v1667, 127
        %v1671 = vpop.permute.xlu0 %1670
        %v1674 = vadd.f32 %v1619, %v1669
        %v1675 = vadd.f32 %v1620, %v1671
        %s1676 = sld [smem:[#allocation13 + $0x17]]
        %v1677 = vstv %s1676
        %v1678 = vmul.f32 %v1677, %v476
        %s1679 = sld [smem:[#allocation13 + $0x48]]
        %v1680 = vstv %s1679
        %v1681 = vmul.f32 %v1680, %v478
        %v1682 = vadd.f32 %v1678, %v1681
        %v1684 = vrot.slane %v1682, 3
        %1685 = vrot.lane.b32.xlu0 %v1684, 126
        %v1686 = vpop.permute.xlu0 %1685
        %v1688 = vadd.f32 %v1633, %v1686
        %s1689 = sld [smem:[#allocation13 + $0x79]]
        %v1690 = vstv %s1689
        %v1691 = vmul.f32 %v1690, %v480
        %s1692 = sld [smem:[#allocation13 + $0xaa]]
        %v1693 = vstv %s1692
        %v1694 = vmul.f32 %v1693, %v482
        %v1695 = vadd.f32 %v1691, %v1694
        %v1697 = vrot.slane %v1695, 2
        %1698 = vrot.lane.b32.xlu0 %v1697, 125
        %v1699 = vpop.permute.xlu0 %1698
        %v1701 = vadd.f32 %v1646, %v1699
        %s1702 = sld [smem:[#allocation13 + $0xdb]]
        %v1703 = vstv %s1702
        %v1704 = vmul.f32 %v1703, %v484
        %v1705 = vmul.f32 %v1703, %v485
        %v1706 = vmul.f32 %v1703, %v486
        %s1707 = sld [smem:[#allocation13 + $0x10c]]
        %v1708 = vstv %s1707
        %v1709 = vmul.f32 %v1708, %v487
        %v1710 = vmul.f32 %v1708, %v488
        %v1711 = vmul.f32 %v1708, %v489
        %v1712 = vadd.f32 %v1704, %v1709
        %v1713 = vadd.f32 %v1705, %v1710
        %v1714 = vadd.f32 %v1706, %v1711
        %v1718 = vrot.slane %v1712, 3
        %v1719 = vrot.slane %v1713, 3
        %v1720 = vsel %vm1611, %v1718, %v1719
        %v1721 = vrot.slane %v1714, 3
        %v1722 = vsel %vm1611, %v1719, %v1721
        %1723 = vrot.lane.b32.xlu0 %v1720, 126
        %v1724 = vpop.permute.xlu0 %1723
        %1725 = vrot.lane.b32.xlu0 %v1722, 126
        %v1726 = vpop.permute.xlu0 %1725
        %v1729 = vadd.f32 %v1674, %v1724
        %v1730 = vadd.f32 %v1675, %v1726
        %s1731 = sld [smem:[#allocation13 + $0x18]]
        %v1732 = vstv %s1731
        %v1733 = vmul.f32 %v1732, %v476
        %s1734 = sld [smem:[#allocation13 + $0x49]]
        %v1735 = vstv %s1734
        %v1736 = vmul.f32 %v1735, %v478
        %v1737 = vadd.f32 %v1733, %v1736
        %v1739 = vrot.slane %v1737, 3
        %1740 = vrot.lane.b32.xlu0 %v1739, 125
        %v1741 = vpop.permute.xlu0 %1740
        %v1743 = vadd.f32 %v1688, %v1741
        %s1744 = sld [smem:[#allocation13 + $0x7a]]
        %v1745 = vstv %s1744
        %v1746 = vmul.f32 %v1745, %v480
        %s1747 = sld [smem:[#allocation13 + $0xab]]
        %v1748 = vstv %s1747
        %v1749 = vmul.f32 %v1748, %v482
        %v1750 = vadd.f32 %v1746, %v1749
        %v1752 = vrot.slane %v1750, 3
        %1753 = vrot.lane.b32.xlu0 %v1752, 125
        %v1754 = vpop.permute.xlu0 %1753
        %v1756 = vadd.f32 %v1701, %v1754
        %s1757 = sld [smem:[#allocation13 + $0xdc]]
        %v1758 = vstv %s1757
        %v1759 = vmul.f32 %v1758, %v484
        %v1760 = vmul.f32 %v1758, %v485
        %v1761 = vmul.f32 %v1758, %v486
        %s1762 = sld [smem:[#allocation13 + $0x10d]]
        %v1763 = vstv %s1762
        %v1764 = vmul.f32 %v1763, %v487
        %v1765 = vmul.f32 %v1763, %v488
        %v1766 = vmul.f32 %v1763, %v489
        %v1767 = vadd.f32 %v1759, %v1764
        %v1768 = vadd.f32 %v1760, %v1765
        %v1769 = vadd.f32 %v1761, %v1766
        %v1773 = vrot.slane %v1767, 3
        %v1774 = vrot.slane %v1768, 3
        %v1775 = vsel %vm1611, %v1773, %v1774
        %v1776 = vrot.slane %v1769, 3
        %v1777 = vsel %vm1611, %v1774, %v1776
        %1778 = vrot.lane.b32.xlu0 %v1775, 125
        %v1779 = vpop.permute.xlu0 %1778
        %1780 = vrot.lane.b32.xlu0 %v1777, 125
        %v1781 = vpop.permute.xlu0 %1780
        %v1784 = vadd.f32 %v1729, %v1779
        %v1785 = vadd.f32 %v1730, %v1781
        %s1786 = sld [smem:[#allocation13 + $0x19]]
        %v1787 = vstv %s1786
        %v1788 = vmul.f32 %v1787, %v476
        %s1789 = sld [smem:[#allocation13 + $0x4a]]
        %v1790 = vstv %s1789
        %v1791 = vmul.f32 %v1790, %v478
        %v1792 = vadd.f32 %v1788, %v1791
        %v1794 = vrot.slane %v1792, 3
        %1795 = vrot.lane.b32.xlu0 %v1794, 124
        %v1796 = vpop.permute.xlu0 %1795
        %v1798 = vadd.f32 %v1743, %v1796
        %s1799 = sld [smem:[#allocation13 + $0x7b]]
        %v1800 = vstv %s1799
        %v1801 = vmul.f32 %v1800, %v480
        %s1802 = sld [smem:[#allocation13 + $0xac]]
        %v1803 = vstv %s1802
        %v1804 = vmul.f32 %v1803, %v482
        %v1805 = vadd.f32 %v1801, %v1804
        %v1807 = vrot.slane %v1805, 4
        %1808 = vrot.lane.b32.xlu0 %v1807, 125
        %v1809 = vpop.permute.xlu0 %1808
        %v1811 = vadd.f32 %v1756, %v1809
        %s1812 = sld [smem:[#allocation13 + $0xdd]]
        %v1813 = vstv %s1812
        %v1814 = vmul.f32 %v1813, %v484
        %v1815 = vmul.f32 %v1813, %v485
        %v1816 = vmul.f32 %v1813, %v486
        %s1817 = sld [smem:[#allocation13 + $0x10e]]
        %v1818 = vstv %s1817
        %v1819 = vmul.f32 %v1818, %v487
        %v1820 = vmul.f32 %v1818, %v488
        %v1821 = vmul.f32 %v1818, %v489
        %v1822 = vadd.f32 %v1814, %v1819
        %v1823 = vadd.f32 %v1815, %v1820
        %v1824 = vadd.f32 %v1816, %v1821
        %v1828 = vrot.slane %v1822, 3
        %v1829 = vrot.slane %v1823, 3
        %v1830 = vsel %vm1611, %v1828, %v1829
        %v1831 = vrot.slane %v1824, 3
        %v1832 = vsel %vm1611, %v1829, %v1831
        %1833 = vrot.lane.b32.xlu0 %v1830, 124
        %v1834 = vpop.permute.xlu0 %1833
        %1835 = vrot.lane.b32.xlu0 %v1832, 124
        %v1836 = vpop.permute.xlu0 %1835
        %v1839 = vadd.f32 %v1784, %v1834
        %v1840 = vadd.f32 %v1785, %v1836
        %s1841 = sld [smem:[#allocation13 + $0x1a]]
        %v1842 = vstv %s1841
        %v1843 = vmul.f32 %v1842, %v476
        %s1844 = sld [smem:[#allocation13 + $0x4b]]
        %v1845 = vstv %s1844
        %v1846 = vmul.f32 %v1845, %v478
        %v1847 = vadd.f32 %v1843, %v1846
        %v1849 = vrot.slane %v1847, 3
        %1850 = vrot.lane.b32.xlu0 %v1849, 123
        %v1851 = vpop.permute.xlu0 %1850
        %v1853 = vadd.f32 %v1798, %v1851
        %s1854 = sld [smem:[#allocation13 + $0x7c]]
        %v1855 = vstv %s1854
        %v1856 = vmul.f32 %v1855, %v480
        %v1857 = vmul.f32 %v1855, %v481
        %s1858 = sld [smem:[#allocation13 + $0xad]]
        %v1859 = vstv %s1858
        %v1860 = vmul.f32 %v1859, %v482
        %v1861 = vmul.f32 %v1859, %v483
        %v1862 = vadd.f32 %v1856, %v1860
        %v1863 = vadd.f32 %v1857, %v1861
        %v1866 = vrot.slane %v1862, 5
        %v1867 = vrot.slane %v1863, 5
        %v1868 = vsel %vm714, %v1866, %v1867
        %1869 = vrot.lane.b32.xlu0 %v1868, 125
        %v1870 = vpop.permute.xlu0 %1869
        %v1872 = vadd.f32 %v1811, %v1870
        %s1873 = sld [smem:[#allocation13 + $0xde]]
        %v1874 = vstv %s1873
        %v1875 = vmul.f32 %v1874, %v484
        %v1876 = vmul.f32 %v1874, %v485
        %v1877 = vmul.f32 %v1874, %v486
        %s1878 = sld [smem:[#allocation13 + $0x10f]]
        %v1879 = vstv %s1878
        %v1880 = vmul.f32 %v1879, %v487
        %v1881 = vmul.f32 %v1879, %v488
        %v1882 = vmul.f32 %v1879, %v489
        %v1883 = vadd.f32 %v1875, %v1880
        %v1884 = vadd.f32 %v1876, %v1881
        %v1885 = vadd.f32 %v1877, %v1882
        %v1889 = vrot.slane %v1883, 3
        %v1890 = vrot.slane %v1884, 3
        %v1891 = vsel %vm1611, %v1889, %v1890
        %v1892 = vrot.slane %v1885, 3
        %v1893 = vsel %vm1611, %v1890, %v1892
        %1894 = vrot.lane.b32.xlu0 %v1891, 123
        %v1895 = vpop.permute.xlu0 %1894
        %1896 = vrot.lane.b32.xlu0 %v1893, 123
        %v1897 = vpop.permute.xlu0 %1896
        %v1900 = vadd.f32 %v1839, %v1895
        %v1901 = vadd.f32 %v1840, %v1897
        %s1902 = sld [smem:[#allocation13 + $0x1b]]
        %v1903 = vstv %s1902
        %v1904 = vmul.f32 %v1903, %v476
        %s1905 = sld [smem:[#allocation13 + $0x4c]]
        %v1906 = vstv %s1905
        %v1907 = vmul.f32 %v1906, %v478
        %v1908 = vadd.f32 %v1904, %v1907
        %v1910 = vrot.slane %v1908, 3
        %1911 = vrot.lane.b32.xlu0 %v1910, 122
        %v1912 = vpop.permute.xlu0 %1911
        %v1914 = vadd.f32 %v1853, %v1912
        %s1915 = sld [smem:[#allocation13 + $0x7d]]
        %v1916 = vstv %s1915
        %v1917 = vmul.f32 %v1916, %v480
        %v1918 = vmul.f32 %v1916, %v481
        %s1919 = sld [smem:[#allocation13 + $0xae]]
        %v1920 = vstv %s1919
        %v1921 = vmul.f32 %v1920, %v482
        %v1922 = vmul.f32 %v1920, %v483
        %v1923 = vadd.f32 %v1917, %v1921
        %v1924 = vadd.f32 %v1918, %v1922
        %v1927 = vrot.slane %v1923, 6
        %v1928 = vrot.slane %v1924, 6
        %v1929 = vsel %vm764, %v1927, %v1928
        %1930 = vrot.lane.b32.xlu0 %v1929, 125
        %v1931 = vpop.permute.xlu0 %1930
        %v1933 = vadd.f32 %v1872, %v1931
        %s1934 = sld [smem:[#allocation13 + $0xdf]]
        %v1935 = vstv %s1934
        %v1936 = vmul.f32 %v1935, %v484
        %v1937 = vmul.f32 %v1935, %v485
        %v1938 = vmul.f32 %v1935, %v486
        %s1939 = sld [smem:[#allocation13 + $0x110]]
        %v1940 = vstv %s1939
        %v1941 = vmul.f32 %v1940, %v487
        %v1942 = vmul.f32 %v1940, %v488
        %v1943 = vmul.f32 %v1940, %v489
        %v1944 = vadd.f32 %v1936, %v1941
        %v1945 = vadd.f32 %v1937, %v1942
        %v1946 = vadd.f32 %v1938, %v1943
        %v1950 = vrot.slane %v1944, 3
        %v1951 = vrot.slane %v1945, 3
        %v1952 = vsel %vm1611, %v1950, %v1951
        %v1953 = vrot.slane %v1946, 3
        %v1954 = vsel %vm1611, %v1951, %v1953
        %1955 = vrot.lane.b32.xlu0 %v1952, 122
        %v1956 = vpop.permute.xlu0 %1955
        %1957 = vrot.lane.b32.xlu0 %v1954, 122
        %v1958 = vpop.permute.xlu0 %1957
        %v1961 = vadd.f32 %v1900, %v1956
        %v1962 = vadd.f32 %v1901, %v1958
        %s1963 = sld [smem:[#allocation13 + $0x1c]]
        %v1964 = vstv %s1963
        %v1965 = vmul.f32 %v1964, %v476
        %s1966 = sld [smem:[#allocation13 + $0x4d]]
        %v1967 = vstv %s1966
        %v1968 = vmul.f32 %v1967, %v478
        %v1969 = vadd.f32 %v1965, %v1968
        %v1971 = vrot.slane %v1969, 4
        %v1973 = vadd.f32 %v1914, %v1971
        %s1974 = sld [smem:[#allocation13 + $0x7e]]
        %v1975 = vstv %s1974
        %v1976 = vmul.f32 %v1975, %v480
        %s1977 = sld [smem:[#allocation13 + $0xaf]]
        %v1978 = vstv %s1977
        %v1979 = vmul.f32 %v1978, %v482
        %v1980 = vadd.f32 %v1976, %v1979
        %1982 = vrot.lane.b32.xlu0 %v1980, 124
        %v1983 = vpop.permute.xlu0 %1982
        %v1985 = vadd.f32 %v1933, %v1983
        %s1986 = sld [smem:[#allocation13 + $0xe0]]
        %v1987 = vstv %s1986
        %v1988 = vmul.f32 %v1987, %v484
        %v1989 = vmul.f32 %v1987, %v485
        %v1990 = vmul.f32 %v1987, %v486
        %s1991 = sld [smem:[#allocation13 + $0x111]]
        %v1992 = vstv %s1991
        %v1993 = vmul.f32 %v1992, %v487
        %v1994 = vmul.f32 %v1992, %v488
        %v1995 = vmul.f32 %v1992, %v489
        %v1996 = vadd.f32 %v1988, %v1993
        %v1997 = vadd.f32 %v1989, %v1994
        %v1998 = vadd.f32 %v1990, %v1995
        %vm2002 = vcmask 1043456
        %v2003 = vrot.slane %v1996, 4
        %v2004 = vrot.slane %v1997, 4
        %v2005 = vsel %vm2002, %v2003, %v2004
        %v2006 = vrot.slane %v1998, 4
        %v2007 = vsel %vm2002, %v2004, %v2006
        %v2010 = vadd.f32 %v1961, %v2005
        %v2011 = vadd.f32 %v1962, %v2007
        %s2012 = sld [smem:[#allocation13 + $0x1d]]
        %v2013 = vstv %s2012
        %v2014 = vmul.f32 %v2013, %v476
        %s2015 = sld [smem:[#allocation13 + $0x4e]]
        %v2016 = vstv %s2015
        %v2017 = vmul.f32 %v2016, %v478
        %v2018 = vadd.f32 %v2014, %v2017
        %v2020 = vrot.slane %v2018, 4
        %2021 = vrot.lane.b32.xlu0 %v2020, 127
        %v2022 = vpop.permute.xlu0 %2021
        %v2024 = vadd.f32 %v1973, %v2022
        %s2025 = sld [smem:[#allocation13 + $0x7f]]
        %v2026 = vstv %s2025
        %v2027 = vmul.f32 %v2026, %v480
        %s2028 = sld [smem:[#allocation13 + $0xb0]]
        %v2029 = vstv %s2028
        %v2030 = vmul.f32 %v2029, %v482
        %v2031 = vadd.f32 %v2027, %v2030
        %v2033 = vrot.slane %v2031, 1
        %2034 = vrot.lane.b32.xlu0 %v2033, 124
        %v2035 = vpop.permute.xlu0 %2034
        %v2037 = vadd.f32 %v1985, %v2035
        %s2038 = sld [smem:[#allocation13 + $0xe1]]
        %v2039 = vstv %s2038
        %v2040 = vmul.f32 %v2039, %v484
        %v2041 = vmul.f32 %v2039, %v485
        %v2042 = vmul.f32 %v2039, %v486
        %s2043 = sld [smem:[#allocation13 + $0x112]]
        %v2044 = vstv %s2043
        %v2045 = vmul.f32 %v2044, %v487
        %v2046 = vmul.f32 %v2044, %v488
        %v2047 = vmul.f32 %v2044, %v489
        %v2048 = vadd.f32 %v2040, %v2045
        %v2049 = vadd.f32 %v2041, %v2046
        %v2050 = vadd.f32 %v2042, %v2047
        %v2054 = vrot.slane %v2048, 4
        %v2055 = vrot.slane %v2049, 4
        %v2056 = vsel %vm2002, %v2054, %v2055
        %v2057 = vrot.slane %v2050, 4
        %v2058 = vsel %vm2002, %v2055, %v2057
        %2059 = vrot.lane.b32.xlu0 %v2056, 127
        %v2060 = vpop.permute.xlu0 %2059
        %2061 = vrot.lane.b32.xlu0 %v2058, 127
        %v2062 = vpop.permute.xlu0 %2061
        %v2065 = vadd.f32 %v2010, %v2060
        %v2066 = vadd.f32 %v2011, %v2062
        %s2067 = sld [smem:[#allocation13 + $0x1e]]
        %v2068 = vstv %s2067
        %v2069 = vmul.f32 %v2068, %v476
        %s2070 = sld [smem:[#allocation13 + $0x4f]]
        %v2071 = vstv %s2070
        %v2072 = vmul.f32 %v2071, %v478
        %v2073 = vadd.f32 %v2069, %v2072
        %v2075 = vrot.slane %v2073, 4
        %2076 = vrot.lane.b32.xlu0 %v2075, 126
        %v2077 = vpop.permute.xlu0 %2076
        %v2079 = vadd.f32 %v2024, %v2077
        %s2080 = sld [smem:[#allocation13 + $0x80]]
        %v2081 = vstv %s2080
        %v2082 = vmul.f32 %v2081, %v480
        %s2083 = sld [smem:[#allocation13 + $0xb1]]
        %v2084 = vstv %s2083
        %v2085 = vmul.f32 %v2084, %v482
        %v2086 = vadd.f32 %v2082, %v2085
        %v2088 = vrot.slane %v2086, 2
        %2089 = vrot.lane.b32.xlu0 %v2088, 124
        %v2090 = vpop.permute.xlu0 %2089
        %v2092 = vadd.f32 %v2037, %v2090
        %s2093 = sld [smem:[#allocation13 + $0xe2]]
        %v2094 = vstv %s2093
        %v2095 = vmul.f32 %v2094, %v484
        %v2096 = vmul.f32 %v2094, %v485
        %v2097 = vmul.f32 %v2094, %v486
        %s2098 = sld [smem:[#allocation13 + $0x113]]
        %v2099 = vstv %s2098
        %v2100 = vmul.f32 %v2099, %v487
        %v2101 = vmul.f32 %v2099, %v488
        %v2102 = vmul.f32 %v2099, %v489
        %v2103 = vadd.f32 %v2095, %v2100
        %v2104 = vadd.f32 %v2096, %v2101
        %v2105 = vadd.f32 %v2097, %v2102
        %v2109 = vrot.slane %v2103, 4
        %v2110 = vrot.slane %v2104, 4
        %v2111 = vsel %vm2002, %v2109, %v2110
        %v2112 = vrot.slane %v2105, 4
        %v2113 = vsel %vm2002, %v2110, %v2112
        %2114 = vrot.lane.b32.xlu0 %v2111, 126
        %v2115 = vpop.permute.xlu0 %2114
        %2116 = vrot.lane.b32.xlu0 %v2113, 126
        %v2117 = vpop.permute.xlu0 %2116
        %v2120 = vadd.f32 %v2065, %v2115
        %v2121 = vadd.f32 %v2066, %v2117
        %s2122 = sld [smem:[#allocation13 + $0x1f]]
        %v2123 = vstv %s2122
        %v2124 = vmul.f32 %v2123, %v476
        %s2125 = sld [smem:[#allocation13 + $0x50]]
        %v2126 = vstv %s2125
        %v2127 = vmul.f32 %v2126, %v478
        %v2128 = vadd.f32 %v2124, %v2127
        %v2130 = vrot.slane %v2128, 4
        %2131 = vrot.lane.b32.xlu0 %v2130, 125
        %v2132 = vpop.permute.xlu0 %2131
        %v2134 = vadd.f32 %v2079, %v2132
        %s2135 = sld [smem:[#allocation13 + $0x81]]
        %v2136 = vstv %s2135
        %v2137 = vmul.f32 %v2136, %v480
        %s2138 = sld [smem:[#allocation13 + $0xb2]]
        %v2139 = vstv %s2138
        %v2140 = vmul.f32 %v2139, %v482
        %v2141 = vadd.f32 %v2137, %v2140
        %v2143 = vrot.slane %v2141, 3
        %2144 = vrot.lane.b32.xlu0 %v2143, 124
        %v2145 = vpop.permute.xlu0 %2144
        %v2147 = vadd.f32 %v2092, %v2145
        %s2148 = sld [smem:[#allocation13 + $0xe3]]
        %v2149 = vstv %s2148
        %v2150 = vmul.f32 %v2149, %v484
        %v2151 = vmul.f32 %v2149, %v485
        %v2152 = vmul.f32 %v2149, %v486
        %s2153 = sld [smem:[#allocation13 + $0x114]]
        %v2154 = vstv %s2153
        %v2155 = vmul.f32 %v2154, %v487
        %v2156 = vmul.f32 %v2154, %v488
        %v2157 = vmul.f32 %v2154, %v489
        %v2158 = vadd.f32 %v2150, %v2155
        %v2159 = vadd.f32 %v2151, %v2156
        %v2160 = vadd.f32 %v2152, %v2157
        %v2164 = vrot.slane %v2158, 4
        %v2165 = vrot.slane %v2159, 4
        %v2166 = vsel %vm2002, %v2164, %v2165
        %v2167 = vrot.slane %v2160, 4
        %v2168 = vsel %vm2002, %v2165, %v2167
        %2169 = vrot.lane.b32.xlu0 %v2166, 125
        %v2170 = vpop.permute.xlu0 %2169
        %2171 = vrot.lane.b32.xlu0 %v2168, 125
        %v2172 = vpop.permute.xlu0 %2171
        %v2175 = vadd.f32 %v2120, %v2170
        %v2176 = vadd.f32 %v2121, %v2172
        %s2177 = sld [smem:[#allocation13 + $0x20]]
        %v2178 = vstv %s2177
        %v2179 = vmul.f32 %v2178, %v476
        %s2180 = sld [smem:[#allocation13 + $0x51]]
        %v2181 = vstv %s2180
        %v2182 = vmul.f32 %v2181, %v478
        %v2183 = vadd.f32 %v2179, %v2182
        %v2185 = vrot.slane %v2183, 4
        %2186 = vrot.lane.b32.xlu0 %v2185, 124
        %v2187 = vpop.permute.xlu0 %2186
        %v2189 = vadd.f32 %v2134, %v2187
        %s2190 = sld [smem:[#allocation13 + $0x82]]
        %v2191 = vstv %s2190
        %v2192 = vmul.f32 %v2191, %v480
        %s2193 = sld [smem:[#allocation13 + $0xb3]]
        %v2194 = vstv %s2193
        %v2195 = vmul.f32 %v2194, %v482
        %v2196 = vadd.f32 %v2192, %v2195
        %v2198 = vrot.slane %v2196, 4
        %2199 = vrot.lane.b32.xlu0 %v2198, 124
        %v2200 = vpop.permute.xlu0 %2199
        %v2202 = vadd.f32 %v2147, %v2200
        %s2203 = sld [smem:[#allocation13 + $0xe4]]
        %v2204 = vstv %s2203
        %v2205 = vmul.f32 %v2204, %v484
        %v2206 = vmul.f32 %v2204, %v485
        %v2207 = vmul.f32 %v2204, %v486
        %s2208 = sld [smem:[#allocation13 + $0x115]]
        %v2209 = vstv %s2208
        %v2210 = vmul.f32 %v2209, %v487
        %v2211 = vmul.f32 %v2209, %v488
        %v2212 = vmul.f32 %v2209, %v489
        %v2213 = vadd.f32 %v2205, %v2210
        %v2214 = vadd.f32 %v2206, %v2211
        %v2215 = vadd.f32 %v2207, %v2212
        %v2219 = vrot.slane %v2213, 4
        %v2220 = vrot.slane %v2214, 4
        %v2221 = vsel %vm2002, %v2219, %v2220
        %v2222 = vrot.slane %v2215, 4
        %v2223 = vsel %vm2002, %v2220, %v2222
        %2224 = vrot.lane.b32.xlu0 %v2221, 124
        %v2225 = vpop.permute.xlu0 %2224
        %2226 = vrot.lane.b32.xlu0 %v2223, 124
        %v2227 = vpop.permute.xlu0 %2226
        %v2230 = vadd.f32 %v2175, %v2225
        %v2231 = vadd.f32 %v2176, %v2227
        %s2232 = sld [smem:[#allocation13 + $0x21]]
        %v2233 = vstv %s2232
        %v2234 = vmul.f32 %v2233, %v476
        %s2235 = sld [smem:[#allocation13 + $0x52]]
        %v2236 = vstv %s2235
        %v2237 = vmul.f32 %v2236, %v478
        %v2238 = vadd.f32 %v2234, %v2237
        %v2240 = vrot.slane %v2238, 4
        %2241 = vrot.lane.b32.xlu0 %v2240, 123
        %v2242 = vpop.permute.xlu0 %2241
        %v2244 = vadd.f32 %v2189, %v2242
        %s2245 = sld [smem:[#allocation13 + $0x83]]
        %v2246 = vstv %s2245
        %v2247 = vmul.f32 %v2246, %v480
        %v2248 = vmul.f32 %v2246, %v481
        %s2249 = sld [smem:[#allocation13 + $0xb4]]
        %v2250 = vstv %s2249
        %v2251 = vmul.f32 %v2250, %v482
        %v2252 = vmul.f32 %v2250, %v483
        %v2253 = vadd.f32 %v2247, %v2251
        %v2254 = vadd.f32 %v2248, %v2252
        %v2257 = vrot.slane %v2253, 5
        %v2258 = vrot.slane %v2254, 5
        %v2259 = vsel %vm714, %v2257, %v2258
        %2260 = vrot.lane.b32.xlu0 %v2259, 124
        %v2261 = vpop.permute.xlu0 %2260
        %v2263 = vadd.f32 %v2202, %v2261
        %s2264 = sld [smem:[#allocation13 + $0xe5]]
        %v2265 = vstv %s2264
        %v2266 = vmul.f32 %v2265, %v484
        %v2267 = vmul.f32 %v2265, %v485
        %v2268 = vmul.f32 %v2265, %v486
        %s2269 = sld [smem:[#allocation13 + $0x116]]
        %v2270 = vstv %s2269
        %v2271 = vmul.f32 %v2270, %v487
        %v2272 = vmul.f32 %v2270, %v488
        %v2273 = vmul.f32 %v2270, %v489
        %v2274 = vadd.f32 %v2266, %v2271
        %v2275 = vadd.f32 %v2267, %v2272
        %v2276 = vadd.f32 %v2268, %v2273
        %v2280 = vrot.slane %v2274, 4
        %v2281 = vrot.slane %v2275, 4
        %v2282 = vsel %vm2002, %v2280, %v2281
        %v2283 = vrot.slane %v2276, 4
        %v2284 = vsel %vm2002, %v2281, %v2283
        %2285 = vrot.lane.b32.xlu0 %v2282, 123
        %v2286 = vpop.permute.xlu0 %2285
        %2287 = vrot.lane.b32.xlu0 %v2284, 123
        %v2288 = vpop.permute.xlu0 %2287
        %v2291 = vadd.f32 %v2230, %v2286
        %v2292 = vadd.f32 %v2231, %v2288
        %s2293 = sld [smem:[#allocation13 + $0x22]]
        %v2294 = vstv %s2293
        %v2295 = vmul.f32 %v2294, %v476
        %s2296 = sld [smem:[#allocation13 + $0x53]]
        %v2297 = vstv %s2296
        %v2298 = vmul.f32 %v2297, %v478
        %v2299 = vadd.f32 %v2295, %v2298
        %v2301 = vrot.slane %v2299, 4
        %2302 = vrot.lane.b32.xlu0 %v2301, 122
        %v2303 = vpop.permute.xlu0 %2302
        %v2305 = vadd.f32 %v2244, %v2303
        %s2306 = sld [smem:[#allocation13 + $0x84]]
        %v2307 = vstv %s2306
        %v2308 = vmul.f32 %v2307, %v480
        %v2309 = vmul.f32 %v2307, %v481
        %s2310 = sld [smem:[#allocation13 + $0xb5]]
        %v2311 = vstv %s2310
        %v2312 = vmul.f32 %v2311, %v482
        %v2313 = vmul.f32 %v2311, %v483
        %v2314 = vadd.f32 %v2308, %v2312
        %v2315 = vadd.f32 %v2309, %v2313
        %v2318 = vrot.slane %v2314, 6
        %v2319 = vrot.slane %v2315, 6
        %v2320 = vsel %vm764, %v2318, %v2319
        %2321 = vrot.lane.b32.xlu0 %v2320, 124
        %v2322 = vpop.permute.xlu0 %2321
        %v2324 = vadd.f32 %v2263, %v2322
        %s2325 = sld [smem:[#allocation13 + $0xe6]]
        %v2326 = vstv %s2325
        %v2327 = vmul.f32 %v2326, %v484
        %v2328 = vmul.f32 %v2326, %v485
        %v2329 = vmul.f32 %v2326, %v486
        %s2330 = sld [smem:[#allocation13 + $0x117]]
        %v2331 = vstv %s2330
        %v2332 = vmul.f32 %v2331, %v487
        %v2333 = vmul.f32 %v2331, %v488
        %v2334 = vmul.f32 %v2331, %v489
        %v2335 = vadd.f32 %v2327, %v2332
        %v2336 = vadd.f32 %v2328, %v2333
        %v2337 = vadd.f32 %v2329, %v2334
        %v2341 = vrot.slane %v2335, 4
        %v2342 = vrot.slane %v2336, 4
        %v2343 = vsel %vm2002, %v2341, %v2342
        %v2344 = vrot.slane %v2337, 4
        %v2345 = vsel %vm2002, %v2342, %v2344
        %2346 = vrot.lane.b32.xlu0 %v2343, 122
        %v2347 = vpop.permute.xlu0 %2346
        %2348 = vrot.lane.b32.xlu0 %v2345, 122
        %v2349 = vpop.permute.xlu0 %2348
        %v2352 = vadd.f32 %v2291, %v2347
        %v2353 = vadd.f32 %v2292, %v2349
        %s2354 = sld [smem:[#allocation13 + $0x23]]
        %v2355 = vstv %s2354
        %v2356 = vmul.f32 %v2355, %v476
        %v2357 = vmul.f32 %v2355, %v477
        %s2358 = sld [smem:[#allocation13 + $0x54]]
        %v2359 = vstv %s2358
        %v2360 = vmul.f32 %v2359, %v478
        %v2361 = vmul.f32 %v2359, %v479
        %v2362 = vadd.f32 %v2356, %v2360
        %v2363 = vadd.f32 %v2357, %v2361
        %v2366 = vrot.slane %v2362, 5
        %v2367 = vrot.slane %v2363, 5
        %v2368 = vsel %vm714, %v2366, %v2367
        %v2370 = vadd.f32 %v2305, %v2368
        %s2371 = sld [smem:[#allocation13 + $0x85]]
        %v2372 = vstv %s2371
        %v2373 = vmul.f32 %v2372, %v480
        %s2374 = sld [smem:[#allocation13 + $0xb6]]
        %v2375 = vstv %s2374
        %v2376 = vmul.f32 %v2375, %v482
        %v2377 = vadd.f32 %v2373, %v2376
        %2379 = vrot.lane.b32.xlu0 %v2377, 123
        %v2380 = vpop.permute.xlu0 %2379
        %v2382 = vadd.f32 %v2324, %v2380
        %s2383 = sld [smem:[#allocation13 + $0xe7]]
        %v2384 = vstv %s2383
        %v2385 = vmul.f32 %v2384, %v484
        %v2386 = vmul.f32 %v2384, %v485
        %v2387 = vmul.f32 %v2384, %v486
        %s2388 = sld [smem:[#allocation13 + $0x118]]
        %v2389 = vstv %s2388
        %v2390 = vmul.f32 %v2389, %v487
        %v2391 = vmul.f32 %v2389, %v488
        %v2392 = vmul.f32 %v2389, %v489
        %v2393 = vadd.f32 %v2385, %v2390
        %v2394 = vadd.f32 %v2386, %v2391
        %v2395 = vadd.f32 %v2387, %v2392
        %v2399 = vrot.slane %v2393, 5
        %v2400 = vrot.slane %v2394, 5
        %v2401 = vsel %vm714, %v2399, %v2400
        %v2402 = vrot.slane %v2395, 5
        %v2403 = vsel %vm714, %v2400, %v2402
        %v2406 = vadd.f32 %v2352, %v2401
        %v2407 = vadd.f32 %v2353, %v2403
        %s2408 = sld [smem:[#allocation13 + $0x24]]
        %v2409 = vstv %s2408
        %v2410 = vmul.f32 %v2409, %v476
        %v2411 = vmul.f32 %v2409, %v477
        %s2412 = sld [smem:[#allocation13 + $0x55]]
        %v2413 = vstv %s2412
        %v2414 = vmul.f32 %v2413, %v478
        %v2415 = vmul.f32 %v2413, %v479
        %v2416 = vadd.f32 %v2410, %v2414
        %v2417 = vadd.f32 %v2411, %v2415
        %v2420 = vrot.slane %v2416, 5
        %v2421 = vrot.slane %v2417, 5
        %v2422 = vsel %vm714, %v2420, %v2421
        %2423 = vrot.lane.b32.xlu0 %v2422, 127
        %v2424 = vpop.permute.xlu0 %2423
        %v2426 = vadd.f32 %v2370, %v2424
        %s2427 = sld [smem:[#allocation13 + $0x86]]
        %v2428 = vstv %s2427
        %v2429 = vmul.f32 %v2428, %v480
        %s2430 = sld [smem:[#allocation13 + $0xb7]]
        %v2431 = vstv %s2430
        %v2432 = vmul.f32 %v2431, %v482
        %v2433 = vadd.f32 %v2429, %v2432
        %v2435 = vrot.slane %v2433, 1
        %2436 = vrot.lane.b32.xlu0 %v2435, 123
        %v2437 = vpop.permute.xlu0 %2436
        %v2439 = vadd.f32 %v2382, %v2437
        %s2440 = sld [smem:[#allocation13 + $0xe8]]
        %v2441 = vstv %s2440
        %v2442 = vmul.f32 %v2441, %v484
        %v2443 = vmul.f32 %v2441, %v485
        %v2444 = vmul.f32 %v2441, %v486
        %s2445 = sld [smem:[#allocation13 + $0x119]]
        %v2446 = vstv %s2445
        %v2447 = vmul.f32 %v2446, %v487
        %v2448 = vmul.f32 %v2446, %v488
        %v2449 = vmul.f32 %v2446, %v489
        %v2450 = vadd.f32 %v2442, %v2447
        %v2451 = vadd.f32 %v2443, %v2448
        %v2452 = vadd.f32 %v2444, %v2449
        %v2456 = vrot.slane %v2450, 5
        %v2457 = vrot.slane %v2451, 5
        %v2458 = vsel %vm714, %v2456, %v2457
        %v2459 = vrot.slane %v2452, 5
        %v2460 = vsel %vm714, %v2457, %v2459
        %2461 = vrot.lane.b32.xlu0 %v2458, 127
        %v2462 = vpop.permute.xlu0 %2461
        %2463 = vrot.lane.b32.xlu0 %v2460, 127
        %v2464 = vpop.permute.xlu0 %2463
        %v2467 = vadd.f32 %v2406, %v2462
        %v2468 = vadd.f32 %v2407, %v2464
        %s2469 = sld [smem:[#allocation13 + $0x25]]
        %v2470 = vstv %s2469
        %v2471 = vmul.f32 %v2470, %v476
        %v2472 = vmul.f32 %v2470, %v477
        %s2473 = sld [smem:[#allocation13 + $0x56]]
        %v2474 = vstv %s2473
        %v2475 = vmul.f32 %v2474, %v478
        %v2476 = vmul.f32 %v2474, %v479
        %v2477 = vadd.f32 %v2471, %v2475
        %v2478 = vadd.f32 %v2472, %v2476
        %v2481 = vrot.slane %v2477, 5
        %v2482 = vrot.slane %v2478, 5
        %v2483 = vsel %vm714, %v2481, %v2482
        %2484 = vrot.lane.b32.xlu0 %v2483, 126
        %v2485 = vpop.permute.xlu0 %2484
        %v2487 = vadd.f32 %v2426, %v2485
        %s2488 = sld [smem:[#allocation13 + $0x87]]
        %v2489 = vstv %s2488
        %v2490 = vmul.f32 %v2489, %v480
        %s2491 = sld [smem:[#allocation13 + $0xb8]]
        %v2492 = vstv %s2491
        %v2493 = vmul.f32 %v2492, %v482
        %v2494 = vadd.f32 %v2490, %v2493
        %v2496 = vrot.slane %v2494, 2
        %2497 = vrot.lane.b32.xlu0 %v2496, 123
        %v2498 = vpop.permute.xlu0 %2497
        %v2500 = vadd.f32 %v2439, %v2498
        %s2501 = sld [smem:[#allocation13 + $0xe9]]
        %v2502 = vstv %s2501
        %v2503 = vmul.f32 %v2502, %v484
        %v2504 = vmul.f32 %v2502, %v485
        %v2505 = vmul.f32 %v2502, %v486
        %s2506 = sld [smem:[#allocation13 + $0x11a]]
        %v2507 = vstv %s2506
        %v2508 = vmul.f32 %v2507, %v487
        %v2509 = vmul.f32 %v2507, %v488
        %v2510 = vmul.f32 %v2507, %v489
        %v2511 = vadd.f32 %v2503, %v2508
        %v2512 = vadd.f32 %v2504, %v2509
        %v2513 = vadd.f32 %v2505, %v2510
        %v2517 = vrot.slane %v2511, 5
        %v2518 = vrot.slane %v2512, 5
        %v2519 = vsel %vm714, %v2517, %v2518
        %v2520 = vrot.slane %v2513, 5
        %v2521 = vsel %vm714, %v2518, %v2520
        %2522 = vrot.lane.b32.xlu0 %v2519, 126
        %v2523 = vpop.permute.xlu0 %2522
        %2524 = vrot.lane.b32.xlu0 %v2521, 126
        %v2525 = vpop.permute.xlu0 %2524
        %v2528 = vadd.f32 %v2467, %v2523
        %v2529 = vadd.f32 %v2468, %v2525
        %s2530 = sld [smem:[#allocation13 + $0x26]]
        %v2531 = vstv %s2530
        %v2532 = vmul.f32 %v2531, %v476
        %v2533 = vmul.f32 %v2531, %v477
        %s2534 = sld [smem:[#allocation13 + $0x57]]
        %v2535 = vstv %s2534
        %v2536 = vmul.f32 %v2535, %v478
        %v2537 = vmul.f32 %v2535, %v479
        %v2538 = vadd.f32 %v2532, %v2536
        %v2539 = vadd.f32 %v2533, %v2537
        %v2542 = vrot.slane %v2538, 5
        %v2543 = vrot.slane %v2539, 5
        %v2544 = vsel %vm714, %v2542, %v2543
        %2545 = vrot.lane.b32.xlu0 %v2544, 125
        %v2546 = vpop.permute.xlu0 %2545
        %v2548 = vadd.f32 %v2487, %v2546
        %s2549 = sld [smem:[#allocation13 + $0x88]]
        %v2550 = vstv %s2549
        %v2551 = vmul.f32 %v2550, %v480
        %s2552 = sld [smem:[#allocation13 + $0xb9]]
        %v2553 = vstv %s2552
        %v2554 = vmul.f32 %v2553, %v482
        %v2555 = vadd.f32 %v2551, %v2554
        %v2557 = vrot.slane %v2555, 3
        %2558 = vrot.lane.b32.xlu0 %v2557, 123
        %v2559 = vpop.permute.xlu0 %2558
        %v2561 = vadd.f32 %v2500, %v2559
        %s2562 = sld [smem:[#allocation13 + $0xea]]
        %v2563 = vstv %s2562
        %v2564 = vmul.f32 %v2563, %v484
        %v2565 = vmul.f32 %v2563, %v485
        %v2566 = vmul.f32 %v2563, %v486
        %s2567 = sld [smem:[#allocation13 + $0x11b]]
        %v2568 = vstv %s2567
        %v2569 = vmul.f32 %v2568, %v487
        %v2570 = vmul.f32 %v2568, %v488
        %v2571 = vmul.f32 %v2568, %v489
        %v2572 = vadd.f32 %v2564, %v2569
        %v2573 = vadd.f32 %v2565, %v2570
        %v2574 = vadd.f32 %v2566, %v2571
        %v2578 = vrot.slane %v2572, 5
        %v2579 = vrot.slane %v2573, 5
        %v2580 = vsel %vm714, %v2578, %v2579
        %v2581 = vrot.slane %v2574, 5
        %v2582 = vsel %vm714, %v2579, %v2581
        %2583 = vrot.lane.b32.xlu0 %v2580, 125
        %v2584 = vpop.permute.xlu0 %2583
        %2585 = vrot.lane.b32.xlu0 %v2582, 125
        %v2586 = vpop.permute.xlu0 %2585
        %v2589 = vadd.f32 %v2528, %v2584
        %v2590 = vadd.f32 %v2529, %v2586
        %s2591 = sld [smem:[#allocation13 + $0x27]]
        %v2592 = vstv %s2591
        %v2593 = vmul.f32 %v2592, %v476
        %v2594 = vmul.f32 %v2592, %v477
        %s2595 = sld [smem:[#allocation13 + $0x58]]
        %v2596 = vstv %s2595
        %v2597 = vmul.f32 %v2596, %v478
        %v2598 = vmul.f32 %v2596, %v479
        %v2599 = vadd.f32 %v2593, %v2597
        %v2600 = vadd.f32 %v2594, %v2598
        %v2603 = vrot.slane %v2599, 5
        %v2604 = vrot.slane %v2600, 5
        %v2605 = vsel %vm714, %v2603, %v2604
        %2606 = vrot.lane.b32.xlu0 %v2605, 124
        %v2607 = vpop.permute.xlu0 %2606
        %v2609 = vadd.f32 %v2548, %v2607
        %s2610 = sld [smem:[#allocation13 + $0x89]]
        %v2611 = vstv %s2610
        %v2612 = vmul.f32 %v2611, %v480
        %s2613 = sld [smem:[#allocation13 + $0xba]]
        %v2614 = vstv %s2613
        %v2615 = vmul.f32 %v2614, %v482
        %v2616 = vadd.f32 %v2612, %v2615
        %v2618 = vrot.slane %v2616, 4
        %2619 = vrot.lane.b32.xlu0 %v2618, 123
        %v2620 = vpop.permute.xlu0 %2619
        %v2622 = vadd.f32 %v2561, %v2620
        %s2623 = sld [smem:[#allocation13 + $0xeb]]
        %v2624 = vstv %s2623
        %v2625 = vmul.f32 %v2624, %v484
        %v2626 = vmul.f32 %v2624, %v485
        %v2627 = vmul.f32 %v2624, %v486
        %s2628 = sld [smem:[#allocation13 + $0x11c]]
        %v2629 = vstv %s2628
        %v2630 = vmul.f32 %v2629, %v487
        %v2631 = vmul.f32 %v2629, %v488
        %v2632 = vmul.f32 %v2629, %v489
        %v2633 = vadd.f32 %v2625, %v2630
        %v2634 = vadd.f32 %v2626, %v2631
        %v2635 = vadd.f32 %v2627, %v2632
        %v2639 = vrot.slane %v2633, 5
        %v2640 = vrot.slane %v2634, 5
        %v2641 = vsel %vm714, %v2639, %v2640
        %v2642 = vrot.slane %v2635, 5
        %v2643 = vsel %vm714, %v2640, %v2642
        %2644 = vrot.lane.b32.xlu0 %v2641, 124
        %v2645 = vpop.permute.xlu0 %2644
        %2646 = vrot.lane.b32.xlu0 %v2643, 124
        %v2647 = vpop.permute.xlu0 %2646
        %v2650 = vadd.f32 %v2589, %v2645
        %v2651 = vadd.f32 %v2590, %v2647
        %s2652 = sld [smem:[#allocation13 + $0x28]]
        %v2653 = vstv %s2652
        %v2654 = vmul.f32 %v2653, %v476
        %v2655 = vmul.f32 %v2653, %v477
        %s2656 = sld [smem:[#allocation13 + $0x59]]
        %v2657 = vstv %s2656
        %v2658 = vmul.f32 %v2657, %v478
        %v2659 = vmul.f32 %v2657, %v479
        %v2660 = vadd.f32 %v2654, %v2658
        %v2661 = vadd.f32 %v2655, %v2659
        %v2664 = vrot.slane %v2660, 5
        %v2665 = vrot.slane %v2661, 5
        %v2666 = vsel %vm714, %v2664, %v2665
        %2667 = vrot.lane.b32.xlu0 %v2666, 123
        %v2668 = vpop.permute.xlu0 %2667
        %v2670 = vadd.f32 %v2609, %v2668
        %s2671 = sld [smem:[#allocation13 + $0x8a]]
        %v2672 = vstv %s2671
        %v2673 = vmul.f32 %v2672, %v480
        %v2674 = vmul.f32 %v2672, %v481
        %s2675 = sld [smem:[#allocation13 + $0xbb]]
        %v2676 = vstv %s2675
        %v2677 = vmul.f32 %v2676, %v482
        %v2678 = vmul.f32 %v2676, %v483
        %v2679 = vadd.f32 %v2673, %v2677
        %v2680 = vadd.f32 %v2674, %v2678
        %v2683 = vrot.slane %v2679, 5
        %v2684 = vrot.slane %v2680, 5
        %v2685 = vsel %vm714, %v2683, %v2684
        %2686 = vrot.lane.b32.xlu0 %v2685, 123
        %v2687 = vpop.permute.xlu0 %2686
        %v2689 = vadd.f32 %v2622, %v2687
        %s2690 = sld [smem:[#allocation13 + $0xec]]
        %v2691 = vstv %s2690
        %v2692 = vmul.f32 %v2691, %v484
        %v2693 = vmul.f32 %v2691, %v485
        %v2694 = vmul.f32 %v2691, %v486
        %s2695 = sld [smem:[#allocation13 + $0x11d]]
        %v2696 = vstv %s2695
        %v2697 = vmul.f32 %v2696, %v487
        %v2698 = vmul.f32 %v2696, %v488
        %v2699 = vmul.f32 %v2696, %v489
        %v2700 = vadd.f32 %v2692, %v2697
        %v2701 = vadd.f32 %v2693, %v2698
        %v2702 = vadd.f32 %v2694, %v2699
        %v2706 = vrot.slane %v2700, 5
        %v2707 = vrot.slane %v2701, 5
        %v2708 = vsel %vm714, %v2706, %v2707
        %v2709 = vrot.slane %v2702, 5
        %v2710 = vsel %vm714, %v2707, %v2709
        %2711 = vrot.lane.b32.xlu0 %v2708, 123
        %v2712 = vpop.permute.xlu0 %2711
        %2713 = vrot.lane.b32.xlu0 %v2710, 123
        %v2714 = vpop.permute.xlu0 %2713
        %v2717 = vadd.f32 %v2650, %v2712
        %v2718 = vadd.f32 %v2651, %v2714
        %s2719 = sld [smem:[#allocation13 + $0x29]]
        %v2720 = vstv %s2719
        %v2721 = vmul.f32 %v2720, %v476
        %v2722 = vmul.f32 %v2720, %v477
        %s2723 = sld [smem:[#allocation13 + $0x5a]]
        %v2724 = vstv %s2723
        %v2725 = vmul.f32 %v2724, %v478
        %v2726 = vmul.f32 %v2724, %v479
        %v2727 = vadd.f32 %v2721, %v2725
        %v2728 = vadd.f32 %v2722, %v2726
        %v2731 = vrot.slane %v2727, 5
        %v2732 = vrot.slane %v2728, 5
        %v2733 = vsel %vm714, %v2731, %v2732
        %2734 = vrot.lane.b32.xlu0 %v2733, 122
        %v2735 = vpop.permute.xlu0 %2734
        %v2737 = vadd.f32 %v2670, %v2735
        %s2738 = sld [smem:[#allocation13 + $0x8b]]
        %v2739 = vstv %s2738
        %v2740 = vmul.f32 %v2739, %v480
        %v2741 = vmul.f32 %v2739, %v481
        %s2742 = sld [smem:[#allocation13 + $0xbc]]
        %v2743 = vstv %s2742
        %v2744 = vmul.f32 %v2743, %v482
        %v2745 = vmul.f32 %v2743, %v483
        %v2746 = vadd.f32 %v2740, %v2744
        %v2747 = vadd.f32 %v2741, %v2745
        %v2750 = vrot.slane %v2746, 6
        %v2751 = vrot.slane %v2747, 6
        %v2752 = vsel %vm764, %v2750, %v2751
        %2753 = vrot.lane.b32.xlu0 %v2752, 123
        %v2754 = vpop.permute.xlu0 %2753
        %v2756 = vadd.f32 %v2689, %v2754
        %s2757 = sld [smem:[#allocation13 + $0xed]]
        %v2758 = vstv %s2757
        %v2759 = vmul.f32 %v2758, %v484
        %v2760 = vmul.f32 %v2758, %v485
        %v2761 = vmul.f32 %v2758, %v486
        %s2762 = sld [smem:[#allocation13 + $0x11e]]
        %v2763 = vstv %s2762
        %v2764 = vmul.f32 %v2763, %v487
        %v2765 = vmul.f32 %v2763, %v488
        %v2766 = vmul.f32 %v2763, %v489
        %v2767 = vadd.f32 %v2759, %v2764
        %v2768 = vadd.f32 %v2760, %v2765
        %v2769 = vadd.f32 %v2761, %v2766
        %v2773 = vrot.slane %v2767, 5
        %v2774 = vrot.slane %v2768, 5
        %v2775 = vsel %vm714, %v2773, %v2774
        %v2776 = vrot.slane %v2769, 5
        %v2777 = vsel %vm714, %v2774, %v2776
        %2778 = vrot.lane.b32.xlu0 %v2775, 122
        %v2779 = vpop.permute.xlu0 %2778
        %2780 = vrot.lane.b32.xlu0 %v2777, 122
        %v2781 = vpop.permute.xlu0 %2780
        %v2784 = vadd.f32 %v2717, %v2779
        %v2785 = vadd.f32 %v2718, %v2781
        %s2786 = sld [smem:[#allocation13 + $0x2a]]
        %v2787 = vstv %s2786
        %v2788 = vmul.f32 %v2787, %v476
        %v2789 = vmul.f32 %v2787, %v477
        %s2790 = sld [smem:[#allocation13 + $0x5b]]
        %v2791 = vstv %s2790
        %v2792 = vmul.f32 %v2791, %v478
        %v2793 = vmul.f32 %v2791, %v479
        %v2794 = vadd.f32 %v2788, %v2792
        %v2795 = vadd.f32 %v2789, %v2793
        %v2798 = vrot.slane %v2794, 6
        %v2799 = vrot.slane %v2795, 6
        %v2800 = vsel %vm764, %v2798, %v2799
        %v2802 = vadd.f32 %v2737, %v2800
        %s2803 = sld [smem:[#allocation13 + $0x8c]]
        %v2804 = vstv %s2803
        %v2805 = vmul.f32 %v2804, %v480
        %s2806 = sld [smem:[#allocation13 + $0xbd]]
        %v2807 = vstv %s2806
        %v2808 = vmul.f32 %v2807, %v482
        %v2809 = vadd.f32 %v2805, %v2808
        %2811 = vrot.lane.b32.xlu0 %v2809, 122
        %v2812 = vpop.permute.xlu0 %2811
        %v2814 = vadd.f32 %v2756, %v2812
        %s2815 = sld [smem:[#allocation13 + $0xee]]
        %v2816 = vstv %s2815
        %v2817 = vmul.f32 %v2816, %v484
        %v2818 = vmul.f32 %v2816, %v485
        %v2819 = vmul.f32 %v2816, %v486
        %s2820 = sld [smem:[#allocation13 + $0x11f]]
        %v2821 = vstv %s2820
        %v2822 = vmul.f32 %v2821, %v487
        %v2823 = vmul.f32 %v2821, %v488
        %v2824 = vmul.f32 %v2821, %v489
        %v2825 = vadd.f32 %v2817, %v2822
        %v2826 = vadd.f32 %v2818, %v2823
        %v2827 = vadd.f32 %v2819, %v2824
        %v2831 = vrot.slane %v2825, 6
        %v2832 = vrot.slane %v2826, 6
        %v2833 = vsel %vm764, %v2831, %v2832
        %v2834 = vrot.slane %v2827, 6
        %v2835 = vsel %vm764, %v2832, %v2834
        %v2838 = vadd.f32 %v2784, %v2833
        %v2839 = vadd.f32 %v2785, %v2835
        %s2840 = sld [smem:[#allocation13 + $0x2b]]
        %v2841 = vstv %s2840
        %v2842 = vmul.f32 %v2841, %v476
        %v2843 = vmul.f32 %v2841, %v477
        %s2844 = sld [smem:[#allocation13 + $0x5c]]
        %v2845 = vstv %s2844
        %v2846 = vmul.f32 %v2845, %v478
        %v2847 = vmul.f32 %v2845, %v479
        %v2848 = vadd.f32 %v2842, %v2846
        %v2849 = vadd.f32 %v2843, %v2847
        %v2852 = vrot.slane %v2848, 6
        %v2853 = vrot.slane %v2849, 6
        %v2854 = vsel %vm764, %v2852, %v2853
        %2855 = vrot.lane.b32.xlu0 %v2854, 127
        %v2856 = vpop.permute.xlu0 %2855
        %v2858 = vadd.f32 %v2802, %v2856
        %s2859 = sld [smem:[#allocation13 + $0x8d]]
        %v2860 = vstv %s2859
        %v2861 = vmul.f32 %v2860, %v480
        %s2862 = sld [smem:[#allocation13 + $0xbe]]
        %v2863 = vstv %s2862
        %v2864 = vmul.f32 %v2863, %v482
        %v2865 = vadd.f32 %v2861, %v2864
        %v2867 = vrot.slane %v2865, 1
        %2868 = vrot.lane.b32.xlu0 %v2867, 122
        %v2869 = vpop.permute.xlu0 %2868
        %v2871 = vadd.f32 %v2814, %v2869
        %s2872 = sld [smem:[#allocation13 + $0xef]]
        %v2873 = vstv %s2872
        %v2874 = vmul.f32 %v2873, %v484
        %v2875 = vmul.f32 %v2873, %v485
        %v2876 = vmul.f32 %v2873, %v486
        %s2877 = sld [smem:[#allocation13 + $0x120]]
        %v2878 = vstv %s2877
        %v2879 = vmul.f32 %v2878, %v487
        %v2880 = vmul.f32 %v2878, %v488
        %v2881 = vmul.f32 %v2878, %v489
        %v2882 = vadd.f32 %v2874, %v2879
        %v2883 = vadd.f32 %v2875, %v2880
        %v2884 = vadd.f32 %v2876, %v2881
        %v2888 = vrot.slane %v2882, 6
        %v2889 = vrot.slane %v2883, 6
        %v2890 = vsel %vm764, %v2888, %v2889
        %v2891 = vrot.slane %v2884, 6
        %v2892 = vsel %vm764, %v2889, %v2891
        %2893 = vrot.lane.b32.xlu0 %v2890, 127
        %v2894 = vpop.permute.xlu0 %2893
        %2895 = vrot.lane.b32.xlu0 %v2892, 127
        %v2896 = vpop.permute.xlu0 %2895
        %v2899 = vadd.f32 %v2838, %v2894
        %v2900 = vadd.f32 %v2839, %v2896
        %s2901 = sld [smem:[#allocation13 + $0x2c]]
        %v2902 = vstv %s2901
        %v2903 = vmul.f32 %v2902, %v476
        %v2904 = vmul.f32 %v2902, %v477
        %s2905 = sld [smem:[#allocation13 + $0x5d]]
        %v2906 = vstv %s2905
        %v2907 = vmul.f32 %v2906, %v478
        %v2908 = vmul.f32 %v2906, %v479
        %v2909 = vadd.f32 %v2903, %v2907
        %v2910 = vadd.f32 %v2904, %v2908
        %v2913 = vrot.slane %v2909, 6
        %v2914 = vrot.slane %v2910, 6
        %v2915 = vsel %vm764, %v2913, %v2914
        %2916 = vrot.lane.b32.xlu0 %v2915, 126
        %v2917 = vpop.permute.xlu0 %2916
        %v2919 = vadd.f32 %v2858, %v2917
        %s2920 = sld [smem:[#allocation13 + $0x8e]]
        %v2921 = vstv %s2920
        %v2922 = vmul.f32 %v2921, %v480
        %s2923 = sld [smem:[#allocation13 + $0xbf]]
        %v2924 = vstv %s2923
        %v2925 = vmul.f32 %v2924, %v482
        %v2926 = vadd.f32 %v2922, %v2925
        %v2928 = vrot.slane %v2926, 2
        %2929 = vrot.lane.b32.xlu0 %v2928, 122
        %v2930 = vpop.permute.xlu0 %2929
        %v2932 = vadd.f32 %v2871, %v2930
        %s2933 = sld [smem:[#allocation13 + $0xf0]]
        %v2934 = vstv %s2933
        %v2935 = vmul.f32 %v2934, %v484
        %v2936 = vmul.f32 %v2934, %v485
        %v2937 = vmul.f32 %v2934, %v486
        %s2938 = sld [smem:[#allocation13 + $0x121]]
        %v2939 = vstv %s2938
        %v2940 = vmul.f32 %v2939, %v487
        %v2941 = vmul.f32 %v2939, %v488
        %v2942 = vmul.f32 %v2939, %v489
        %v2943 = vadd.f32 %v2935, %v2940
        %v2944 = vadd.f32 %v2936, %v2941
        %v2945 = vadd.f32 %v2937, %v2942
        %v2949 = vrot.slane %v2943, 6
        %v2950 = vrot.slane %v2944, 6
        %v2951 = vsel %vm764, %v2949, %v2950
        %v2952 = vrot.slane %v2945, 6
        %v2953 = vsel %vm764, %v2950, %v2952
        %2954 = vrot.lane.b32.xlu0 %v2951, 126
        %v2955 = vpop.permute.xlu0 %2954
        %2956 = vrot.lane.b32.xlu0 %v2953, 126
        %v2957 = vpop.permute.xlu0 %2956
        %v2960 = vadd.f32 %v2899, %v2955
        %v2961 = vadd.f32 %v2900, %v2957
        %s2962 = sld [smem:[#allocation13 + $0x2d]]
        %v2963 = vstv %s2962
        %v2964 = vmul.f32 %v2963, %v476
        %v2965 = vmul.f32 %v2963, %v477
        %s2966 = sld [smem:[#allocation13 + $0x5e]]
        %v2967 = vstv %s2966
        %v2968 = vmul.f32 %v2967, %v478
        %v2969 = vmul.f32 %v2967, %v479
        %v2970 = vadd.f32 %v2964, %v2968
        %v2971 = vadd.f32 %v2965, %v2969
        %v2974 = vrot.slane %v2970, 6
        %v2975 = vrot.slane %v2971, 6
        %v2976 = vsel %vm764, %v2974, %v2975
        %2977 = vrot.lane.b32.xlu0 %v2976, 125
        %v2978 = vpop.permute.xlu0 %2977
        %v2980 = vadd.f32 %v2919, %v2978
        %s2981 = sld [smem:[#allocation13 + $0x8f]]
        %v2982 = vstv %s2981
        %v2983 = vmul.f32 %v2982, %v480
        %s2984 = sld [smem:[#allocation13 + $0xc0]]
        %v2985 = vstv %s2984
        %v2986 = vmul.f32 %v2985, %v482
        %v2987 = vadd.f32 %v2983, %v2986
        %v2989 = vrot.slane %v2987, 3
        %2990 = vrot.lane.b32.xlu0 %v2989, 122
        %v2991 = vpop.permute.xlu0 %2990
        %v2993 = vadd.f32 %v2932, %v2991
        %s2994 = sld [smem:[#allocation13 + $0xf1]]
        %v2995 = vstv %s2994
        %v2996 = vmul.f32 %v2995, %v484
        %v2997 = vmul.f32 %v2995, %v485
        %v2998 = vmul.f32 %v2995, %v486
        %s2999 = sld [smem:[#allocation13 + $0x122]]
        %v3000 = vstv %s2999
        %v3001 = vmul.f32 %v3000, %v487
        %v3002 = vmul.f32 %v3000, %v488
        %v3003 = vmul.f32 %v3000, %v489
        %v3004 = vadd.f32 %v2996, %v3001
        %v3005 = vadd.f32 %v2997, %v3002
        %v3006 = vadd.f32 %v2998, %v3003
        %v3010 = vrot.slane %v3004, 6
        %v3011 = vrot.slane %v3005, 6
        %v3012 = vsel %vm764, %v3010, %v3011
        %v3013 = vrot.slane %v3006, 6
        %v3014 = vsel %vm764, %v3011, %v3013
        %3015 = vrot.lane.b32.xlu0 %v3012, 125
        %v3016 = vpop.permute.xlu0 %3015
        %3017 = vrot.lane.b32.xlu0 %v3014, 125
        %v3018 = vpop.permute.xlu0 %3017
        %v3021 = vadd.f32 %v2960, %v3016
        %v3022 = vadd.f32 %v2961, %v3018
        %s3023 = sld [smem:[#allocation13 + $0x2e]]
        %v3024 = vstv %s3023
        %v3025 = vmul.f32 %v3024, %v476
        %v3026 = vmul.f32 %v3024, %v477
        %s3027 = sld [smem:[#allocation13 + $0x5f]]
        %v3028 = vstv %s3027
        %v3029 = vmul.f32 %v3028, %v478
        %v3030 = vmul.f32 %v3028, %v479
        %v3031 = vadd.f32 %v3025, %v3029
        %v3032 = vadd.f32 %v3026, %v3030
        %v3035 = vrot.slane %v3031, 6
        %v3036 = vrot.slane %v3032, 6
        %v3037 = vsel %vm764, %v3035, %v3036
        %3038 = vrot.lane.b32.xlu0 %v3037, 124
        %v3039 = vpop.permute.xlu0 %3038
        %v3041 = vadd.f32 %v2980, %v3039
        %s3042 = sld [smem:[#allocation13 + $0x90]]
        %v3043 = vstv %s3042
        %v3044 = vmul.f32 %v3043, %v480
        %s3045 = sld [smem:[#allocation13 + $0xc1]]
        %v3046 = vstv %s3045
        %v3047 = vmul.f32 %v3046, %v482
        %v3048 = vadd.f32 %v3044, %v3047
        %v3050 = vrot.slane %v3048, 4
        %3051 = vrot.lane.b32.xlu0 %v3050, 122
        %v3052 = vpop.permute.xlu0 %3051
        %v3054 = vadd.f32 %v2993, %v3052
        %s3055 = sld [smem:[#allocation13 + $0xf2]]
        %v3056 = vstv %s3055
        %v3057 = vmul.f32 %v3056, %v484
        %v3058 = vmul.f32 %v3056, %v485
        %v3059 = vmul.f32 %v3056, %v486
        %s3060 = sld [smem:[#allocation13 + $0x123]]
        %v3061 = vstv %s3060
        %v3062 = vmul.f32 %v3061, %v487
        %v3063 = vmul.f32 %v3061, %v488
        %v3064 = vmul.f32 %v3061, %v489
        %v3065 = vadd.f32 %v3057, %v3062
        %v3066 = vadd.f32 %v3058, %v3063
        %v3067 = vadd.f32 %v3059, %v3064
        %v3071 = vrot.slane %v3065, 6
        %v3072 = vrot.slane %v3066, 6
        %v3073 = vsel %vm764, %v3071, %v3072
        %v3074 = vrot.slane %v3067, 6
        %v3075 = vsel %vm764, %v3072, %v3074
        %3076 = vrot.lane.b32.xlu0 %v3073, 124
        %v3077 = vpop.permute.xlu0 %3076
        %3078 = vrot.lane.b32.xlu0 %v3075, 124
        %v3079 = vpop.permute.xlu0 %3078
        %v3082 = vadd.f32 %v3021, %v3077
        %v3083 = vadd.f32 %v3022, %v3079
        %s3084 = sld [smem:[#allocation13 + $0x2f]]
        %v3085 = vstv %s3084
        %v3086 = vmul.f32 %v3085, %v476
        %v3087 = vmul.f32 %v3085, %v477
        %s3088 = sld [smem:[#allocation13 + $0x60]]
        %v3089 = vstv %s3088
        %v3090 = vmul.f32 %v3089, %v478
        %v3091 = vmul.f32 %v3089, %v479
        %v3092 = vadd.f32 %v3086, %v3090
        %v3093 = vadd.f32 %v3087, %v3091
        %v3096 = vrot.slane %v3092, 6
        %v3097 = vrot.slane %v3093, 6
        %v3098 = vsel %vm764, %v3096, %v3097
        %3099 = vrot.lane.b32.xlu0 %v3098, 123
        %v3100 = vpop.permute.xlu0 %3099
        %v3102 = vadd.f32 %v3041, %v3100
        %s3103 = sld [smem:[#allocation13 + $0x91]]
        %v3104 = vstv %s3103
        %v3105 = vmul.f32 %v3104, %v480
        %v3106 = vmul.f32 %v3104, %v481
        %s3107 = sld [smem:[#allocation13 + $0xc2]]
        %v3108 = vstv %s3107
        %v3109 = vmul.f32 %v3108, %v482
        %v3110 = vmul.f32 %v3108, %v483
        %v3111 = vadd.f32 %v3105, %v3109
        %v3112 = vadd.f32 %v3106, %v3110
        %v3115 = vrot.slane %v3111, 5
        %v3116 = vrot.slane %v3112, 5
        %v3117 = vsel %vm714, %v3115, %v3116
        %3118 = vrot.lane.b32.xlu0 %v3117, 122
        %v3119 = vpop.permute.xlu0 %3118
        %v3121 = vadd.f32 %v3054, %v3119
        %s3122 = sld [smem:[#allocation13 + $0xf3]]
        %v3123 = vstv %s3122
        %v3124 = vmul.f32 %v3123, %v484
        %v3125 = vmul.f32 %v3123, %v485
        %v3126 = vmul.f32 %v3123, %v486
        %s3127 = sld [smem:[#allocation13 + $0x124]]
        %v3128 = vstv %s3127
        %v3129 = vmul.f32 %v3128, %v487
        %v3130 = vmul.f32 %v3128, %v488
        %v3131 = vmul.f32 %v3128, %v489
        %v3132 = vadd.f32 %v3124, %v3129
        %v3133 = vadd.f32 %v3125, %v3130
        %v3134 = vadd.f32 %v3126, %v3131
        %v3138 = vrot.slane %v3132, 6
        %v3139 = vrot.slane %v3133, 6
        %v3140 = vsel %vm764, %v3138, %v3139
        %v3141 = vrot.slane %v3134, 6
        %v3142 = vsel %vm764, %v3139, %v3141
        %3143 = vrot.lane.b32.xlu0 %v3140, 123
        %v3144 = vpop.permute.xlu0 %3143
        %3145 = vrot.lane.b32.xlu0 %v3142, 123
        %v3146 = vpop.permute.xlu0 %3145
        %v3149 = vadd.f32 %v3082, %v3144
        %v3150 = vadd.f32 %v3083, %v3146
        %s3151 = sld [smem:[#allocation13 + $0x30]]
        %v3152 = vstv %s3151
        %v3153 = vmul.f32 %v3152, %v476
        %v3154 = vmul.f32 %v3152, %v477
        %s3155 = sld [smem:[#allocation13 + $0x61]]
        %v3156 = vstv %s3155
        %v3157 = vmul.f32 %v3156, %v478
        %v3158 = vmul.f32 %v3156, %v479
        %v3159 = vadd.f32 %v3153, %v3157
        %v3160 = vadd.f32 %v3154, %v3158
        %v3163 = vrot.slane %v3159, 6
        %v3164 = vrot.slane %v3160, 6
        %v3165 = vsel %vm764, %v3163, %v3164
        %3166 = vrot.lane.b32.xlu0 %v3165, 122
        %v3167 = vpop.permute.xlu0 %3166
        %v3169 = vadd.f32 %v3102, %v3167
        %s3170 = sld [smem:[#allocation13 + $0x92]]
        %v3171 = vstv %s3170
        %v3172 = vmul.f32 %v3171, %v480
        %v3173 = vmul.f32 %v3171, %v481
        %s3174 = sld [smem:[#allocation13 + $0xc3]]
        %v3175 = vstv %s3174
        %v3176 = vmul.f32 %v3175, %v482
        %v3177 = vmul.f32 %v3175, %v483
        %v3178 = vadd.f32 %v3172, %v3176
        %v3179 = vadd.f32 %v3173, %v3177
        %v3182 = vrot.slane %v3178, 6
        %v3183 = vrot.slane %v3179, 6
        %v3184 = vsel %vm764, %v3182, %v3183
        %3185 = vrot.lane.b32.xlu0 %v3184, 122
        %v3186 = vpop.permute.xlu0 %3185
        %v3188 = vadd.f32 %v3121, %v3186
        %s3189 = sld [smem:[#allocation13 + $0xf4]]
        %v3190 = vstv %s3189
        %v3191 = vmul.f32 %v3190, %v484
        %v3192 = vmul.f32 %v3190, %v485
        %v3193 = vmul.f32 %v3190, %v486
        %s3194 = sld [smem:[#allocation13 + $0x125]]
        %v3195 = vstv %s3194
        %v3196 = vmul.f32 %v3195, %v487
        %v3197 = vmul.f32 %v3195, %v488
        %v3198 = vmul.f32 %v3195, %v489
        %v3199 = vadd.f32 %v3191, %v3196
        %v3200 = vadd.f32 %v3192, %v3197
        %v3201 = vadd.f32 %v3193, %v3198
        %v3205 = vrot.slane %v3199, 6
        %v3206 = vrot.slane %v3200, 6
        %v3207 = vsel %vm764, %v3205, %v3206
        %v3208 = vrot.slane %v3201, 6
        %v3209 = vsel %vm764, %v3206, %v3208
        %3210 = vrot.lane.b32.xlu0 %v3207, 122
        %v3211 = vpop.permute.xlu0 %3210
        %3212 = vrot.lane.b32.xlu0 %v3209, 122
        %v3213 = vpop.permute.xlu0 %3212
        %v3216 = vadd.f32 %v3149, %v3211
        %v3217 = vadd.f32 %v3150, %v3213
        %s3218 = sld [smem:[#allocation14]]
        %v3219 = vstv %s3218
        %v3220 = vmul.f32 %v3169, %v3219
        %s3221 = sld [smem:[#allocation14 + $0x1]]
        %v3222 = vstv %s3221
        %v3223 = vadd.f32 %v3220, %v3222
        %v3224 = vxor.u32 %v3223, 2147483648
        %v3225 = vmul.f32 %v3224, 1.442695
        %v3226 = vpow.pop %v3225
        %v3227 = vadd.f32 %v3226, 1.0
        %v3228 = vrcp.pop %v3227
        %v3229 = vmul.f32 %v3227, %v3228
        %v3230 = vsub.f32 1.0, %v3229
        %v3231 = vmul.f32 %v3228, %v3230
        %v3232 = vadd.f32 %v3228, %v3231
        %vm3233 = vweird.f32 %v3227
        %vm3234 = vweird.f32 %v3228
        %vm3235 = vmor %vm3233, %vm3234
        %v3236 = vsel %vm3235, %v3228, %v3232
        %v3237 = vand.u32 2147483647, %v3227
        %vm3238 = vcmp.eq.f32.partialorder %v3237, 8.507059e+37
        %v3239 = vand.u32 %v3227, 2147483648
        %v3240 = vor.u32 1.1754944e-38, %v3239
        %v3241 = vsel %vm3238, %v3240, %v3236
        %v3242 = vmul.f32 1.0, %v3241
        %s3243 = sld [smem:[#allocation14 + $0x2]]
        %v3244 = vstv %s3243
        %v3245 = vmul.f32 %v3188, %v3244
        %s3246 = sld [smem:[#allocation14 + $0x3]]
        %v3247 = vstv %s3246
        %v3248 = vadd.f32 %v3245, %v3247
        %v3249 = vxor.u32 %v3248, 2147483648
        %v3250 = vmul.f32 %v3249, 1.442695
        %v3251 = vpow.pop %v3250
        %v3252 = vadd.f32 %v3251, 1.0
        %v3253 = vrcp.pop %v3252
        %v3254 = vmul.f32 %v3252, %v3253
        %v3255 = vsub.f32 1.0, %v3254
        %v3256 = vmul.f32 %v3253, %v3255
        %v3257 = vadd.f32 %v3253, %v3256
        %vm3258 = vweird.f32 %v3252
        %vm3259 = vweird.f32 %v3253
        %vm3260 = vmor %vm3258, %vm3259
        %v3261 = vsel %vm3260, %v3253, %v3257
        %v3262 = vand.u32 2147483647, %v3252
        %vm3263 = vcmp.eq.f32.partialorder %v3262, 8.507059e+37
        %v3264 = vand.u32 %v3252, 2147483648
        %v3265 = vor.u32 1.1754944e-38, %v3264
        %v3266 = vsel %vm3263, %v3265, %v3261
        %v3267 = vmul.f32 1.0, %v3266
        %s3268 = sld [smem:[#allocation14 + $0x4]]
        %v3269 = vstv %s3268
        %v3270 = vmul.f32 %v3216, %v3269
        %v3271 = vmul.f32 %v3217, %v3269
        %s3272 = sld [smem:[#allocation14 + $0x5]]
        %v3273 = vstv %s3272
        %v3274 = vadd.f32 %v3270, %v3273
        %v3275 = vadd.f32 %v3271, %v3273
        %v3276 = vxor.u32 %v3274, 2147483648
        %v3277 = vxor.u32 %v3275, 2147483648
        %v3278 = vmul.f32 %v3276, 1.442695
        %v3279 = vpow.pop %v3278
        %v3280 = vmul.f32 %v3277, 1.442695
        %v3281 = vpow.pop %v3280
        %v3282 = vadd.f32 %v3279, 1.0
        %v3283 = vadd.f32 %v3281, 1.0
        %v3284 = vrcp.pop %v3282
        %v3285 = vmul.f32 %v3282, %v3284
        %v3286 = vsub.f32 1.0, %v3285
        %v3287 = vmul.f32 %v3284, %v3286
        %v3288 = vadd.f32 %v3284, %v3287
        %vm3289 = vweird.f32 %v3282
        %vm3290 = vweird.f32 %v3284
        %vm3291 = vmor %vm3289, %vm3290
        %v3292 = vsel %vm3291, %v3284, %v3288
        %v3293 = vand.u32 2147483647, %v3282
        %vm3294 = vcmp.eq.f32.partialorder %v3293, 8.507059e+37
        %v3295 = vand.u32 %v3282, 2147483648
        %v3296 = vor.u32 1.1754944e-38, %v3295
        %v3297 = vsel %vm3294, %v3296, %v3292
        %v3298 = vmul.f32 1.0, %v3297
        %v3299 = vrcp.pop %v3283
        %v3300 = vmul.f32 %v3283, %v3299
        %v3301 = vsub.f32 1.0, %v3300
        %v3302 = vmul.f32 %v3299, %v3301
        %v3303 = vadd.f32 %v3299, %v3302
        %vm3304 = vweird.f32 %v3283
        %vm3305 = vweird.f32 %v3299
        %vm3306 = vmor %vm3304, %vm3305
        %v3307 = vsel %vm3306, %v3299, %v3303
        %v3308 = vand.u32 2147483647, %v3283
        %vm3309 = vcmp.eq.f32.partialorder %v3308, 8.507059e+37
        %v3310 = vand.u32 %v3283, 2147483648
        %v3311 = vor.u32 1.1754944e-38, %v3310
        %v3312 = vsel %vm3309, %v3311, %v3307
        %v3313 = vmul.f32 1.0, %v3312
        %v3315 = vrot.slane %v3242, 1
        %v3316 = vrot.slane %v3242, 2
        %v3317 = vrot.slane %v3242, 3
        %v3318 = vperm.slane %v3267, 0
        %v3319 = vlaneseq
        %v3320 = vshrl.u32 %v3319, 7
        %3322 = vset.pattern.permute.xlu0 %v3320
        %3323 = vperm.xlu0 %3322, %v3318
        %v3324 = vpop.permute.xlu0 %3323
        %v3325 = vlaneseq
        %v3326 = vshrl.u32 %v3325, 7
        %v3327 = vadd.s32 %v3326, 8
        %3328 = vset.pattern.permute.xlu0 %v3327
        %3329 = vperm.xlu0 %3328, %v3318
        %v3330 = vpop.permute.xlu0 %3329
        %v3331 = vperm.slane %v3267, 1
        %v3332 = vlaneseq
        %v3333 = vshrl.u32 %v3332, 7
        %3335 = vset.pattern.permute.xlu0 %v3333
        %3336 = vperm.xlu0 %3335, %v3331
        %v3337 = vpop.permute.xlu0 %3336
        %v3338 = vlaneseq
        %v3339 = vshrl.u32 %v3338, 7
        %v3340 = vadd.s32 %v3339, 8
        %3341 = vset.pattern.permute.xlu0 %v3340
        %3342 = vperm.xlu0 %3341, %v3331
        %v3343 = vpop.permute.xlu0 %3342
        %v3344 = vperm.slane %v3267, 2
        %v3345 = vlaneseq
        %v3346 = vshrl.u32 %v3345, 7
        %3348 = vset.pattern.permute.xlu0 %v3346
        %3349 = vperm.xlu0 %3348, %v3344
        %v3350 = vpop.permute.xlu0 %3349
        %v3351 = vlaneseq
        %v3352 = vshrl.u32 %v3351, 7
        %v3353 = vadd.s32 %v3352, 8
        %3354 = vset.pattern.permute.xlu0 %v3353
        %3355 = vperm.xlu0 %3354, %v3344
        %v3356 = vpop.permute.xlu0 %3355
        %v3357 = vperm.slane %v3267, 3
        %v3358 = vlaneseq
        %v3359 = vshrl.u32 %v3358, 7
        %3361 = vset.pattern.permute.xlu0 %v3359
        %3362 = vperm.xlu0 %3361, %v3357
        %v3363 = vpop.permute.xlu0 %3362
        %v3364 = vlaneseq
        %v3365 = vshrl.u32 %v3364, 7
        %v3366 = vadd.s32 %v3365, 8
        %3367 = vset.pattern.permute.xlu0 %v3366
        %3368 = vperm.xlu0 %3367, %v3357
        %v3369 = vpop.permute.xlu0 %3368
        %v3370 = vperm.slane %v3242, 0
        %v3371 = vperm.slane %v3315, 0
        %v3372 = vperm.slane %v3316, 0
        %v3373 = vperm.slane %v3317, 0
        %v3378 = vadd.f32 %v3370, %v3324
        %v3379 = vadd.f32 %v3370, %v3330
        %v3380 = vadd.f32 %v3371, %v3337
        %v3381 = vadd.f32 %v3371, %v3343
        %v3382 = vadd.f32 %v3372, %v3350
        %v3383 = vadd.f32 %v3372, %v3356
        %v3384 = vadd.f32 %v3373, %v3363
        %v3385 = vadd.f32 %v3373, %v3369
        %v3386 = vadd.f32 %v3378, %v3298
        %v3387 = vadd.f32 %v3379, %v3313
        %v3388 = vadd.f32 %v3380, %v3298
        %v3389 = vadd.f32 %v3381, %v3313
        %v3390 = vadd.f32 %v3382, %v3298
        %v3391 = vadd.f32 %v3383, %v3313
        %v3392 = vadd.f32 %v3384, %v3298
        %v3393 = vadd.f32 %v3385, %v3313
        %v3394 = vmul.f32 %v3386, 0.33333334
        %v3395 = vmul.f32 %v3387, 0.33333334
        %v3396 = vmul.f32 %v3388, 0.33333334
        %v3397 = vmul.f32 %v3389, 0.33333334
        %v3398 = vmul.f32 %v3390, 0.33333334
        %v3399 = vmul.f32 %v3391, 0.33333334
        %v3400 = vmul.f32 %v3392, 0.33333334
        %v3401 = vmul.f32 %v3393, 0.33333334
        %v3402 = vmul.f32 %v218, %v3394
        %v3403 = vmul.f32 %v219, %v3395
        %v3404 = vmul.f32 %v220, %v3396
        %v3405 = vmul.f32 %v221, %v3397
        %v3406 = vmul.f32 %v222, %v3398
        %v3407 = vmul.f32 %v223, %v3399
        %v3408 = vmul.f32 %v224, %v3400
        %v3409 = vmul.f32 %v225, %v3401
        %3410 = vst.msk [vmem:[%s217] sm:$0xff] %vm226, %v3402
        %3411 = vst.msk [vmem:[%s217 + $0x8] sm:$0xff] %vm226, %v3403
        %3412 = vst.msk [vmem:[%s217 + $0x10] sm:$0xff] %vm226, %v3404
        %3413 = vst.msk [vmem:[%s217 + $0x18] sm:$0xff] %vm226, %v3405
        %3414 = vst.msk [vmem:[%s217 + $0x20] sm:$0xff] %vm226, %v3406
        %3415 = vst.msk [vmem:[%s217 + $0x28] sm:$0xff] %vm226, %v3407
        %3416 = vst.msk [vmem:[%s217 + $0x30] sm:$0xff] %vm226, %v3408
        %3417 = vst.msk [vmem:[%s217 + $0x38] sm:$0xff] %vm226, %v3409
        %s3418 = sand.u32 %s98, 1
        %s3419 = scalar_lea.sflag [#allocation10], %s3418
        %s3420 = sand.u32 %s98, 1
        %s3421 = smul.addr %s3420, 64
        %s3422 = scalar_lea.vmem [#allocation15], %s3421
        // Predicated region
        $region45: #{tpu_custom_call.1} parent=31 // pred_check
          %p3423 = pneg %p108
        $region46: #{tpu_custom_call.1} parent=31 // pred_check_branch
          %3425 = sbr.rel (%p3423) target = $region48
        $region47: #{tpu_custom_call.1} parent=31 // pred_region
          %3427 = vsyncadd %s3419, 0
          %s3428 = smul.addr %s22, 8
          %s3429 = smul.addr %s3428, 8
          %s3430 = scalar_lea.hbm %s3, %s3429
          %s3431 = sshll.u32 %s3422, 4
          %s3432 = int_to_ptr.vmem [resolvable:$true] %s3431
          %s3433 = sshll.u32 %s3430, 4
          %s3434 = int_to_ptr.hbm [resolvable:$true] %s3433
          %3439 = dma.vmem_to_hbm [thread:$0]  %s3432, 1024, %s3434, %s3419, 128, 128, 8
        $region48: #{tpu_custom_call.1} parent=31 // pred_fallthru
          _
      $region32: #{tpu_custom_call.1} parent=5 // pred_fallthru
        _
      %p3440 = scmp.le.s32.totalorder 2, %s17
      // Predicated region
      $region49: #{tpu_custom_call.1} parent=5 // pred_check
        %p3441 = pneg %p3440
      $region50: #{tpu_custom_call.1} parent=5 // pred_check_branch
        %3443 = sbr.rel (%p3441) target = $region52
      $region51: #{tpu_custom_call.1} parent=5 // pred_region
        %s3444 = ssub.s32 %s17, 2
        // Predicated region
        $region53: #{tpu_custom_call.1} parent=51 // pred_check
          %p3445 = pneg %p114
        $region54: #{tpu_custom_call.1} parent=51 // pred_check_branch
          %3447 = sbr.rel (%p3445) target = $region56
        $region55: #{tpu_custom_call.1} parent=51 // pred_region
          %s3448 = sand.u32 %s99, 1
          %s3449 = scalar_lea.sflag [#allocation10], %s3448
          %s3450 = sand.u32 %s99, 1
          %s3451 = smul.addr %s3450, 64
          %s3452 = scalar_lea.vmem [#allocation15], %s3451
          %3454 = dma.done %s3449, 1024
        $region56: #{tpu_custom_call.1} parent=51 // pred_fallthru
          _
      $region52: #{tpu_custom_call.1} parent=5 // pred_fallthru
        _
    $region6: #{tpu_custom_call.1} parent=1 // loop_footer
      %s21 = sadd.s32 1, %s17
    $region7: #{tpu_custom_call.1} parent=1 // loop_footer_branch
      %16 = sbr.rel target = $region3
    $region8: #{tpu_custom_call.1} parent=1 // loop_exit
      _
    %3455 = vsyncpa [#allocation9], 1
    %s3456 = scalar_lea.sflag [#allocation9], 1
    %3457 = vsyncpa %s3456, 1
    %3458 = vsyncpa [#allocation10], 1
    %s3459 = scalar_lea.sflag [#allocation10], 1
    %3460 = vsyncpa %s3459, 1
    %3461 = vsyncpa [#allocation11], 1
    %s3462 = scalar_lea.sflag [#allocation11], 1
    %3463 = vsyncpa %s3462, 1
    %3464 = vsyncpa [#allocation12], 1
    %s3465 = scalar_lea.sflag [#allocation12], 1
    %3466 = vsyncpa %s3465, 1

</llo_original>
